<compile_context>
chip_gen: v5e
topology: v5e:2x2
jax: 0.10.0
libtpu: 0.0.40
codegen_flags: <defaults>
</compile_context>

<pallas_src>
import functools

import jax
import jax.numpy as jnp
from jax.experimental import pallas as pl
from jax.experimental.pallas import tpu as pltpu


# ----------------------------------------------------------------------------
# helpers
# ----------------------------------------------------------------------------
def _full_spec(shape):
    """Full-array BlockSpec (single block, grid=(1,))."""
    nd = len(shape)
    return pl.BlockSpec(shape, lambda i: (0,) * nd)


def _elu(y):
    # alpha = 1.0 ; overflow-safe
    return jnp.where(y > 0.0, y, jnp.exp(jnp.minimum(y, 0.0)) - 1.0)


# ----------------------------------------------------------------------------
# the single fused forward kernel
# ----------------------------------------------------------------------------
def _fused_forward_kernel(
    x_mrna_ref, x_cnv_ref,
    w_fc1_ref, b_fc1_ref, w_fc2_ref, b_fc2_ref,
    w_vu_ref, b_vu_ref, w_att_ref, b_att_ref,
    w_h1_ref, b_h1_ref, w_h2_ref, b_h2_ref,
    w_z1_ref, b_z1_ref, w_z2_ref, b_z2_ref,
    w_o1_ref, b_o1_ref, w_o2_ref, b_o2_ref,
    w_e1a_ref, w_e1b_ref, w_e1c_ref, w_e1oo_ref, b_e1_ref,
    w_e2_ref, b_e2_ref,
    w_cls_ref, b_cls_ref,
    afeat_ref, logits_ref, probs_ref, yhat_ref,
    *, n_mrna, att_dim, gate_dim, blk):
    f32 = jnp.float32
    bf16 = jnp.bfloat16

    def mm(a, w_ref):
        # bf16 x bf16 on the MXU, f32 accumulation.
        return jnp.dot(a.astype(bf16), w_ref[...], preferred_element_type=f32)

    # ---- fc1 / fc2 : Linear(512,256) + ELU (AlphaDropout = identity) -------
    h_mrna = _elu(mm(x_mrna_ref[...], w_fc1_ref) + b_fc1_ref[...])     # (Nm,256)
    h_cnv = _elu(mm(x_cnv_ref[...], w_fc2_ref) + b_fc2_ref[...])       # (Nc,256)

    # ---- shared gated-attention pooling, both bags stacked ------------------
    xc = jnp.concatenate([h_mrna, h_cnv], axis=0)                      # (Nm+Nc,256)
    vu = mm(xc, w_vu_ref) + b_vu_ref[...]                              # (Nm+Nc,256)
    av = jnp.tanh(vu[:, :att_dim])
    au = jax.nn.sigmoid(vu[:, att_dim:])
    s = mm(av * au, w_att_ref) + b_att_ref[...]                        # (Nm+Nc,1)

    def pool(scores, h):
        m = jnp.max(scores, axis=0, keepdims=True)
        p = jnp.exp(scores - m)
        a = p / jnp.sum(p, axis=0, keepdims=True)                      # (n,1)
        return jnp.sum(a * h, axis=0, keepdims=True)                   # (1,256)

    mrna = pool(s[:n_mrna], h_mrna)                                    # (1,256)
    cnv = pool(s[n_mrna:], h_cnv)                                      # (1,256)

    # ---- BilinearFusion gated multimodal units (vec1 = cnv, vec2 = mrna) ----
    vcat = jnp.concatenate([cnv, mrna], axis=1)                        # (1,512)
    hg1 = jnp.maximum(mm(cnv, w_h1_ref) + b_h1_ref[...], 0.0)          # (1,32)
    hg2 = jnp.maximum(mm(mrna, w_h2_ref) + b_h2_ref[...], 0.0)
    z1 = mm(vcat, w_z1_ref) + b_z1_ref[...]                            # (1,32)
    z2 = mm(vcat, w_z2_ref) + b_z2_ref[...]
    o1 = jnp.maximum(mm(jax.nn.sigmoid(z1) * hg1, w_o1_ref) + b_o1_ref[...], 0.0)
    o2 = jnp.maximum(mm(jax.nn.sigmoid(z2) * hg2, w_o2_ref) + b_o2_ref[...], 0.0)

    # ---- encoder1 on the (never materialized) flattened outer product ------
    # enc1_pre = vec([o1,1] (x) [o2,1]) @ We1 + be1
    #          = o1 @ W_A + o2 @ W_B + w_c + be1
    #            + sum_j o2[j] * (o1 @ W_oo)[:, j*256:(j+1)*256]
    pre = (mm(o1, w_e1a_ref) + mm(o2, w_e1b_ref)
           + w_e1c_ref[...] + b_e1_ref[...])                           # (1,256)
    mflat = mm(o1, w_e1oo_ref)                                         # (1,32*256)
    lane = jax.lax.broadcasted_iota(jnp.int32, (1, gate_dim), 1)
    acc = pre
    for j in range(gate_dim):
        cj = jnp.sum(jnp.where(lane == j, o2, 0.0), axis=1, keepdims=True)  # (1,1)
        acc = acc + cj * mflat[:, j * blk:(j + 1) * blk]
    h_e1 = jnp.maximum(acc, 0.0)                                       # (1,256)

    # ---- encoder2 + classifier + softmax + argmax ---------------------------
    afeat = jnp.maximum(mm(h_e1, w_e2_ref) + b_e2_ref[...], 0.0)       # (1,256)
    afeat_ref[...] = afeat

    logits = mm(afeat, w_cls_ref) + b_cls_ref[...]                     # (1,C)
    logits_ref[...] = logits
    m = jnp.max(logits, axis=1, keepdims=True)
    e = jnp.exp(logits - m)
    probs_ref[...] = e / jnp.sum(e, axis=1, keepdims=True)

    n_cls = logits.shape[1]
    idx = jax.lax.broadcasted_iota(jnp.int32, logits.shape, 1).astype(f32)
    cand = jnp.where(logits >= m, idx, float(n_cls))                   # first max
    yhat_ref[...] = jnp.min(cand, axis=1, keepdims=True).astype(jnp.int32)


# ----------------------------------------------------------------------------
# wrapper around pallas_call
# ----------------------------------------------------------------------------
def _pallas_forward(p, x_mrna, x_cnv):
    n_mrna = x_mrna.shape[0]
    feat_dim = p["w_fc1"].shape[1]            # 256
    att_dim = p["w_vu"].shape[1] // 2         # 128
    gate_dim = p["w_h1"].shape[1]             # 32
    blk = p["w_e1oo"].shape[1] // gate_dim    # 256
    n_cls = p["w_cls"].shape[1]

    args = (
        x_mrna, x_cnv,
        p["w_fc1"], p["b_fc1"], p["w_fc2"], p["b_fc2"],
        p["w_vu"], p["b_vu"], p["w_att"], p["b_att"],
        p["w_h1"], p["b_h1"], p["w_h2"], p["b_h2"],
        p["w_z1"], p["b_z1"], p["w_z2"], p["b_z2"],
        p["w_o1"], p["b_o1"], p["w_o2"], p["b_o2"],
        p["w_e1a"], p["w_e1b"], p["w_e1c"], p["w_e1oo"], p["b_e1"],
        p["w_e2"], p["b_e2"],
        p["w_cls"], p["b_cls"],
    )

    out_shape = (
        jax.ShapeDtypeStruct((1, feat_dim), jnp.float32),   # afeat
        jax.ShapeDtypeStruct((1, n_cls), jnp.float32),      # logits
        jax.ShapeDtypeStruct((1, n_cls), jnp.float32),      # y_prob
        jax.ShapeDtypeStruct((1, 1), jnp.int32),            # y_hat
    )

    kernel = functools.partial(
        _fused_forward_kernel,
        n_mrna=n_mrna, att_dim=att_dim, gate_dim=gate_dim, blk=blk)

    return pl.pallas_call(
        kernel,
        out_shape=out_shape,
        grid=(1,),
        in_specs=[_full_spec(a.shape) for a in args],
        out_specs=tuple(_full_spec(s.shape) for s in out_shape),
        compiler_params=pltpu.CompilerParams(
            dimension_semantics=("arbitrary",),
            vmem_limit_bytes=32 * 1024 * 1024),
    )(*args)


# ----------------------------------------------------------------------------
# parameter init (init_max_weights: W ~ N(0, 1/sqrt(fan_in)), b = 0)
# PyTorch nn.Linear weights (out,in) are kept transposed as (in,out).
# ----------------------------------------------------------------------------
def init_params(key, n_classes=2):
    keys = iter(jax.random.split(key, 32))

    def lin(in_dim, out_dim):
        std = 1.0 / (in_dim ** 0.5)
        w = jax.random.normal(next(keys), (in_dim, out_dim), jnp.float32) * std
        b = jnp.zeros((out_dim,), jnp.float32)
        return w, b

    raw = {}
    raw["fc1"] = lin(512, 256)
    raw["fc2"] = lin(512, 256)
    # Attention_Gated(L=256, D=128, K=1) (shared for both modalities)
    raw["att_V"] = lin(256, 128)
    raw["att_U"] = lin(256, 128)
    raw["att_w"] = lin(128, 1)
    # BilinearFusion(dim1=256, dim2=256, scale 8 -> gated dim 32, mmhid=256)
    raw["h1"] = lin(256, 32)
    raw["z1"] = lin(512, 32)
    raw["o1"] = lin(32, 32)
    raw["h2"] = lin(256, 32)
    raw["z2"] = lin(512, 32)
    raw["o2"] = lin(32, 32)
    raw["enc1"] = lin(33 * 33, 256)
    raw["enc2"] = lin(256, 256)
    raw["cls"] = lin(256, n_classes)
    return pack_params(raw)


def pack_params(raw):
    """Pack / pre-slice weights into the kernel layout.
    Weights -> bf16 (MXU operands, half the HBM traffic); biases stay f32."""
    bf = lambda w: w.astype(jnp.bfloat16)
    row = lambda b: b.reshape(1, -1).astype(jnp.float32)

    p = {}
    p["w_fc1"], p["b_fc1"] = bf(raw["fc1"][0]), row(raw["fc1"][1])
    p["w_fc2"], p["b_fc2"] = bf(raw["fc2"][0]), row(raw["fc2"][1])
    # shared attention: V and U columns side by side -> one wide matmul
    p["w_vu"] = bf(jnp.concatenate([raw["att_V"][0], raw["att_U"][0]], axis=1))
    p["b_vu"] = jnp.concatenate([row(raw["att_V"][1]), row(raw["att_U"][1])], axis=1)
    p["w_att"], p["b_att"] = bf(raw["att_w"][0]), row(raw["att_w"][1])
    p["w_h1"], p["b_h1"] = bf(raw["h1"][0]), row(raw["h1"][1])
    p["w_h2"], p["b_h2"] = bf(raw["h2"][0]), row(raw["h2"][1])
    p["w_z1"], p["b_z1"] = bf(raw["z1"][0]), row(raw["z1"][1])
    p["w_z2"], p["b_z2"] = bf(raw["z2"][0]), row(raw["z2"][1])
    p["w_o1"], p["b_o1"] = bf(raw["o1"][0]), row(raw["o1"][1])
    p["w_o2"], p["b_o2"] = bf(raw["o2"][0]), row(raw["o2"][1])
    # encoder1 (1089 -> 256): decompose along the [o1,1] (x) [o2,1] structure
    we1, be1 = raw["enc1"]
    g = raw["h1"][0].shape[1]                 # 32
    w3 = we1.reshape(g + 1, g + 1, -1)        # [i, j, c] == We1[i*33+j, c]
    p["w_e1a"] = bf(w3[:g, g, :])                                  # (32,256)  * o1[i]
    p["w_e1b"] = bf(w3[g, :g, :])                                  # (32,256)  * o2[j]
    p["w_e1c"] = w3[g, g, :].reshape(1, -1).astype(jnp.float32)    # (1,256)   * 1
    p["w_e1oo"] = bf(w3[:g, :g, :].reshape(g, -1))                 # (32,8192) * o1[i]o2[j]
    p["b_e1"] = row(be1)
    p["w_e2"], p["b_e2"] = bf(raw["enc2"][0]), row(raw["enc2"][1])
    p["w_cls"], p["b_cls"] = bf(raw["cls"][0]), row(raw["cls"][1])
    return p


# ----------------------------------------------------------------------------
# forward (matches omic_transformer.forward, eval mode)
# ----------------------------------------------------------------------------
def omic_transformer_forward(params, **kwargs):
    x_mrna = kwargs["x_mrna"].reshape(-1, 512).astype(jnp.float32)
    x_cnv = kwargs["x_cnv"].reshape(-1, 512).astype(jnp.float32)
    afeat, logits, y_prob, y_hat = _pallas_forward(params, x_mrna, x_cnv)
    return logits, y_prob, y_hat.reshape(-1), afeat


# ----------------------------------------------------------------------------
if __name__ == "__main__":
    key = jax.random.PRNGKey(0)
    k_mrna, k_cnv, k_params = jax.random.split(key, 3)

    N = 8  # bag size (number of omic instances per modality)
    x_mrna = jax.random.normal(k_mrna, (N, 512), jnp.float32)
    x_cnv = jax.random.normal(k_cnv, (N, 512), jnp.float32)

    params = init_params(k_params, n_classes=2)

    logits, y_prob, y_hat, afeat = omic_transformer_forward(
        params, x_mrna=x_mrna, x_cnv=x_cnv)
    jax.block_until_ready((logits, y_prob, y_hat, afeat))

    assert logits.shape == (1, 2)
    assert y_prob.shape == (1, 2)
    assert y_hat.shape == (1,)
    assert afeat.shape == (1, 256)
    print("KERNEL_OK")
</pallas_src>

<mosaic_0001>
module attributes {stable_mosaic.version = 11 : i64} {
  func.func @_fused_forward_kernel(%arg0: i32, %arg1: memref<8x512xf32, #tpu.memory_space<vmem>>, %arg2: memref<8x512xf32, #tpu.memory_space<vmem>>, %arg3: memref<512x256xbf16, #tpu.memory_space<vmem>>, %arg4: memref<1x256xf32, #tpu.memory_space<vmem>>, %arg5: memref<512x256xbf16, #tpu.memory_space<vmem>>, %arg6: memref<1x256xf32, #tpu.memory_space<vmem>>, %arg7: memref<256x256xbf16, #tpu.memory_space<vmem>>, %arg8: memref<1x256xf32, #tpu.memory_space<vmem>>, %arg9: memref<128x1xbf16, #tpu.memory_space<vmem>>, %arg10: memref<1x1xf32, #tpu.memory_space<vmem>>, %arg11: memref<256x32xbf16, #tpu.memory_space<vmem>>, %arg12: memref<1x32xf32, #tpu.memory_space<vmem>>, %arg13: memref<256x32xbf16, #tpu.memory_space<vmem>>, %arg14: memref<1x32xf32, #tpu.memory_space<vmem>>, %arg15: memref<512x32xbf16, #tpu.memory_space<vmem>>, %arg16: memref<1x32xf32, #tpu.memory_space<vmem>>, %arg17: memref<512x32xbf16, #tpu.memory_space<vmem>>, %arg18: memref<1x32xf32, #tpu.memory_space<vmem>>, %arg19: memref<32x32xbf16, #tpu.memory_space<vmem>>, %arg20: memref<1x32xf32, #tpu.memory_space<vmem>>, %arg21: memref<32x32xbf16, #tpu.memory_space<vmem>>, %arg22: memref<1x32xf32, #tpu.memory_space<vmem>>, %arg23: memref<32x256xbf16, #tpu.memory_space<vmem>>, %arg24: memref<32x256xbf16, #tpu.memory_space<vmem>>, %arg25: memref<1x256xf32, #tpu.memory_space<vmem>>, %arg26: memref<32x8192xbf16, #tpu.memory_space<vmem>>, %arg27: memref<1x256xf32, #tpu.memory_space<vmem>>, %arg28: memref<256x256xbf16, #tpu.memory_space<vmem>>, %arg29: memref<1x256xf32, #tpu.memory_space<vmem>>, %arg30: memref<256x2xbf16, #tpu.memory_space<vmem>>, %arg31: memref<1x2xf32, #tpu.memory_space<vmem>>, %arg32: memref<1x256xf32, #tpu.memory_space<vmem>>, %arg33: memref<1x2xf32, #tpu.memory_space<vmem>>, %arg34: memref<1x2xf32, #tpu.memory_space<vmem>>, %arg35: memref<1x1xi32, #tpu.memory_space<vmem>>) attributes {dimension_semantics = [#tpu.dimension_semantics<arbitrary>], iteration_bounds = array<i64: 1>, scalar_prefetch = 0 : i64, scratch_operands = 0 : i64, tpu.core_type = #tpu.core_type<tc>, window_params = [{pipeline_mode = #tpu.pipeline_mode<synchronous>, transform_indices = @transform_0, window_bounds = array<i64: 8, 512>}, {pipeline_mode = #tpu.pipeline_mode<synchronous>, transform_indices = @transform_1, window_bounds = array<i64: 8, 512>}, {pipeline_mode = #tpu.pipeline_mode<synchronous>, transform_indices = @transform_2, window_bounds = array<i64: 512, 256>}, {pipeline_mode = #tpu.pipeline_mode<synchronous>, transform_indices = @transform_3, window_bounds = array<i64: 1, 256>}, {pipeline_mode = #tpu.pipeline_mode<synchronous>, transform_indices = @transform_4, window_bounds = array<i64: 512, 256>}, {pipeline_mode = #tpu.pipeline_mode<synchronous>, transform_indices = @transform_5, window_bounds = array<i64: 1, 256>}, {pipeline_mode = #tpu.pipeline_mode<synchronous>, transform_indices = @transform_6, window_bounds = array<i64: 256, 256>}, {pipeline_mode = #tpu.pipeline_mode<synchronous>, transform_indices = @transform_7, window_bounds = array<i64: 1, 256>}, {pipeline_mode = #tpu.pipeline_mode<synchronous>, transform_indices = @transform_8, window_bounds = array<i64: 128, 1>}, {pipeline_mode = #tpu.pipeline_mode<synchronous>, transform_indices = @transform_9, window_bounds = array<i64: 1, 1>}, {pipeline_mode = #tpu.pipeline_mode<synchronous>, transform_indices = @transform_10, window_bounds = array<i64: 256, 32>}, {pipeline_mode = #tpu.pipeline_mode<synchronous>, transform_indices = @transform_11, window_bounds = array<i64: 1, 32>}, {pipeline_mode = #tpu.pipeline_mode<synchronous>, transform_indices = @transform_12, window_bounds = array<i64: 256, 32>}, {pipeline_mode = #tpu.pipeline_mode<synchronous>, transform_indices = @transform_13, window_bounds = array<i64: 1, 32>}, {pipeline_mode = #tpu.pipeline_mode<synchronous>, transform_indices = @transform_14, window_bounds = array<i64: 512, 32>}, {pipeline_mode = #tpu.pipeline_mode<synchronous>, transform_indices = @transform_15, window_bounds = array<i64: 1, 32>}, {pipeline_mode = #tpu.pipeline_mode<synchronous>, transform_indices = @transform_16, window_bounds = array<i64: 512, 32>}, {pipeline_mode = #tpu.pipeline_mode<synchronous>, transform_indices = @transform_17, window_bounds = array<i64: 1, 32>}, {pipeline_mode = #tpu.pipeline_mode<synchronous>, transform_indices = @transform_18, window_bounds = array<i64: 32, 32>}, {pipeline_mode = #tpu.pipeline_mode<synchronous>, transform_indices = @transform_19, window_bounds = array<i64: 1, 32>}, {pipeline_mode = #tpu.pipeline_mode<synchronous>, transform_indices = @transform_20, window_bounds = array<i64: 32, 32>}, {pipeline_mode = #tpu.pipeline_mode<synchronous>, transform_indices = @transform_21, window_bounds = array<i64: 1, 32>}, {pipeline_mode = #tpu.pipeline_mode<synchronous>, transform_indices = @transform_22, window_bounds = array<i64: 32, 256>}, {pipeline_mode = #tpu.pipeline_mode<synchronous>, transform_indices = @transform_23, window_bounds = array<i64: 32, 256>}, {pipeline_mode = #tpu.pipeline_mode<synchronous>, transform_indices = @transform_24, window_bounds = array<i64: 1, 256>}, {pipeline_mode = #tpu.pipeline_mode<synchronous>, transform_indices = @transform_25, window_bounds = array<i64: 32, 8192>}, {pipeline_mode = #tpu.pipeline_mode<synchronous>, transform_indices = @transform_26, window_bounds = array<i64: 1, 256>}, {pipeline_mode = #tpu.pipeline_mode<synchronous>, transform_indices = @transform_27, window_bounds = array<i64: 256, 256>}, {pipeline_mode = #tpu.pipeline_mode<synchronous>, transform_indices = @transform_28, window_bounds = array<i64: 1, 256>}, {pipeline_mode = #tpu.pipeline_mode<synchronous>, transform_indices = @transform_29, window_bounds = array<i64: 256, 2>}, {pipeline_mode = #tpu.pipeline_mode<synchronous>, transform_indices = @transform_30, window_bounds = array<i64: 1, 2>}, {pipeline_mode = #tpu.pipeline_mode<synchronous>, transform_indices = @transform_31, window_bounds = array<i64: 1, 256>}, {pipeline_mode = #tpu.pipeline_mode<synchronous>, transform_indices = @transform_32, window_bounds = array<i64: 1, 2>}, {pipeline_mode = #tpu.pipeline_mode<synchronous>, transform_indices = @transform_33, window_bounds = array<i64: 1, 2>}, {pipeline_mode = #tpu.pipeline_mode<synchronous>, transform_indices = @transform_34, window_bounds = array<i64: 1, 1>}]} {
    %c0 = arith.constant 0 : index
    %c0_0 = arith.constant 0 : index
    %0 = vector.load %arg1[%c0, %c0_0] : memref<8x512xf32, #tpu.memory_space<vmem>>, vector<8x512xf32>
    %1 = arith.truncf %0 : vector<8x512xf32> to vector<8x512xbf16>
    %c0_1 = arith.constant 0 : index
    %c0_2 = arith.constant 0 : index
    %2 = vector.load %arg3[%c0_1, %c0_2] : memref<512x256xbf16, #tpu.memory_space<vmem>>, vector<512x256xbf16>
    %cst = arith.constant dense<0.000000e+00> : vector<8x256xf32>
    %3 = tpu.matmul %1, %2, %cst {dimension_numbers = #tpu.dot_dimension_numbers<[1], [0], [0], [1], [0, 0, 1, 1], [], []>} : vector<8x512xbf16>, vector<512x256xbf16>, vector<8x256xf32> -> vector<8x256xf32>
    %c0_3 = arith.constant 0 : index
    %c0_4 = arith.constant 0 : index
    %4 = vector.load %arg4[%c0_3, %c0_4] : memref<1x256xf32, #tpu.memory_space<vmem>>, vector<1x256xf32>
    %5 = vector.broadcast %4 : vector<1x256xf32> to vector<8x256xf32>
    %6 = arith.addf %3, %5 : vector<8x256xf32>
    %cst_5 = arith.constant 0.000000e+00 : f32
    %7 = vector.broadcast %cst_5 : f32 to vector<8x256xf32>
    %8 = arith.cmpf ogt, %6, %7 : vector<8x256xf32>
    %cst_6 = arith.constant 0.000000e+00 : f32
    %9 = vector.broadcast %cst_6 : f32 to vector<8x256xf32>
    %10 = arith.minimumf %6, %9 : vector<8x256xf32>
    %11 = math.exp %10 : vector<8x256xf32>
    %cst_7 = arith.constant 1.000000e+00 : f32
    %12 = vector.broadcast %cst_7 : f32 to vector<8x256xf32>
    %13 = arith.subf %11, %12 : vector<8x256xf32>
    %14 = arith.select %8, %6, %13 : vector<8x256xi1>, vector<8x256xf32>
    %c0_8 = arith.constant 0 : index
    %c0_9 = arith.constant 0 : index
    %15 = vector.load %arg2[%c0_8, %c0_9] : memref<8x512xf32, #tpu.memory_space<vmem>>, vector<8x512xf32>
    %16 = arith.truncf %15 : vector<8x512xf32> to vector<8x512xbf16>
    %c0_10 = arith.constant 0 : index
    %c0_11 = arith.constant 0 : index
    %17 = vector.load %arg5[%c0_10, %c0_11] : memref<512x256xbf16, #tpu.memory_space<vmem>>, vector<512x256xbf16>
    %cst_12 = arith.constant dense<0.000000e+00> : vector<8x256xf32>
    %18 = tpu.matmul %16, %17, %cst_12 {dimension_numbers = #tpu.dot_dimension_numbers<[1], [0], [0], [1], [0, 0, 1, 1], [], []>} : vector<8x512xbf16>, vector<512x256xbf16>, vector<8x256xf32> -> vector<8x256xf32>
    %c0_13 = arith.constant 0 : index
    %c0_14 = arith.constant 0 : index
    %19 = vector.load %arg6[%c0_13, %c0_14] : memref<1x256xf32, #tpu.memory_space<vmem>>, vector<1x256xf32>
    %20 = vector.broadcast %19 : vector<1x256xf32> to vector<8x256xf32>
    %21 = arith.addf %18, %20 : vector<8x256xf32>
    %cst_15 = arith.constant 0.000000e+00 : f32
    %22 = vector.broadcast %cst_15 : f32 to vector<8x256xf32>
    %23 = arith.cmpf ogt, %21, %22 : vector<8x256xf32>
    %cst_16 = arith.constant 0.000000e+00 : f32
    %24 = vector.broadcast %cst_16 : f32 to vector<8x256xf32>
    %25 = arith.minimumf %21, %24 : vector<8x256xf32>
    %26 = math.exp %25 : vector<8x256xf32>
    %cst_17 = arith.constant 1.000000e+00 : f32
    %27 = vector.broadcast %cst_17 : f32 to vector<8x256xf32>
    %28 = arith.subf %26, %27 : vector<8x256xf32>
    %29 = arith.select %23, %21, %28 : vector<8x256xi1>, vector<8x256xf32>
    %30 = tpu.concatenate %14, %29 in 0 : vector<8x256xf32>, vector<8x256xf32> -> vector<16x256xf32>
    %31 = arith.truncf %30 : vector<16x256xf32> to vector<16x256xbf16>
    %c0_18 = arith.constant 0 : index
    %c0_19 = arith.constant 0 : index
    %32 = vector.load %arg7[%c0_18, %c0_19] : memref<256x256xbf16, #tpu.memory_space<vmem>>, vector<256x256xbf16>
    %cst_20 = arith.constant dense<0.000000e+00> : vector<16x256xf32>
    %33 = tpu.matmul %31, %32, %cst_20 {dimension_numbers = #tpu.dot_dimension_numbers<[1], [0], [0], [1], [0, 0, 1, 1], [], []>} : vector<16x256xbf16>, vector<256x256xbf16>, vector<16x256xf32> -> vector<16x256xf32>
    %c0_21 = arith.constant 0 : index
    %c0_22 = arith.constant 0 : index
    %34 = vector.load %arg8[%c0_21, %c0_22] : memref<1x256xf32, #tpu.memory_space<vmem>>, vector<1x256xf32>
    %35 = vector.broadcast %34 : vector<1x256xf32> to vector<16x256xf32>
    %36 = arith.addf %33, %35 : vector<16x256xf32>
    %37 = vector.extract_strided_slice %36 {offsets = [0, 0], sizes = [16, 128], strides = [1, 1]} : vector<16x256xf32> to vector<16x128xf32>
    %38 = math.tanh %37 : vector<16x128xf32>
    %39 = vector.extract_strided_slice %36 {offsets = [0, 128], sizes = [16, 128], strides = [1, 1]} : vector<16x256xf32> to vector<16x128xf32>
    %40 = arith.negf %39 : vector<16x128xf32>
    %41 = math.exp %40 : vector<16x128xf32>
    %cst_23 = arith.constant 1.000000e+00 : f32
    %42 = vector.broadcast %cst_23 : f32 to vector<16x128xf32>
    %43 = arith.addf %42, %41 : vector<16x128xf32>
    %44 = arith.divf %42, %43 : vector<16x128xf32>
    %45 = arith.mulf %38, %44 : vector<16x128xf32>
    %46 = arith.truncf %45 : vector<16x128xf32> to vector<16x128xbf16>
    %c0_24 = arith.constant 0 : index
    %c0_25 = arith.constant 0 : index
    %47 = vector.load %arg9[%c0_24, %c0_25] : memref<128x1xbf16, #tpu.memory_space<vmem>>, vector<128x1xbf16>
    %cst_26 = arith.constant dense<0.000000e+00> : vector<16x1xf32>
    %48 = tpu.matmul %46, %47, %cst_26 {dimension_numbers = #tpu.dot_dimension_numbers<[1], [0], [0], [1], [0, 0, 1, 1], [], []>} : vector<16x128xbf16>, vector<128x1xbf16>, vector<16x1xf32> -> vector<16x1xf32>
    %c0_27 = arith.constant 0 : index
    %c0_28 = arith.constant 0 : index
    %49 = vector.load %arg10[%c0_27, %c0_28] : memref<1x1xf32, #tpu.memory_space<vmem>>, vector<1x1xf32>
    %50 = vector.broadcast %49 : vector<1x1xf32> to vector<16x1xf32>
    %51 = arith.addf %48, %50 : vector<16x1xf32>
    %52 = vector.extract_strided_slice %51 {offsets = [0, 0], sizes = [8, 1], strides = [1, 1]} : vector<16x1xf32> to vector<8x1xf32>
    %cst_29 = arith.constant dense<0xFF800000> : vector<1xf32>
    %53 = vector.multi_reduction <maximumf>, %52, %cst_29 [0] : vector<8x1xf32> to vector<1xf32>
    %54 = vector.shape_cast %53 : vector<1xf32> to vector<1x1xf32>
    %55 = vector.broadcast %54 : vector<1x1xf32> to vector<8x1xf32>
    %56 = arith.subf %52, %55 : vector<8x1xf32>
    %57 = math.exp %56 : vector<8x1xf32>
    %cst_30 = arith.constant dense<0.000000e+00> : vector<1xf32>
    %58 = vector.multi_reduction <add>, %57, %cst_30 [0] : vector<8x1xf32> to vector<1xf32>
    %59 = vector.shape_cast %58 : vector<1xf32> to vector<1x1xf32>
    %60 = vector.broadcast %59 : vector<1x1xf32> to vector<8x1xf32>
    %61 = arith.divf %57, %60 : vector<8x1xf32>
    %62 = vector.broadcast %61 : vector<8x1xf32> to vector<8x256xf32>
    %63 = arith.mulf %62, %14 : vector<8x256xf32>
    %cst_31 = arith.constant dense<0.000000e+00> : vector<256xf32>
    %64 = vector.multi_reduction <add>, %63, %cst_31 [0] : vector<8x256xf32> to vector<256xf32>
    %65 = vector.shape_cast %64 : vector<256xf32> to vector<1x256xf32>
    %66 = vector.extract_strided_slice %51 {offsets = [8, 0], sizes = [8, 1], strides = [1, 1]} : vector<16x1xf32> to vector<8x1xf32>
    %cst_32 = arith.constant dense<0xFF800000> : vector<1xf32>
    %67 = vector.multi_reduction <maximumf>, %66, %cst_32 [0] : vector<8x1xf32> to vector<1xf32>
    %68 = vector.shape_cast %67 : vector<1xf32> to vector<1x1xf32>
    %69 = vector.broadcast %68 : vector<1x1xf32> to vector<8x1xf32>
    %70 = arith.subf %66, %69 : vector<8x1xf32>
    %71 = math.exp %70 : vector<8x1xf32>
    %cst_33 = arith.constant dense<0.000000e+00> : vector<1xf32>
    %72 = vector.multi_reduction <add>, %71, %cst_33 [0] : vector<8x1xf32> to vector<1xf32>
    %73 = vector.shape_cast %72 : vector<1xf32> to vector<1x1xf32>
    %74 = vector.broadcast %73 : vector<1x1xf32> to vector<8x1xf32>
    %75 = arith.divf %71, %74 : vector<8x1xf32>
    %76 = vector.broadcast %75 : vector<8x1xf32> to vector<8x256xf32>
    %77 = arith.mulf %76, %29 : vector<8x256xf32>
    %cst_34 = arith.constant dense<0.000000e+00> : vector<256xf32>
    %78 = vector.multi_reduction <add>, %77, %cst_34 [0] : vector<8x256xf32> to vector<256xf32>
    %79 = vector.shape_cast %78 : vector<256xf32> to vector<1x256xf32>
    %80 = tpu.concatenate %79, %65 in 1 : vector<1x256xf32>, vector<1x256xf32> -> vector<1x512xf32>
    %81 = arith.truncf %79 : vector<1x256xf32> to vector<1x256xbf16>
    %c0_35 = arith.constant 0 : index
    %c0_36 = arith.constant 0 : index
    %82 = vector.load %arg11[%c0_35, %c0_36] : memref<256x32xbf16, #tpu.memory_space<vmem>>, vector<256x32xbf16>
    %cst_37 = arith.constant dense<0.000000e+00> : vector<1x32xf32>
    %83 = tpu.matmul %81, %82, %cst_37 {dimension_numbers = #tpu.dot_dimension_numbers<[1], [0], [0], [1], [0, 0, 1, 1], [], []>} : vector<1x256xbf16>, vector<256x32xbf16>, vector<1x32xf32> -> vector<1x32xf32>
    %c0_38 = arith.constant 0 : index
    %c0_39 = arith.constant 0 : index
    %84 = vector.load %arg12[%c0_38, %c0_39] : memref<1x32xf32, #tpu.memory_space<vmem>>, vector<1x32xf32>
    %85 = arith.addf %83, %84 : vector<1x32xf32>
    %cst_40 = arith.constant 0.000000e+00 : f32
    %86 = vector.broadcast %cst_40 : f32 to vector<1x32xf32>
    %87 = arith.maximumf %85, %86 : vector<1x32xf32>
    %88 = arith.truncf %65 : vector<1x256xf32> to vector<1x256xbf16>
    %c0_41 = arith.constant 0 : index
    %c0_42 = arith.constant 0 : index
    %89 = vector.load %arg13[%c0_41, %c0_42] : memref<256x32xbf16, #tpu.memory_space<vmem>>, vector<256x32xbf16>
    %cst_43 = arith.constant dense<0.000000e+00> : vector<1x32xf32>
    %90 = tpu.matmul %88, %89, %cst_43 {dimension_numbers = #tpu.dot_dimension_numbers<[1], [0], [0], [1], [0, 0, 1, 1], [], []>} : vector<1x256xbf16>, vector<256x32xbf16>, vector<1x32xf32> -> vector<1x32xf32>
    %c0_44 = arith.constant 0 : index
    %c0_45 = arith.constant 0 : index
    %91 = vector.load %arg14[%c0_44, %c0_45] : memref<1x32xf32, #tpu.memory_space<vmem>>, vector<1x32xf32>
    %92 = arith.addf %90, %91 : vector<1x32xf32>
    %cst_46 = arith.constant 0.000000e+00 : f32
    %93 = vector.broadcast %cst_46 : f32 to vector<1x32xf32>
    %94 = arith.maximumf %92, %93 : vector<1x32xf32>
    %95 = arith.truncf %80 : vector<1x512xf32> to vector<1x512xbf16>
    %c0_47 = arith.constant 0 : index
    %c0_48 = arith.constant 0 : index
    %96 = vector.load %arg15[%c0_47, %c0_48] : memref<512x32xbf16, #tpu.memory_space<vmem>>, vector<512x32xbf16>
    %cst_49 = arith.constant dense<0.000000e+00> : vector<1x32xf32>
    %97 = tpu.matmul %95, %96, %cst_49 {dimension_numbers = #tpu.dot_dimension_numbers<[1], [0], [0], [1], [0, 0, 1, 1], [], []>} : vector<1x512xbf16>, vector<512x32xbf16>, vector<1x32xf32> -> vector<1x32xf32>
    %c0_50 = arith.constant 0 : index
    %c0_51 = arith.constant 0 : index
    %98 = vector.load %arg16[%c0_50, %c0_51] : memref<1x32xf32, #tpu.memory_space<vmem>>, vector<1x32xf32>
    %99 = arith.addf %97, %98 : vector<1x32xf32>
    %100 = arith.truncf %80 : vector<1x512xf32> to vector<1x512xbf16>
    %c0_52 = arith.constant 0 : index
    %c0_53 = arith.constant 0 : index
    %101 = vector.load %arg17[%c0_52, %c0_53] : memref<512x32xbf16, #tpu.memory_space<vmem>>, vector<512x32xbf16>
    %cst_54 = arith.constant dense<0.000000e+00> : vector<1x32xf32>
    %102 = tpu.matmul %100, %101, %cst_54 {dimension_numbers = #tpu.dot_dimension_numbers<[1], [0], [0], [1], [0, 0, 1, 1], [], []>} : vector<1x512xbf16>, vector<512x32xbf16>, vector<1x32xf32> -> vector<1x32xf32>
    %c0_55 = arith.constant 0 : index
    %c0_56 = arith.constant 0 : index
    %103 = vector.load %arg18[%c0_55, %c0_56] : memref<1x32xf32, #tpu.memory_space<vmem>>, vector<1x32xf32>
    %104 = arith.addf %102, %103 : vector<1x32xf32>
    %105 = arith.negf %99 : vector<1x32xf32>
    %106 = math.exp %105 : vector<1x32xf32>
    %cst_57 = arith.constant 1.000000e+00 : f32
    %107 = vector.broadcast %cst_57 : f32 to vector<1x32xf32>
    %108 = arith.addf %107, %106 : vector<1x32xf32>
    %109 = arith.divf %107, %108 : vector<1x32xf32>
    %110 = arith.mulf %109, %87 : vector<1x32xf32>
    %111 = arith.truncf %110 : vector<1x32xf32> to vector<1x32xbf16>
    %c0_58 = arith.constant 0 : index
    %c0_59 = arith.constant 0 : index
    %112 = vector.load %arg19[%c0_58, %c0_59] : memref<32x32xbf16, #tpu.memory_space<vmem>>, vector<32x32xbf16>
    %cst_60 = arith.constant dense<0.000000e+00> : vector<1x32xf32>
    %113 = tpu.matmul %111, %112, %cst_60 {dimension_numbers = #tpu.dot_dimension_numbers<[1], [0], [0], [1], [0, 0, 1, 1], [], []>} : vector<1x32xbf16>, vector<32x32xbf16>, vector<1x32xf32> -> vector<1x32xf32>
    %c0_61 = arith.constant 0 : index
    %c0_62 = arith.constant 0 : index
    %114 = vector.load %arg20[%c0_61, %c0_62] : memref<1x32xf32, #tpu.memory_space<vmem>>, vector<1x32xf32>
    %115 = arith.addf %113, %114 : vector<1x32xf32>
    %cst_63 = arith.constant 0.000000e+00 : f32
    %116 = vector.broadcast %cst_63 : f32 to vector<1x32xf32>
    %117 = arith.maximumf %115, %116 : vector<1x32xf32>
    %118 = arith.negf %104 : vector<1x32xf32>
    %119 = math.exp %118 : vector<1x32xf32>
    %cst_64 = arith.constant 1.000000e+00 : f32
    %120 = vector.broadcast %cst_64 : f32 to vector<1x32xf32>
    %121 = arith.addf %120, %119 : vector<1x32xf32>
    %122 = arith.divf %120, %121 : vector<1x32xf32>
    %123 = arith.mulf %122, %94 : vector<1x32xf32>
    %124 = arith.truncf %123 : vector<1x32xf32> to vector<1x32xbf16>
    %c0_65 = arith.constant 0 : index
    %c0_66 = arith.constant 0 : index
    %125 = vector.load %arg21[%c0_65, %c0_66] : memref<32x32xbf16, #tpu.memory_space<vmem>>, vector<32x32xbf16>
    %cst_67 = arith.constant dense<0.000000e+00> : vector<1x32xf32>
    %126 = tpu.matmul %124, %125, %cst_67 {dimension_numbers = #tpu.dot_dimension_numbers<[1], [0], [0], [1], [0, 0, 1, 1], [], []>} : vector<1x32xbf16>, vector<32x32xbf16>, vector<1x32xf32> -> vector<1x32xf32>
    %c0_68 = arith.constant 0 : index
    %c0_69 = arith.constant 0 : index
    %127 = vector.load %arg22[%c0_68, %c0_69] : memref<1x32xf32, #tpu.memory_space<vmem>>, vector<1x32xf32>
    %128 = arith.addf %126, %127 : vector<1x32xf32>
    %cst_70 = arith.constant 0.000000e+00 : f32
    %129 = vector.broadcast %cst_70 : f32 to vector<1x32xf32>
    %130 = arith.maximumf %128, %129 : vector<1x32xf32>
    %131 = arith.truncf %117 : vector<1x32xf32> to vector<1x32xbf16>
    %c0_71 = arith.constant 0 : index
    %c0_72 = arith.constant 0 : index
    %132 = vector.load %arg23[%c0_71, %c0_72] : memref<32x256xbf16, #tpu.memory_space<vmem>>, vector<32x256xbf16>
    %cst_73 = arith.constant dense<0.000000e+00> : vector<1x256xf32>
    %133 = tpu.matmul %131, %132, %cst_73 {dimension_numbers = #tpu.dot_dimension_numbers<[1], [0], [0], [1], [0, 0, 1, 1], [], []>} : vector<1x32xbf16>, vector<32x256xbf16>, vector<1x256xf32> -> vector<1x256xf32>
    %134 = arith.truncf %130 : vector<1x32xf32> to vector<1x32xbf16>
    %c0_74 = arith.constant 0 : index
    %c0_75 = arith.constant 0 : index
    %135 = vector.load %arg24[%c0_74, %c0_75] : memref<32x256xbf16, #tpu.memory_space<vmem>>, vector<32x256xbf16>
    %cst_76 = arith.constant dense<0.000000e+00> : vector<1x256xf32>
    %136 = tpu.matmul %134, %135, %cst_76 {dimension_numbers = #tpu.dot_dimension_numbers<[1], [0], [0], [1], [0, 0, 1, 1], [], []>} : vector<1x32xbf16>, vector<32x256xbf16>, vector<1x256xf32> -> vector<1x256xf32>
    %137 = arith.addf %133, %136 : vector<1x256xf32>
    %c0_77 = arith.constant 0 : index
    %c0_78 = arith.constant 0 : index
    %138 = vector.load %arg25[%c0_77, %c0_78] : memref<1x256xf32, #tpu.memory_space<vmem>>, vector<1x256xf32>
    %139 = arith.addf %137, %138 : vector<1x256xf32>
    %c0_79 = arith.constant 0 : index
    %c0_80 = arith.constant 0 : index
    %140 = vector.load %arg27[%c0_79, %c0_80] : memref<1x256xf32, #tpu.memory_space<vmem>>, vector<1x256xf32>
    %141 = arith.addf %139, %140 : vector<1x256xf32>
    %142 = arith.truncf %117 : vector<1x32xf32> to vector<1x32xbf16>
    %c0_81 = arith.constant 0 : index
    %c0_82 = arith.constant 0 : index
    %143 = vector.load %arg26[%c0_81, %c0_82] : memref<32x8192xbf16, #tpu.memory_space<vmem>>, vector<32x8192xbf16>
    %cst_83 = arith.constant dense<0.000000e+00> : vector<1x8192xf32>
    %144 = tpu.matmul %142, %143, %cst_83 {dimension_numbers = #tpu.dot_dimension_numbers<[1], [0], [0], [1], [0, 0, 1, 1], [], []>} : vector<1x32xbf16>, vector<32x8192xbf16>, vector<1x8192xf32> -> vector<1x8192xf32>
    %145 = tpu.iota {dimensions = array<i32: 1>} : vector<1x32xi32>
    %c0_i32 = arith.constant 0 : i32
    %146 = vector.broadcast %c0_i32 : i32 to vector<1x32xi32>
    %147 = arith.cmpi eq, %145, %146 : vector<1x32xi32>
    %cst_84 = arith.constant 0.000000e+00 : f32
    %148 = vector.broadcast %cst_84 : f32 to vector<1x32xf32>
    %149 = arith.select %147, %130, %148 : vector<1x32xi1>, vector<1x32xf32>
    %cst_85 = arith.constant dense<0.000000e+00> : vector<1xf32>
    %150 = vector.multi_reduction <add>, %149, %cst_85 [1] : vector<1x32xf32> to vector<1xf32>
    %151 = vector.shape_cast %150 : vector<1xf32> to vector<1x1xf32>
    %152 = vector.extract_strided_slice %144 {offsets = [0, 0], sizes = [1, 256], strides = [1, 1]} : vector<1x8192xf32> to vector<1x256xf32>
    %153 = vector.broadcast %151 : vector<1x1xf32> to vector<1x256xf32>
    %154 = arith.mulf %153, %152 : vector<1x256xf32>
    %155 = arith.addf %141, %154 : vector<1x256xf32>
    %c1_i32 = arith.constant 1 : i32
    %156 = vector.broadcast %c1_i32 : i32 to vector<1x32xi32>
    %157 = arith.cmpi eq, %145, %156 : vector<1x32xi32>
    %cst_86 = arith.constant 0.000000e+00 : f32
    %158 = vector.broadcast %cst_86 : f32 to vector<1x32xf32>
    %159 = arith.select %157, %130, %158 : vector<1x32xi1>, vector<1x32xf32>
    %cst_87 = arith.constant dense<0.000000e+00> : vector<1xf32>
    %160 = vector.multi_reduction <add>, %159, %cst_87 [1] : vector<1x32xf32> to vector<1xf32>
    %161 = vector.shape_cast %160 : vector<1xf32> to vector<1x1xf32>
    %162 = vector.extract_strided_slice %144 {offsets = [0, 256], sizes = [1, 256], strides = [1, 1]} : vector<1x8192xf32> to vector<1x256xf32>
    %163 = vector.broadcast %161 : vector<1x1xf32> to vector<1x256xf32>
    %164 = arith.mulf %163, %162 : vector<1x256xf32>
    %165 = arith.addf %155, %164 : vector<1x256xf32>
    %c2_i32 = arith.constant 2 : i32
    %166 = vector.broadcast %c2_i32 : i32 to vector<1x32xi32>
    %167 = arith.cmpi eq, %145, %166 : vector<1x32xi32>
    %cst_88 = arith.constant 0.000000e+00 : f32
    %168 = vector.broadcast %cst_88 : f32 to vector<1x32xf32>
    %169 = arith.select %167, %130, %168 : vector<1x32xi1>, vector<1x32xf32>
    %cst_89 = arith.constant dense<0.000000e+00> : vector<1xf32>
    %170 = vector.multi_reduction <add>, %169, %cst_89 [1] : vector<1x32xf32> to vector<1xf32>
    %171 = vector.shape_cast %170 : vector<1xf32> to vector<1x1xf32>
    %172 = vector.extract_strided_slice %144 {offsets = [0, 512], sizes = [1, 256], strides = [1, 1]} : vector<1x8192xf32> to vector<1x256xf32>
    %173 = vector.broadcast %171 : vector<1x1xf32> to vector<1x256xf32>
    %174 = arith.mulf %173, %172 : vector<1x256xf32>
    %175 = arith.addf %165, %174 : vector<1x256xf32>
    %c3_i32 = arith.constant 3 : i32
    %176 = vector.broadcast %c3_i32 : i32 to vector<1x32xi32>
    %177 = arith.cmpi eq, %145, %176 : vector<1x32xi32>
    %cst_90 = arith.constant 0.000000e+00 : f32
    %178 = vector.broadcast %cst_90 : f32 to vector<1x32xf32>
    %179 = arith.select %177, %130, %178 : vector<1x32xi1>, vector<1x32xf32>
    %cst_91 = arith.constant dense<0.000000e+00> : vector<1xf32>
    %180 = vector.multi_reduction <add>, %179, %cst_91 [1] : vector<1x32xf32> to vector<1xf32>
    %181 = vector.shape_cast %180 : vector<1xf32> to vector<1x1xf32>
    %182 = vector.extract_strided_slice %144 {offsets = [0, 768], sizes = [1, 256], strides = [1, 1]} : vector<1x8192xf32> to vector<1x256xf32>
    %183 = vector.broadcast %181 : vector<1x1xf32> to vector<1x256xf32>
    %184 = arith.mulf %183, %182 : vector<1x256xf32>
    %185 = arith.addf %175, %184 : vector<1x256xf32>
    %c4_i32 = arith.constant 4 : i32
    %186 = vector.broadcast %c4_i32 : i32 to vector<1x32xi32>
    %187 = arith.cmpi eq, %145, %186 : vector<1x32xi32>
    %cst_92 = arith.constant 0.000000e+00 : f32
    %188 = vector.broadcast %cst_92 : f32 to vector<1x32xf32>
    %189 = arith.select %187, %130, %188 : vector<1x32xi1>, vector<1x32xf32>
    %cst_93 = arith.constant dense<0.000000e+00> : vector<1xf32>
    %190 = vector.multi_reduction <add>, %189, %cst_93 [1] : vector<1x32xf32> to vector<1xf32>
    %191 = vector.shape_cast %190 : vector<1xf32> to vector<1x1xf32>
    %192 = vector.extract_strided_slice %144 {offsets = [0, 1024], sizes = [1, 256], strides = [1, 1]} : vector<1x8192xf32> to vector<1x256xf32>
    %193 = vector.broadcast %191 : vector<1x1xf32> to vector<1x256xf32>
    %194 = arith.mulf %193, %192 : vector<1x256xf32>
    %195 = arith.addf %185, %194 : vector<1x256xf32>
    %c5_i32 = arith.constant 5 : i32
    %196 = vector.broadcast %c5_i32 : i32 to vector<1x32xi32>
    %197 = arith.cmpi eq, %145, %196 : vector<1x32xi32>
    %cst_94 = arith.constant 0.000000e+00 : f32
    %198 = vector.broadcast %cst_94 : f32 to vector<1x32xf32>
    %199 = arith.select %197, %130, %198 : vector<1x32xi1>, vector<1x32xf32>
    %cst_95 = arith.constant dense<0.000000e+00> : vector<1xf32>
    %200 = vector.multi_reduction <add>, %199, %cst_95 [1] : vector<1x32xf32> to vector<1xf32>
    %201 = vector.shape_cast %200 : vector<1xf32> to vector<1x1xf32>
    %202 = vector.extract_strided_slice %144 {offsets = [0, 1280], sizes = [1, 256], strides = [1, 1]} : vector<1x8192xf32> to vector<1x256xf32>
    %203 = vector.broadcast %201 : vector<1x1xf32> to vector<1x256xf32>
    %204 = arith.mulf %203, %202 : vector<1x256xf32>
    %205 = arith.addf %195, %204 : vector<1x256xf32>
    %c6_i32 = arith.constant 6 : i32
    %206 = vector.broadcast %c6_i32 : i32 to vector<1x32xi32>
    %207 = arith.cmpi eq, %145, %206 : vector<1x32xi32>
    %cst_96 = arith.constant 0.000000e+00 : f32
    %208 = vector.broadcast %cst_96 : f32 to vector<1x32xf32>
    %209 = arith.select %207, %130, %208 : vector<1x32xi1>, vector<1x32xf32>
    %cst_97 = arith.constant dense<0.000000e+00> : vector<1xf32>
    %210 = vector.multi_reduction <add>, %209, %cst_97 [1] : vector<1x32xf32> to vector<1xf32>
    %211 = vector.shape_cast %210 : vector<1xf32> to vector<1x1xf32>
    %212 = vector.extract_strided_slice %144 {offsets = [0, 1536], sizes = [1, 256], strides = [1, 1]} : vector<1x8192xf32> to vector<1x256xf32>
    %213 = vector.broadcast %211 : vector<1x1xf32> to vector<1x256xf32>
    %214 = arith.mulf %213, %212 : vector<1x256xf32>
    %215 = arith.addf %205, %214 : vector<1x256xf32>
    %c7_i32 = arith.constant 7 : i32
    %216 = vector.broadcast %c7_i32 : i32 to vector<1x32xi32>
    %217 = arith.cmpi eq, %145, %216 : vector<1x32xi32>
    %cst_98 = arith.constant 0.000000e+00 : f32
    %218 = vector.broadcast %cst_98 : f32 to vector<1x32xf32>
    %219 = arith.select %217, %130, %218 : vector<1x32xi1>, vector<1x32xf32>
    %cst_99 = arith.constant dense<0.000000e+00> : vector<1xf32>
    %220 = vector.multi_reduction <add>, %219, %cst_99 [1] : vector<1x32xf32> to vector<1xf32>
    %221 = vector.shape_cast %220 : vector<1xf32> to vector<1x1xf32>
    %222 = vector.extract_strided_slice %144 {offsets = [0, 1792], sizes = [1, 256], strides = [1, 1]} : vector<1x8192xf32> to vector<1x256xf32>
    %223 = vector.broadcast %221 : vector<1x1xf32> to vector<1x256xf32>
    %224 = arith.mulf %223, %222 : vector<1x256xf32>
    %225 = arith.addf %215, %224 : vector<1x256xf32>
    %c8_i32 = arith.constant 8 : i32
    %226 = vector.broadcast %c8_i32 : i32 to vector<1x32xi32>
    %227 = arith.cmpi eq, %145, %226 : vector<1x32xi32>
    %cst_100 = arith.constant 0.000000e+00 : f32
    %228 = vector.broadcast %cst_100 : f32 to vector<1x32xf32>
    %229 = arith.select %227, %130, %228 : vector<1x32xi1>, vector<1x32xf32>
    %cst_101 = arith.constant dense<0.000000e+00> : vector<1xf32>
    %230 = vector.multi_reduction <add>, %229, %cst_101 [1] : vector<1x32xf32> to vector<1xf32>
    %231 = vector.shape_cast %230 : vector<1xf32> to vector<1x1xf32>
    %232 = vector.extract_strided_slice %144 {offsets = [0, 2048], sizes = [1, 256], strides = [1, 1]} : vector<1x8192xf32> to vector<1x256xf32>
    %233 = vector.broadcast %231 : vector<1x1xf32> to vector<1x256xf32>
    %234 = arith.mulf %233, %232 : vector<1x256xf32>
    %235 = arith.addf %225, %234 : vector<1x256xf32>
    %c9_i32 = arith.constant 9 : i32
    %236 = vector.broadcast %c9_i32 : i32 to vector<1x32xi32>
    %237 = arith.cmpi eq, %145, %236 : vector<1x32xi32>
    %cst_102 = arith.constant 0.000000e+00 : f32
    %238 = vector.broadcast %cst_102 : f32 to vector<1x32xf32>
    %239 = arith.select %237, %130, %238 : vector<1x32xi1>, vector<1x32xf32>
    %cst_103 = arith.constant dense<0.000000e+00> : vector<1xf32>
    %240 = vector.multi_reduction <add>, %239, %cst_103 [1] : vector<1x32xf32> to vector<1xf32>
    %241 = vector.shape_cast %240 : vector<1xf32> to vector<1x1xf32>
    %242 = vector.extract_strided_slice %144 {offsets = [0, 2304], sizes = [1, 256], strides = [1, 1]} : vector<1x8192xf32> to vector<1x256xf32>
    %243 = vector.broadcast %241 : vector<1x1xf32> to vector<1x256xf32>
    %244 = arith.mulf %243, %242 : vector<1x256xf32>
    %245 = arith.addf %235, %244 : vector<1x256xf32>
    %c10_i32 = arith.constant 10 : i32
    %246 = vector.broadcast %c10_i32 : i32 to vector<1x32xi32>
    %247 = arith.cmpi eq, %145, %246 : vector<1x32xi32>
    %cst_104 = arith.constant 0.000000e+00 : f32
    %248 = vector.broadcast %cst_104 : f32 to vector<1x32xf32>
    %249 = arith.select %247, %130, %248 : vector<1x32xi1>, vector<1x32xf32>
    %cst_105 = arith.constant dense<0.000000e+00> : vector<1xf32>
    %250 = vector.multi_reduction <add>, %249, %cst_105 [1] : vector<1x32xf32> to vector<1xf32>
    %251 = vector.shape_cast %250 : vector<1xf32> to vector<1x1xf32>
    %252 = vector.extract_strided_slice %144 {offsets = [0, 2560], sizes = [1, 256], strides = [1, 1]} : vector<1x8192xf32> to vector<1x256xf32>
    %253 = vector.broadcast %251 : vector<1x1xf32> to vector<1x256xf32>
    %254 = arith.mulf %253, %252 : vector<1x256xf32>
    %255 = arith.addf %245, %254 : vector<1x256xf32>
    %c11_i32 = arith.constant 11 : i32
    %256 = vector.broadcast %c11_i32 : i32 to vector<1x32xi32>
    %257 = arith.cmpi eq, %145, %256 : vector<1x32xi32>
    %cst_106 = arith.constant 0.000000e+00 : f32
    %258 = vector.broadcast %cst_106 : f32 to vector<1x32xf32>
    %259 = arith.select %257, %130, %258 : vector<1x32xi1>, vector<1x32xf32>
    %cst_107 = arith.constant dense<0.000000e+00> : vector<1xf32>
    %260 = vector.multi_reduction <add>, %259, %cst_107 [1] : vector<1x32xf32> to vector<1xf32>
    %261 = vector.shape_cast %260 : vector<1xf32> to vector<1x1xf32>
    %262 = vector.extract_strided_slice %144 {offsets = [0, 2816], sizes = [1, 256], strides = [1, 1]} : vector<1x8192xf32> to vector<1x256xf32>
    %263 = vector.broadcast %261 : vector<1x1xf32> to vector<1x256xf32>
    %264 = arith.mulf %263, %262 : vector<1x256xf32>
    %265 = arith.addf %255, %264 : vector<1x256xf32>
    %c12_i32 = arith.constant 12 : i32
    %266 = vector.broadcast %c12_i32 : i32 to vector<1x32xi32>
    %267 = arith.cmpi eq, %145, %266 : vector<1x32xi32>
    %cst_108 = arith.constant 0.000000e+00 : f32
    %268 = vector.broadcast %cst_108 : f32 to vector<1x32xf32>
    %269 = arith.select %267, %130, %268 : vector<1x32xi1>, vector<1x32xf32>
    %cst_109 = arith.constant dense<0.000000e+00> : vector<1xf32>
    %270 = vector.multi_reduction <add>, %269, %cst_109 [1] : vector<1x32xf32> to vector<1xf32>
    %271 = vector.shape_cast %270 : vector<1xf32> to vector<1x1xf32>
    %272 = vector.extract_strided_slice %144 {offsets = [0, 3072], sizes = [1, 256], strides = [1, 1]} : vector<1x8192xf32> to vector<1x256xf32>
    %273 = vector.broadcast %271 : vector<1x1xf32> to vector<1x256xf32>
    %274 = arith.mulf %273, %272 : vector<1x256xf32>
    %275 = arith.addf %265, %274 : vector<1x256xf32>
    %c13_i32 = arith.constant 13 : i32
    %276 = vector.broadcast %c13_i32 : i32 to vector<1x32xi32>
    %277 = arith.cmpi eq, %145, %276 : vector<1x32xi32>
    %cst_110 = arith.constant 0.000000e+00 : f32
    %278 = vector.broadcast %cst_110 : f32 to vector<1x32xf32>
    %279 = arith.select %277, %130, %278 : vector<1x32xi1>, vector<1x32xf32>
    %cst_111 = arith.constant dense<0.000000e+00> : vector<1xf32>
    %280 = vector.multi_reduction <add>, %279, %cst_111 [1] : vector<1x32xf32> to vector<1xf32>
    %281 = vector.shape_cast %280 : vector<1xf32> to vector<1x1xf32>
    %282 = vector.extract_strided_slice %144 {offsets = [0, 3328], sizes = [1, 256], strides = [1, 1]} : vector<1x8192xf32> to vector<1x256xf32>
    %283 = vector.broadcast %281 : vector<1x1xf32> to vector<1x256xf32>
    %284 = arith.mulf %283, %282 : vector<1x256xf32>
    %285 = arith.addf %275, %284 : vector<1x256xf32>
    %c14_i32 = arith.constant 14 : i32
    %286 = vector.broadcast %c14_i32 : i32 to vector<1x32xi32>
    %287 = arith.cmpi eq, %145, %286 : vector<1x32xi32>
    %cst_112 = arith.constant 0.000000e+00 : f32
    %288 = vector.broadcast %cst_112 : f32 to vector<1x32xf32>
    %289 = arith.select %287, %130, %288 : vector<1x32xi1>, vector<1x32xf32>
    %cst_113 = arith.constant dense<0.000000e+00> : vector<1xf32>
    %290 = vector.multi_reduction <add>, %289, %cst_113 [1] : vector<1x32xf32> to vector<1xf32>
    %291 = vector.shape_cast %290 : vector<1xf32> to vector<1x1xf32>
    %292 = vector.extract_strided_slice %144 {offsets = [0, 3584], sizes = [1, 256], strides = [1, 1]} : vector<1x8192xf32> to vector<1x256xf32>
    %293 = vector.broadcast %291 : vector<1x1xf32> to vector<1x256xf32>
    %294 = arith.mulf %293, %292 : vector<1x256xf32>
    %295 = arith.addf %285, %294 : vector<1x256xf32>
    %c15_i32 = arith.constant 15 : i32
    %296 = vector.broadcast %c15_i32 : i32 to vector<1x32xi32>
    %297 = arith.cmpi eq, %145, %296 : vector<1x32xi32>
    %cst_114 = arith.constant 0.000000e+00 : f32
    %298 = vector.broadcast %cst_114 : f32 to vector<1x32xf32>
    %299 = arith.select %297, %130, %298 : vector<1x32xi1>, vector<1x32xf32>
    %cst_115 = arith.constant dense<0.000000e+00> : vector<1xf32>
    %300 = vector.multi_reduction <add>, %299, %cst_115 [1] : vector<1x32xf32> to vector<1xf32>
    %301 = vector.shape_cast %300 : vector<1xf32> to vector<1x1xf32>
    %302 = vector.extract_strided_slice %144 {offsets = [0, 3840], sizes = [1, 256], strides = [1, 1]} : vector<1x8192xf32> to vector<1x256xf32>
    %303 = vector.broadcast %301 : vector<1x1xf32> to vector<1x256xf32>
    %304 = arith.mulf %303, %302 : vector<1x256xf32>
    %305 = arith.addf %295, %304 : vector<1x256xf32>
    %c16_i32 = arith.constant 16 : i32
    %306 = vector.broadcast %c16_i32 : i32 to vector<1x32xi32>
    %307 = arith.cmpi eq, %145, %306 : vector<1x32xi32>
    %cst_116 = arith.constant 0.000000e+00 : f32
    %308 = vector.broadcast %cst_116 : f32 to vector<1x32xf32>
    %309 = arith.select %307, %130, %308 : vector<1x32xi1>, vector<1x32xf32>
    %cst_117 = arith.constant dense<0.000000e+00> : vector<1xf32>
    %310 = vector.multi_reduction <add>, %309, %cst_117 [1] : vector<1x32xf32> to vector<1xf32>
    %311 = vector.shape_cast %310 : vector<1xf32> to vector<1x1xf32>
    %312 = vector.extract_strided_slice %144 {offsets = [0, 4096], sizes = [1, 256], strides = [1, 1]} : vector<1x8192xf32> to vector<1x256xf32>
    %313 = vector.broadcast %311 : vector<1x1xf32> to vector<1x256xf32>
    %314 = arith.mulf %313, %312 : vector<1x256xf32>
    %315 = arith.addf %305, %314 : vector<1x256xf32>
    %c17_i32 = arith.constant 17 : i32
    %316 = vector.broadcast %c17_i32 : i32 to vector<1x32xi32>
    %317 = arith.cmpi eq, %145, %316 : vector<1x32xi32>
    %cst_118 = arith.constant 0.000000e+00 : f32
    %318 = vector.broadcast %cst_118 : f32 to vector<1x32xf32>
    %319 = arith.select %317, %130, %318 : vector<1x32xi1>, vector<1x32xf32>
    %cst_119 = arith.constant dense<0.000000e+00> : vector<1xf32>
    %320 = vector.multi_reduction <add>, %319, %cst_119 [1] : vector<1x32xf32> to vector<1xf32>
    %321 = vector.shape_cast %320 : vector<1xf32> to vector<1x1xf32>
    %322 = vector.extract_strided_slice %144 {offsets = [0, 4352], sizes = [1, 256], strides = [1, 1]} : vector<1x8192xf32> to vector<1x256xf32>
    %323 = vector.broadcast %321 : vector<1x1xf32> to vector<1x256xf32>
    %324 = arith.mulf %323, %322 : vector<1x256xf32>
    %325 = arith.addf %315, %324 : vector<1x256xf32>
    %c18_i32 = arith.constant 18 : i32
    %326 = vector.broadcast %c18_i32 : i32 to vector<1x32xi32>
    %327 = arith.cmpi eq, %145, %326 : vector<1x32xi32>
    %cst_120 = arith.constant 0.000000e+00 : f32
    %328 = vector.broadcast %cst_120 : f32 to vector<1x32xf32>
    %329 = arith.select %327, %130, %328 : vector<1x32xi1>, vector<1x32xf32>
    %cst_121 = arith.constant dense<0.000000e+00> : vector<1xf32>
    %330 = vector.multi_reduction <add>, %329, %cst_121 [1] : vector<1x32xf32> to vector<1xf32>
    %331 = vector.shape_cast %330 : vector<1xf32> to vector<1x1xf32>
    %332 = vector.extract_strided_slice %144 {offsets = [0, 4608], sizes = [1, 256], strides = [1, 1]} : vector<1x8192xf32> to vector<1x256xf32>
    %333 = vector.broadcast %331 : vector<1x1xf32> to vector<1x256xf32>
    %334 = arith.mulf %333, %332 : vector<1x256xf32>
    %335 = arith.addf %325, %334 : vector<1x256xf32>
    %c19_i32 = arith.constant 19 : i32
    %336 = vector.broadcast %c19_i32 : i32 to vector<1x32xi32>
    %337 = arith.cmpi eq, %145, %336 : vector<1x32xi32>
    %cst_122 = arith.constant 0.000000e+00 : f32
    %338 = vector.broadcast %cst_122 : f32 to vector<1x32xf32>
    %339 = arith.select %337, %130, %338 : vector<1x32xi1>, vector<1x32xf32>
    %cst_123 = arith.constant dense<0.000000e+00> : vector<1xf32>
    %340 = vector.multi_reduction <add>, %339, %cst_123 [1] : vector<1x32xf32> to vector<1xf32>
    %341 = vector.shape_cast %340 : vector<1xf32> to vector<1x1xf32>
    %342 = vector.extract_strided_slice %144 {offsets = [0, 4864], sizes = [1, 256], strides = [1, 1]} : vector<1x8192xf32> to vector<1x256xf32>
    %343 = vector.broadcast %341 : vector<1x1xf32> to vector<1x256xf32>
    %344 = arith.mulf %343, %342 : vector<1x256xf32>
    %345 = arith.addf %335, %344 : vector<1x256xf32>
    %c20_i32 = arith.constant 20 : i32
    %346 = vector.broadcast %c20_i32 : i32 to vector<1x32xi32>
    %347 = arith.cmpi eq, %145, %346 : vector<1x32xi32>
    %cst_124 = arith.constant 0.000000e+00 : f32
    %348 = vector.broadcast %cst_124 : f32 to vector<1x32xf32>
    %349 = arith.select %347, %130, %348 : vector<1x32xi1>, vector<1x32xf32>
    %cst_125 = arith.constant dense<0.000000e+00> : vector<1xf32>
    %350 = vector.multi_reduction <add>, %349, %cst_125 [1] : vector<1x32xf32> to vector<1xf32>
    %351 = vector.shape_cast %350 : vector<1xf32> to vector<1x1xf32>
    %352 = vector.extract_strided_slice %144 {offsets = [0, 5120], sizes = [1, 256], strides = [1, 1]} : vector<1x8192xf32> to vector<1x256xf32>
    %353 = vector.broadcast %351 : vector<1x1xf32> to vector<1x256xf32>
    %354 = arith.mulf %353, %352 : vector<1x256xf32>
    %355 = arith.addf %345, %354 : vector<1x256xf32>
    %c21_i32 = arith.constant 21 : i32
    %356 = vector.broadcast %c21_i32 : i32 to vector<1x32xi32>
    %357 = arith.cmpi eq, %145, %356 : vector<1x32xi32>
    %cst_126 = arith.constant 0.000000e+00 : f32
    %358 = vector.broadcast %cst_126 : f32 to vector<1x32xf32>
    %359 = arith.select %357, %130, %358 : vector<1x32xi1>, vector<1x32xf32>
    %cst_127 = arith.constant dense<0.000000e+00> : vector<1xf32>
    %360 = vector.multi_reduction <add>, %359, %cst_127 [1] : vector<1x32xf32> to vector<1xf32>
    %361 = vector.shape_cast %360 : vector<1xf32> to vector<1x1xf32>
    %362 = vector.extract_strided_slice %144 {offsets = [0, 5376], sizes = [1, 256], strides = [1, 1]} : vector<1x8192xf32> to vector<1x256xf32>
    %363 = vector.broadcast %361 : vector<1x1xf32> to vector<1x256xf32>
    %364 = arith.mulf %363, %362 : vector<1x256xf32>
    %365 = arith.addf %355, %364 : vector<1x256xf32>
    %c22_i32 = arith.constant 22 : i32
    %366 = vector.broadcast %c22_i32 : i32 to vector<1x32xi32>
    %367 = arith.cmpi eq, %145, %366 : vector<1x32xi32>
    %cst_128 = arith.constant 0.000000e+00 : f32
    %368 = vector.broadcast %cst_128 : f32 to vector<1x32xf32>
    %369 = arith.select %367, %130, %368 : vector<1x32xi1>, vector<1x32xf32>
    %cst_129 = arith.constant dense<0.000000e+00> : vector<1xf32>
    %370 = vector.multi_reduction <add>, %369, %cst_129 [1] : vector<1x32xf32> to vector<1xf32>
    %371 = vector.shape_cast %370 : vector<1xf32> to vector<1x1xf32>
    %372 = vector.extract_strided_slice %144 {offsets = [0, 5632], sizes = [1, 256], strides = [1, 1]} : vector<1x8192xf32> to vector<1x256xf32>
    %373 = vector.broadcast %371 : vector<1x1xf32> to vector<1x256xf32>
    %374 = arith.mulf %373, %372 : vector<1x256xf32>
    %375 = arith.addf %365, %374 : vector<1x256xf32>
    %c23_i32 = arith.constant 23 : i32
    %376 = vector.broadcast %c23_i32 : i32 to vector<1x32xi32>
    %377 = arith.cmpi eq, %145, %376 : vector<1x32xi32>
    %cst_130 = arith.constant 0.000000e+00 : f32
    %378 = vector.broadcast %cst_130 : f32 to vector<1x32xf32>
    %379 = arith.select %377, %130, %378 : vector<1x32xi1>, vector<1x32xf32>
    %cst_131 = arith.constant dense<0.000000e+00> : vector<1xf32>
    %380 = vector.multi_reduction <add>, %379, %cst_131 [1] : vector<1x32xf32> to vector<1xf32>
    %381 = vector.shape_cast %380 : vector<1xf32> to vector<1x1xf32>
    %382 = vector.extract_strided_slice %144 {offsets = [0, 5888], sizes = [1, 256], strides = [1, 1]} : vector<1x8192xf32> to vector<1x256xf32>
    %383 = vector.broadcast %381 : vector<1x1xf32> to vector<1x256xf32>
    %384 = arith.mulf %383, %382 : vector<1x256xf32>
    %385 = arith.addf %375, %384 : vector<1x256xf32>
    %c24_i32 = arith.constant 24 : i32
    %386 = vector.broadcast %c24_i32 : i32 to vector<1x32xi32>
    %387 = arith.cmpi eq, %145, %386 : vector<1x32xi32>
    %cst_132 = arith.constant 0.000000e+00 : f32
    %388 = vector.broadcast %cst_132 : f32 to vector<1x32xf32>
    %389 = arith.select %387, %130, %388 : vector<1x32xi1>, vector<1x32xf32>
    %cst_133 = arith.constant dense<0.000000e+00> : vector<1xf32>
    %390 = vector.multi_reduction <add>, %389, %cst_133 [1] : vector<1x32xf32> to vector<1xf32>
    %391 = vector.shape_cast %390 : vector<1xf32> to vector<1x1xf32>
    %392 = vector.extract_strided_slice %144 {offsets = [0, 6144], sizes = [1, 256], strides = [1, 1]} : vector<1x8192xf32> to vector<1x256xf32>
    %393 = vector.broadcast %391 : vector<1x1xf32> to vector<1x256xf32>
    %394 = arith.mulf %393, %392 : vector<1x256xf32>
    %395 = arith.addf %385, %394 : vector<1x256xf32>
    %c25_i32 = arith.constant 25 : i32
    %396 = vector.broadcast %c25_i32 : i32 to vector<1x32xi32>
    %397 = arith.cmpi eq, %145, %396 : vector<1x32xi32>
    %cst_134 = arith.constant 0.000000e+00 : f32
    %398 = vector.broadcast %cst_134 : f32 to vector<1x32xf32>
    %399 = arith.select %397, %130, %398 : vector<1x32xi1>, vector<1x32xf32>
    %cst_135 = arith.constant dense<0.000000e+00> : vector<1xf32>
    %400 = vector.multi_reduction <add>, %399, %cst_135 [1] : vector<1x32xf32> to vector<1xf32>
    %401 = vector.shape_cast %400 : vector<1xf32> to vector<1x1xf32>
    %402 = vector.extract_strided_slice %144 {offsets = [0, 6400], sizes = [1, 256], strides = [1, 1]} : vector<1x8192xf32> to vector<1x256xf32>
    %403 = vector.broadcast %401 : vector<1x1xf32> to vector<1x256xf32>
    %404 = arith.mulf %403, %402 : vector<1x256xf32>
    %405 = arith.addf %395, %404 : vector<1x256xf32>
    %c26_i32 = arith.constant 26 : i32
    %406 = vector.broadcast %c26_i32 : i32 to vector<1x32xi32>
    %407 = arith.cmpi eq, %145, %406 : vector<1x32xi32>
    %cst_136 = arith.constant 0.000000e+00 : f32
    %408 = vector.broadcast %cst_136 : f32 to vector<1x32xf32>
    %409 = arith.select %407, %130, %408 : vector<1x32xi1>, vector<1x32xf32>
    %cst_137 = arith.constant dense<0.000000e+00> : vector<1xf32>
    %410 = vector.multi_reduction <add>, %409, %cst_137 [1] : vector<1x32xf32> to vector<1xf32>
    %411 = vector.shape_cast %410 : vector<1xf32> to vector<1x1xf32>
    %412 = vector.extract_strided_slice %144 {offsets = [0, 6656], sizes = [1, 256], strides = [1, 1]} : vector<1x8192xf32> to vector<1x256xf32>
    %413 = vector.broadcast %411 : vector<1x1xf32> to vector<1x256xf32>
    %414 = arith.mulf %413, %412 : vector<1x256xf32>
    %415 = arith.addf %405, %414 : vector<1x256xf32>
    %c27_i32 = arith.constant 27 : i32
    %416 = vector.broadcast %c27_i32 : i32 to vector<1x32xi32>
    %417 = arith.cmpi eq, %145, %416 : vector<1x32xi32>
    %cst_138 = arith.constant 0.000000e+00 : f32
    %418 = vector.broadcast %cst_138 : f32 to vector<1x32xf32>
    %419 = arith.select %417, %130, %418 : vector<1x32xi1>, vector<1x32xf32>
    %cst_139 = arith.constant dense<0.000000e+00> : vector<1xf32>
    %420 = vector.multi_reduction <add>, %419, %cst_139 [1] : vector<1x32xf32> to vector<1xf32>
    %421 = vector.shape_cast %420 : vector<1xf32> to vector<1x1xf32>
    %422 = vector.extract_strided_slice %144 {offsets = [0, 6912], sizes = [1, 256], strides = [1, 1]} : vector<1x8192xf32> to vector<1x256xf32>
    %423 = vector.broadcast %421 : vector<1x1xf32> to vector<1x256xf32>
    %424 = arith.mulf %423, %422 : vector<1x256xf32>
    %425 = arith.addf %415, %424 : vector<1x256xf32>
    %c28_i32 = arith.constant 28 : i32
    %426 = vector.broadcast %c28_i32 : i32 to vector<1x32xi32>
    %427 = arith.cmpi eq, %145, %426 : vector<1x32xi32>
    %cst_140 = arith.constant 0.000000e+00 : f32
    %428 = vector.broadcast %cst_140 : f32 to vector<1x32xf32>
    %429 = arith.select %427, %130, %428 : vector<1x32xi1>, vector<1x32xf32>
    %cst_141 = arith.constant dense<0.000000e+00> : vector<1xf32>
    %430 = vector.multi_reduction <add>, %429, %cst_141 [1] : vector<1x32xf32> to vector<1xf32>
    %431 = vector.shape_cast %430 : vector<1xf32> to vector<1x1xf32>
    %432 = vector.extract_strided_slice %144 {offsets = [0, 7168], sizes = [1, 256], strides = [1, 1]} : vector<1x8192xf32> to vector<1x256xf32>
    %433 = vector.broadcast %431 : vector<1x1xf32> to vector<1x256xf32>
    %434 = arith.mulf %433, %432 : vector<1x256xf32>
    %435 = arith.addf %425, %434 : vector<1x256xf32>
    %c29_i32 = arith.constant 29 : i32
    %436 = vector.broadcast %c29_i32 : i32 to vector<1x32xi32>
    %437 = arith.cmpi eq, %145, %436 : vector<1x32xi32>
    %cst_142 = arith.constant 0.000000e+00 : f32
    %438 = vector.broadcast %cst_142 : f32 to vector<1x32xf32>
    %439 = arith.select %437, %130, %438 : vector<1x32xi1>, vector<1x32xf32>
    %cst_143 = arith.constant dense<0.000000e+00> : vector<1xf32>
    %440 = vector.multi_reduction <add>, %439, %cst_143 [1] : vector<1x32xf32> to vector<1xf32>
    %441 = vector.shape_cast %440 : vector<1xf32> to vector<1x1xf32>
    %442 = vector.extract_strided_slice %144 {offsets = [0, 7424], sizes = [1, 256], strides = [1, 1]} : vector<1x8192xf32> to vector<1x256xf32>
    %443 = vector.broadcast %441 : vector<1x1xf32> to vector<1x256xf32>
    %444 = arith.mulf %443, %442 : vector<1x256xf32>
    %445 = arith.addf %435, %444 : vector<1x256xf32>
    %c30_i32 = arith.constant 30 : i32
    %446 = vector.broadcast %c30_i32 : i32 to vector<1x32xi32>
    %447 = arith.cmpi eq, %145, %446 : vector<1x32xi32>
    %cst_144 = arith.constant 0.000000e+00 : f32
    %448 = vector.broadcast %cst_144 : f32 to vector<1x32xf32>
    %449 = arith.select %447, %130, %448 : vector<1x32xi1>, vector<1x32xf32>
    %cst_145 = arith.constant dense<0.000000e+00> : vector<1xf32>
    %450 = vector.multi_reduction <add>, %449, %cst_145 [1] : vector<1x32xf32> to vector<1xf32>
    %451 = vector.shape_cast %450 : vector<1xf32> to vector<1x1xf32>
    %452 = vector.extract_strided_slice %144 {offsets = [0, 7680], sizes = [1, 256], strides = [1, 1]} : vector<1x8192xf32> to vector<1x256xf32>
    %453 = vector.broadcast %451 : vector<1x1xf32> to vector<1x256xf32>
    %454 = arith.mulf %453, %452 : vector<1x256xf32>
    %455 = arith.addf %445, %454 : vector<1x256xf32>
    %c31_i32 = arith.constant 31 : i32
    %456 = vector.broadcast %c31_i32 : i32 to vector<1x32xi32>
    %457 = arith.cmpi eq, %145, %456 : vector<1x32xi32>
    %cst_146 = arith.constant 0.000000e+00 : f32
    %458 = vector.broadcast %cst_146 : f32 to vector<1x32xf32>
    %459 = arith.select %457, %130, %458 : vector<1x32xi1>, vector<1x32xf32>
    %cst_147 = arith.constant dense<0.000000e+00> : vector<1xf32>
    %460 = vector.multi_reduction <add>, %459, %cst_147 [1] : vector<1x32xf32> to vector<1xf32>
    %461 = vector.shape_cast %460 : vector<1xf32> to vector<1x1xf32>
    %462 = vector.extract_strided_slice %144 {offsets = [0, 7936], sizes = [1, 256], strides = [1, 1]} : vector<1x8192xf32> to vector<1x256xf32>
    %463 = vector.broadcast %461 : vector<1x1xf32> to vector<1x256xf32>
    %464 = arith.mulf %463, %462 : vector<1x256xf32>
    %465 = arith.addf %455, %464 : vector<1x256xf32>
    %cst_148 = arith.constant 0.000000e+00 : f32
    %466 = vector.broadcast %cst_148 : f32 to vector<1x256xf32>
    %467 = arith.maximumf %465, %466 : vector<1x256xf32>
    %468 = arith.truncf %467 : vector<1x256xf32> to vector<1x256xbf16>
    %c0_149 = arith.constant 0 : index
    %c0_150 = arith.constant 0 : index
    %469 = vector.load %arg28[%c0_149, %c0_150] : memref<256x256xbf16, #tpu.memory_space<vmem>>, vector<256x256xbf16>
    %cst_151 = arith.constant dense<0.000000e+00> : vector<1x256xf32>
    %470 = tpu.matmul %468, %469, %cst_151 {dimension_numbers = #tpu.dot_dimension_numbers<[1], [0], [0], [1], [0, 0, 1, 1], [], []>} : vector<1x256xbf16>, vector<256x256xbf16>, vector<1x256xf32> -> vector<1x256xf32>
    %c0_152 = arith.constant 0 : index
    %c0_153 = arith.constant 0 : index
    %471 = vector.load %arg29[%c0_152, %c0_153] : memref<1x256xf32, #tpu.memory_space<vmem>>, vector<1x256xf32>
    %472 = arith.addf %470, %471 : vector<1x256xf32>
    %cst_154 = arith.constant 0.000000e+00 : f32
    %473 = vector.broadcast %cst_154 : f32 to vector<1x256xf32>
    %474 = arith.maximumf %472, %473 : vector<1x256xf32>
    %c0_155 = arith.constant 0 : index
    %c0_156 = arith.constant 0 : index
    %475 = vector.load %arg32[%c0_155, %c0_156] : memref<1x256xf32, #tpu.memory_space<vmem>>, vector<1x256xf32>
    tpu.vector_store %arg32[%c0_155, %c0_156], %474 {strides = array<i32>} : memref<1x256xf32, #tpu.memory_space<vmem>>, vector<1x256xf32>,
    %476 = arith.truncf %474 : vector<1x256xf32> to vector<1x256xbf16>
    %c0_157 = arith.constant 0 : index
    %c0_158 = arith.constant 0 : index
    %477 = vector.load %arg30[%c0_157, %c0_158] : memref<256x2xbf16, #tpu.memory_space<vmem>>, vector<256x2xbf16>
    %cst_159 = arith.constant dense<0.000000e+00> : vector<1x2xf32>
    %478 = tpu.matmul %476, %477, %cst_159 {dimension_numbers = #tpu.dot_dimension_numbers<[1], [0], [0], [1], [0, 0, 1, 1], [], []>} : vector<1x256xbf16>, vector<256x2xbf16>, vector<1x2xf32> -> vector<1x2xf32>
    %c0_160 = arith.constant 0 : index
    %c0_161 = arith.constant 0 : index
    %479 = vector.load %arg31[%c0_160, %c0_161] : memref<1x2xf32, #tpu.memory_space<vmem>>, vector<1x2xf32>
    %480 = arith.addf %478, %479 : vector<1x2xf32>
    %c0_162 = arith.constant 0 : index
    %c0_163 = arith.constant 0 : index
    %481 = vector.load %arg33[%c0_162, %c0_163] : memref<1x2xf32, #tpu.memory_space<vmem>>, vector<1x2xf32>
    tpu.vector_store %arg33[%c0_162, %c0_163], %480 {strides = array<i32>} : memref<1x2xf32, #tpu.memory_space<vmem>>, vector<1x2xf32>,
    %cst_164 = arith.constant dense<0xFF800000> : vector<1xf32>
    %482 = vector.multi_reduction <maximumf>, %480, %cst_164 [1] : vector<1x2xf32> to vector<1xf32>
    %483 = vector.shape_cast %482 : vector<1xf32> to vector<1x1xf32>
    %484 = vector.broadcast %483 : vector<1x1xf32> to vector<1x2xf32>
    %485 = arith.subf %480, %484 : vector<1x2xf32>
    %486 = math.exp %485 : vector<1x2xf32>
    %cst_165 = arith.constant dense<0.000000e+00> : vector<1xf32>
    %487 = vector.multi_reduction <add>, %486, %cst_165 [1] : vector<1x2xf32> to vector<1xf32>
    %488 = vector.shape_cast %487 : vector<1xf32> to vector<1x1xf32>
    %489 = vector.broadcast %488 : vector<1x1xf32> to vector<1x2xf32>
    %490 = arith.divf %486, %489 : vector<1x2xf32>
    %c0_166 = arith.constant 0 : index
    %c0_167 = arith.constant 0 : index
    %491 = vector.load %arg34[%c0_166, %c0_167] : memref<1x2xf32, #tpu.memory_space<vmem>>, vector<1x2xf32>
    tpu.vector_store %arg34[%c0_166, %c0_167], %490 {strides = array<i32>} : memref<1x2xf32, #tpu.memory_space<vmem>>, vector<1x2xf32>,
    %492 = tpu.iota {dimensions = array<i32: 1>} : vector<1x2xi32>
    %493 = arith.sitofp %492 : vector<1x2xi32> to vector<1x2xf32>
    %494 = vector.broadcast %483 : vector<1x1xf32> to vector<1x2xf32>
    %495 = arith.cmpf oge, %480, %494 : vector<1x2xf32>
    %cst_168 = arith.constant 2.000000e+00 : f32
    %496 = vector.broadcast %cst_168 : f32 to vector<1x2xf32>
    %497 = arith.select %495, %493, %496 : vector<1x2xi1>, vector<1x2xf32>
    %cst_169 = arith.constant dense<0x7F800000> : vector<1xf32>
    %498 = vector.multi_reduction <minimumf>, %497, %cst_169 [1] : vector<1x2xf32> to vector<1xf32>
    %499 = vector.shape_cast %498 : vector<1xf32> to vector<1x1xf32>
    %500 = arith.fptosi %499 : vector<1x1xf32> to vector<1x1xi32>
    %c0_170 = arith.constant 0 : index
    %c0_171 = arith.constant 0 : index
    %501 = vector.load %arg35[%c0_170, %c0_171] : memref<1x1xi32, #tpu.memory_space<vmem>>, vector<1x1xi32>
    tpu.vector_store %arg35[%c0_170, %c0_171], %500 {strides = array<i32>} : memref<1x1xi32, #tpu.memory_space<vmem>>, vector<1x1xi32>,
    return
  }
  func.func @transform_0(%arg0: i32) -> (i32, i32) {
    %c0_i32 = arith.constant 0 : i32
    %c0_i32_0 = arith.constant 0 : i32
    %c0_i32_1 = arith.constant 0 : i32
    return %c0_i32, %c0_i32_0 : i32, i32
  }
  func.func @transform_1(%arg0: i32) -> (i32, i32) {
    %c0_i32 = arith.constant 0 : i32
    %c0_i32_0 = arith.constant 0 : i32
    %c0_i32_1 = arith.constant 0 : i32
    return %c0_i32, %c0_i32_0 : i32, i32
  }
  func.func @transform_2(%arg0: i32) -> (i32, i32) {
    %c0_i32 = arith.constant 0 : i32
    %c0_i32_0 = arith.constant 0 : i32
    %c0_i32_1 = arith.constant 0 : i32
    return %c0_i32, %c0_i32_0 : i32, i32
  }
  func.func @transform_3(%arg0: i32) -> (i32, i32) {
    %c0_i32 = arith.constant 0 : i32
    %c0_i32_0 = arith.constant 0 : i32
    %c0_i32_1 = arith.constant 0 : i32
    return %c0_i32, %c0_i32_0 : i32, i32
  }
  func.func @transform_4(%arg0: i32) -> (i32, i32) {
    %c0_i32 = arith.constant 0 : i32
    %c0_i32_0 = arith.constant 0 : i32
    %c0_i32_1 = arith.constant 0 : i32
    return %c0_i32, %c0_i32_0 : i32, i32
  }
  func.func @transform_5(%arg0: i32) -> (i32, i32) {
    %c0_i32 = arith.constant 0 : i32
    %c0_i32_0 = arith.constant 0 : i32
    %c0_i32_1 = arith.constant 0 : i32
    return %c0_i32, %c0_i32_0 : i32, i32
  }
  func.func @transform_6(%arg0: i32) -> (i32, i32) {
    %c0_i32 = arith.constant 0 : i32
    %c0_i32_0 = arith.constant 0 : i32
    %c0_i32_1 = arith.constant 0 : i32
    return %c0_i32, %c0_i32_0 : i32, i32
  }
  func.func @transform_7(%arg0: i32) -> (i32, i32) {
    %c0_i32 = arith.constant 0 : i32
    %c0_i32_0 = arith.constant 0 : i32
    %c0_i32_1 = arith.constant 0 : i32
    return %c0_i32, %c0_i32_0 : i32, i32
  }
  func.func @transform_8(%arg0: i32) -> (i32, i32) {
    %c0_i32 = arith.constant 0 : i32
    %c0_i32_0 = arith.constant 0 : i32
    %c0_i32_1 = arith.constant 0 : i32
    return %c0_i32, %c0_i32_0 : i32, i32
  }
  func.func @transform_9(%arg0: i32) -> (i32, i32) {
    %c0_i32 = arith.constant 0 : i32
    %c0_i32_0 = arith.constant 0 : i32
    %c0_i32_1 = arith.constant 0 : i32
    return %c0_i32, %c0_i32_0 : i32, i32
  }
  func.func @transform_10(%arg0: i32) -> (i32, i32) {
    %c0_i32 = arith.constant 0 : i32
    %c0_i32_0 = arith.constant 0 : i32
    %c0_i32_1 = arith.constant 0 : i32
    return %c0_i32, %c0_i32_0 : i32, i32
  }
  func.func @transform_11(%arg0: i32) -> (i32, i32) {
    %c0_i32 = arith.constant 0 : i32
    %c0_i32_0 = arith.constant 0 : i32
    %c0_i32_1 = arith.constant 0 : i32
    return %c0_i32, %c0_i32_0 : i32, i32
  }
  func.func @transform_12(%arg0: i32) -> (i32, i32) {
    %c0_i32 = arith.constant 0 : i32
    %c0_i32_0 = arith.constant 0 : i32
    %c0_i32_1 = arith.constant 0 : i32
    return %c0_i32, %c0_i32_0 : i32, i32
  }
  func.func @transform_13(%arg0: i32) -> (i32, i32) {
    %c0_i32 = arith.constant 0 : i32
    %c0_i32_0 = arith.constant 0 : i32
    %c0_i32_1 = arith.constant 0 : i32
    return %c0_i32, %c0_i32_0 : i32, i32
  }
  func.func @transform_14(%arg0: i32) -> (i32, i32) {
    %c0_i32 = arith.constant 0 : i32
    %c0_i32_0 = arith.constant 0 : i32
    %c0_i32_1 = arith.constant 0 : i32
    return %c0_i32, %c0_i32_0 : i32, i32
  }
  func.func @transform_15(%arg0: i32) -> (i32, i32) {
    %c0_i32 = arith.constant 0 : i32
    %c0_i32_0 = arith.constant 0 : i32
    %c0_i32_1 = arith.constant 0 : i32
    return %c0_i32, %c0_i32_0 : i32, i32
  }
  func.func @transform_16(%arg0: i32) -> (i32, i32) {
    %c0_i32 = arith.constant 0 : i32
    %c0_i32_0 = arith.constant 0 : i32
    %c0_i32_1 = arith.constant 0 : i32
    return %c0_i32, %c0_i32_0 : i32, i32
  }
  func.func @transform_17(%arg0: i32) -> (i32, i32) {
    %c0_i32 = arith.constant 0 : i32
    %c0_i32_0 = arith.constant 0 : i32
    %c0_i32_1 = arith.constant 0 : i32
    return %c0_i32, %c0_i32_0 : i32, i32
  }
  func.func @transform_18(%arg0: i32) -> (i32, i32) {
    %c0_i32 = arith.constant 0 : i32
    %c0_i32_0 = arith.constant 0 : i32
    %c0_i32_1 = arith.constant 0 : i32
    return %c0_i32, %c0_i32_0 : i32, i32
  }
  func.func @transform_19(%arg0: i32) -> (i32, i32) {
    %c0_i32 = arith.constant 0 : i32
    %c0_i32_0 = arith.constant 0 : i32
    %c0_i32_1 = arith.constant 0 : i32
    return %c0_i32, %c0_i32_0 : i32, i32
  }
  func.func @transform_20(%arg0: i32) -> (i32, i32) {
    %c0_i32 = arith.constant 0 : i32
    %c0_i32_0 = arith.constant 0 : i32
    %c0_i32_1 = arith.constant 0 : i32
    return %c0_i32, %c0_i32_0 : i32, i32
  }
  func.func @transform_21(%arg0: i32) -> (i32, i32) {
    %c0_i32 = arith.constant 0 : i32
    %c0_i32_0 = arith.constant 0 : i32
    %c0_i32_1 = arith.constant 0 : i32
    return %c0_i32, %c0_i32_0 : i32, i32
  }
  func.func @transform_22(%arg0: i32) -> (i32, i32) {
    %c0_i32 = arith.constant 0 : i32
    %c0_i32_0 = arith.constant 0 : i32
    %c0_i32_1 = arith.constant 0 : i32
    return %c0_i32, %c0_i32_0 : i32, i32
  }
  func.func @transform_23(%arg0: i32) -> (i32, i32) {
    %c0_i32 = arith.constant 0 : i32
    %c0_i32_0 = arith.constant 0 : i32
    %c0_i32_1 = arith.constant 0 : i32
    return %c0_i32, %c0_i32_0 : i32, i32
  }
  func.func @transform_24(%arg0: i32) -> (i32, i32) {
    %c0_i32 = arith.constant 0 : i32
    %c0_i32_0 = arith.constant 0 : i32
    %c0_i32_1 = arith.constant 0 : i32
    return %c0_i32, %c0_i32_0 : i32, i32
  }
  func.func @transform_25(%arg0: i32) -> (i32, i32) {
    %c0_i32 = arith.constant 0 : i32
    %c0_i32_0 = arith.constant 0 : i32
    %c0_i32_1 = arith.constant 0 : i32
    return %c0_i32, %c0_i32_0 : i32, i32
  }
  func.func @transform_26(%arg0: i32) -> (i32, i32) {
    %c0_i32 = arith.constant 0 : i32
    %c0_i32_0 = arith.constant 0 : i32
    %c0_i32_1 = arith.constant 0 : i32
    return %c0_i32, %c0_i32_0 : i32, i32
  }
  func.func @transform_27(%arg0: i32) -> (i32, i32) {
    %c0_i32 = arith.constant 0 : i32
    %c0_i32_0 = arith.constant 0 : i32
    %c0_i32_1 = arith.constant 0 : i32
    return %c0_i32, %c0_i32_0 : i32, i32
  }
  func.func @transform_28(%arg0: i32) -> (i32, i32) {
    %c0_i32 = arith.constant 0 : i32
    %c0_i32_0 = arith.constant 0 : i32
    %c0_i32_1 = arith.constant 0 : i32
    return %c0_i32, %c0_i32_0 : i32, i32
  }
  func.func @transform_29(%arg0: i32) -> (i32, i32) {
    %c0_i32 = arith.constant 0 : i32
    %c0_i32_0 = arith.constant 0 : i32
    %c0_i32_1 = arith.constant 0 : i32
    return %c0_i32, %c0_i32_0 : i32, i32
  }
  func.func @transform_30(%arg0: i32) -> (i32, i32) {
    %c0_i32 = arith.constant 0 : i32
    %c0_i32_0 = arith.constant 0 : i32
    %c0_i32_1 = arith.constant 0 : i32
    return %c0_i32, %c0_i32_0 : i32, i32
  }
  func.func @transform_31(%arg0: i32) -> (i32, i32) {
    %c0_i32 = arith.constant 0 : i32
    %c0_i32_0 = arith.constant 0 : i32
    %c0_i32_1 = arith.constant 0 : i32
    return %c0_i32, %c0_i32_0 : i32, i32
  }
  func.func @transform_32(%arg0: i32) -> (i32, i32) {
    %c0_i32 = arith.constant 0 : i32
    %c0_i32_0 = arith.constant 0 : i32
    %c0_i32_1 = arith.constant 0 : i32
    return %c0_i32, %c0_i32_0 : i32, i32
  }
  func.func @transform_33(%arg0: i32) -> (i32, i32) {
    %c0_i32 = arith.constant 0 : i32
    %c0_i32_0 = arith.constant 0 : i32
    %c0_i32_1 = arith.constant 0 : i32
    return %c0_i32, %c0_i32_0 : i32, i32
  }
  func.func @transform_34(%arg0: i32) -> (i32, i32) {
    %c0_i32 = arith.constant 0 : i32
    %c0_i32_0 = arith.constant 0 : i32
    %c0_i32_1 = arith.constant 0 : i32
    return %c0_i32, %c0_i32_0 : i32, i32
  }
}

</mosaic_0001>

<llo_original>
// kernel: tpu_custom_call.1
$region0: #{tpu_custom_call.1}
  #allocation0 [shape = 'u32[]', space=smem, size = 0x4, offset = 0x4, fixed_abs, tag = 'smem constant byte address 0x4 - core index']
  #allocation1 [shape = 'u32[72,128]{1,0:T(1,128)}', space=vmem, size = 0x9000, scoped, tag = 'internal scratch']
  #allocation2 [shape = 'f32[1,1]{1,0:T(1,128)S(1)}', space=vmem, size = 0x200, scoped, tag = 'scoped memory for tpu_custom_call.1']
  %s0 = inlined_call_operand.smem [shape: u32[35], index: -1, kind: input, shape index: {}]
  %s1 = sld [smem:[%s0]]
  %s2 = scalar_lea.smem %s0, 1
  %s3 = sld [smem:[%s2]]
  %s4 = scalar_lea.smem %s0, 2
  %s5 = sld [smem:[%s4]]
  %s6 = scalar_lea.smem %s0, 3
  %s7 = sld [smem:[%s6]]
  %s8 = scalar_lea.smem %s0, 4
  %s9 = sld [smem:[%s8]]
  %s10 = scalar_lea.smem %s0, 5
  %s11 = sld [smem:[%s10]]
  %s12 = scalar_lea.smem %s0, 6
  %s13 = sld [smem:[%s12]]
  %s14 = scalar_lea.smem %s0, 7
  %s15 = sld [smem:[%s14]]
  %s16 = scalar_lea.smem %s0, 8
  %s17 = sld [smem:[%s16]]
  %s18 = scalar_lea.smem %s0, 9
  %s19 = sld [smem:[%s18]]
  %s20 = scalar_lea.smem %s0, 10
  %s21 = sld [smem:[%s20]]
  %s22 = scalar_lea.smem %s0, 11
  %s23 = sld [smem:[%s22]]
  %s24 = scalar_lea.smem %s0, 12
  %s25 = sld [smem:[%s24]]
  %s26 = scalar_lea.smem %s0, 13
  %s27 = sld [smem:[%s26]]
  %s28 = scalar_lea.smem %s0, 14
  %s29 = sld [smem:[%s28]]
  %s30 = scalar_lea.smem %s0, 15
  %s31 = sld [smem:[%s30]]
  %s32 = scalar_lea.smem %s0, 16
  %s33 = sld [smem:[%s32]]
  %s34 = scalar_lea.smem %s0, 17
  %s35 = sld [smem:[%s34]]
  %s36 = scalar_lea.smem %s0, 18
  %s37 = sld [smem:[%s36]]
  %s38 = scalar_lea.smem %s0, 19
  %s39 = sld [smem:[%s38]]
  %s40 = scalar_lea.smem %s0, 20
  %s41 = sld [smem:[%s40]]
  %s42 = scalar_lea.smem %s0, 21
  %s43 = sld [smem:[%s42]]
  %s44 = scalar_lea.smem %s0, 22
  %s45 = sld [smem:[%s44]]
  %s46 = scalar_lea.smem %s0, 23
  %s47 = sld [smem:[%s46]]
  %s48 = scalar_lea.smem %s0, 24
  %s49 = sld [smem:[%s48]]
  %s50 = scalar_lea.smem %s0, 25
  %s51 = sld [smem:[%s50]]
  %s52 = scalar_lea.smem %s0, 26
  %s53 = sld [smem:[%s52]]
  %s54 = scalar_lea.smem %s0, 27
  %s55 = sld [smem:[%s54]]
  %s56 = scalar_lea.smem %s0, 28
  %s57 = sld [smem:[%s56]]
  %s58 = scalar_lea.smem %s0, 29
  %s59 = sld [smem:[%s58]]
  %s60 = scalar_lea.smem %s0, 30
  %s61 = sld [smem:[%s60]]
  %s62 = scalar_lea.smem %s0, 31
  %s63 = sld [smem:[%s62]]
  %s64 = scalar_lea.smem %s0, 32
  %s65 = sld [smem:[%s64]]
  %s66 = scalar_lea.smem %s0, 33
  %s67 = sld [smem:[%s66]]
  %s68 = scalar_lea.smem %s0, 34
  %s69 = sld [smem:[%s68]]
  %70 = xla_tuple %s63, %s65, %s67, %s69
  %s71 = sld [smem:[#allocation0]]
  $region170: #{tpu_custom_call.1} parent=0
    _
  %s73 = ssub.s32 1, %s71
  %s74 = scalar_select 0, %s73, %s71
  %v75 = vstv %s19
  %76 = vst [vmem:[#allocation2] sm:$0x1] %v75
  $region1: #{tpu_custom_call.1} parent=0
    #allocation3 [shape = 'u8[262144]{0}', space=vmem, size = 0x40000, scoped, tag = 'input window, operand 4, single buffered']
    #allocation4 [shape = 's32[1]{0}', space=sflag, size = 0x4, scoped, tag = 'scoped memory for tpu_custom_call.1']
    #allocation5 [shape = 's32[1]{0}', space=sflag, size = 0x4, scoped, tag = 'scoped memory for tpu_custom_call.1']
    #allocation6 [shape = 'u8[524288]{0}', space=vmem, size = 0x80000, scoped, tag = 'input window, operand 25, single buffered']
    #allocation7 [shape = 's32[1]{0}', space=sflag, size = 0x4, scoped, tag = 'scoped memory for tpu_custom_call.1']
    #allocation8 [shape = 'u8[131072]{0}', space=vmem, size = 0x20000, scoped, tag = 'input window, operand 27, single buffered']
    #allocation9 [shape = 'u8[1024]{0}', space=vmem, size = 0x400, scoped, tag = 'output window, operand 0, single buffered']
    #allocation10 [shape = 'u8[512]{0}', space=vmem, size = 0x400, scoped, tag = 'output window, operand 1, single buffered']
    #allocation11 [shape = 's32[1]{0}', space=sflag, size = 0x4, scoped, tag = 'scoped memory for tpu_custom_call.1']
    #allocation12 [shape = 'u8[512]{0}', space=vmem, size = 0x400, scoped, tag = 'output window, operand 2, single buffered']
    #allocation13 [shape = 'u8[512]{0}', space=vmem, size = 0x400, scoped, tag = 'output window, operand 3, single buffered']
    #allocation14 [shape = 's32[1]{0}', space=sflag, size = 0x4, scoped, tag = 'scoped memory for tpu_custom_call.1']
    %77 = vsyncpa [#allocation4], 0
    %78 = vsyncpa [#allocation7], 0
    %79 = vsyncpa [#allocation5], 0
    %80 = vsyncpa [#allocation11], 0
    %81 = vsyncpa [#allocation14], 0
    // Predicated region
    $region2: #{tpu_custom_call.1} parent=1 // pred_check
      _
    $region3: #{tpu_custom_call.1} parent=1 // pred_check_branch
      %83 = sbr.rel (0) target = $region5
    $region4: #{tpu_custom_call.1} parent=1 // pred_region
      _
    $region5: #{tpu_custom_call.1} parent=1 // pred_fallthru
      _
    // Predicated region
    $region6: #{tpu_custom_call.1} parent=1 // pred_check
      _
    $region7: #{tpu_custom_call.1} parent=1 // pred_check_branch
      %85 = sbr.rel (0) target = $region9
    $region8: #{tpu_custom_call.1} parent=1 // pred_region
      _
    $region9: #{tpu_custom_call.1} parent=1 // pred_fallthru
      _
    // Predicated region
    $region10: #{tpu_custom_call.1} parent=1 // pred_check
      _
    $region11: #{tpu_custom_call.1} parent=1 // pred_check_branch
      %87 = sbr.rel (0) target = $region13
    $region12: #{tpu_custom_call.1} parent=1 // pred_region
      _
    $region13: #{tpu_custom_call.1} parent=1 // pred_fallthru
      _
    // Predicated region
    $region14: #{tpu_custom_call.1} parent=1 // pred_check
      _
    $region15: #{tpu_custom_call.1} parent=1 // pred_check_branch
      %89 = sbr.rel (0) target = $region17
    $region16: #{tpu_custom_call.1} parent=1 // pred_region
      _
    $region17: #{tpu_custom_call.1} parent=1 // pred_fallthru
      _
    // Predicated region
    $region18: #{tpu_custom_call.1} parent=1 // pred_check
      _
    $region19: #{tpu_custom_call.1} parent=1 // pred_check_branch
      %91 = sbr.rel (0) target = $region21
    $region20: #{tpu_custom_call.1} parent=1 // pred_region
      %93 = vsyncadd [#allocation4], 0
      %s94 = sshll.u32 %s9, 4
      %s95 = int_to_ptr.hbm [resolvable:$true] %s94
      %s96 = sshll.u32 [#allocation3], 4
      %s97 = int_to_ptr.vmem [resolvable:$true] %s96
      %102 = dma.hbm_to_vmem [thread:$0]  %s95, 8192, %s97, [#allocation4], 128, 128, 8
    $region21: #{tpu_custom_call.1} parent=1 // pred_fallthru
      _
    // Predicated region
    $region22: #{tpu_custom_call.1} parent=1 // pred_check
      _
    $region23: #{tpu_custom_call.1} parent=1 // pred_check_branch
      %104 = sbr.rel (0) target = $region25
    $region24: #{tpu_custom_call.1} parent=1 // pred_region
      _
    $region25: #{tpu_custom_call.1} parent=1 // pred_fallthru
      _
    // Predicated region
    $region26: #{tpu_custom_call.1} parent=1 // pred_check
      _
    $region27: #{tpu_custom_call.1} parent=1 // pred_check_branch
      %106 = sbr.rel (0) target = $region29
    $region28: #{tpu_custom_call.1} parent=1 // pred_region
      _
    $region29: #{tpu_custom_call.1} parent=1 // pred_fallthru
      _
    // Predicated region
    $region30: #{tpu_custom_call.1} parent=1 // pred_check
      _
    $region31: #{tpu_custom_call.1} parent=1 // pred_check_branch
      %108 = sbr.rel (0) target = $region33
    $region32: #{tpu_custom_call.1} parent=1 // pred_region
      _
    $region33: #{tpu_custom_call.1} parent=1 // pred_fallthru
      _
    // Predicated region
    $region34: #{tpu_custom_call.1} parent=1 // pred_check
      _
    $region35: #{tpu_custom_call.1} parent=1 // pred_check_branch
      %110 = sbr.rel (0) target = $region37
    $region36: #{tpu_custom_call.1} parent=1 // pred_region
      _
    $region37: #{tpu_custom_call.1} parent=1 // pred_fallthru
      _
    // Predicated region
    $region38: #{tpu_custom_call.1} parent=1 // pred_check
      _
    $region39: #{tpu_custom_call.1} parent=1 // pred_check_branch
      %112 = sbr.rel (0) target = $region41
    $region40: #{tpu_custom_call.1} parent=1 // pred_region
      _
    $region41: #{tpu_custom_call.1} parent=1 // pred_fallthru
      _
    // Predicated region
    $region42: #{tpu_custom_call.1} parent=1 // pred_check
      _
    $region43: #{tpu_custom_call.1} parent=1 // pred_check_branch
      %114 = sbr.rel (0) target = $region45
    $region44: #{tpu_custom_call.1} parent=1 // pred_region
      _
    $region45: #{tpu_custom_call.1} parent=1 // pred_fallthru
      _
    // Predicated region
    $region46: #{tpu_custom_call.1} parent=1 // pred_check
      _
    $region47: #{tpu_custom_call.1} parent=1 // pred_check_branch
      %116 = sbr.rel (0) target = $region49
    $region48: #{tpu_custom_call.1} parent=1 // pred_region
      _
    $region49: #{tpu_custom_call.1} parent=1 // pred_fallthru
      _
    // Predicated region
    $region50: #{tpu_custom_call.1} parent=1 // pred_check
      _
    $region51: #{tpu_custom_call.1} parent=1 // pred_check_branch
      %118 = sbr.rel (0) target = $region53
    $region52: #{tpu_custom_call.1} parent=1 // pred_region
      _
    $region53: #{tpu_custom_call.1} parent=1 // pred_fallthru
      _
    // Predicated region
    $region54: #{tpu_custom_call.1} parent=1 // pred_check
      _
    $region55: #{tpu_custom_call.1} parent=1 // pred_check_branch
      %120 = sbr.rel (0) target = $region57
    $region56: #{tpu_custom_call.1} parent=1 // pred_region
      _
    $region57: #{tpu_custom_call.1} parent=1 // pred_fallthru
      _
    // Predicated region
    $region58: #{tpu_custom_call.1} parent=1 // pred_check
      _
    $region59: #{tpu_custom_call.1} parent=1 // pred_check_branch
      %122 = sbr.rel (0) target = $region61
    $region60: #{tpu_custom_call.1} parent=1 // pred_region
      _
    $region61: #{tpu_custom_call.1} parent=1 // pred_fallthru
      _
    // Predicated region
    $region62: #{tpu_custom_call.1} parent=1 // pred_check
      _
    $region63: #{tpu_custom_call.1} parent=1 // pred_check_branch
      %124 = sbr.rel (0) target = $region65
    $region64: #{tpu_custom_call.1} parent=1 // pred_region
      _
    $region65: #{tpu_custom_call.1} parent=1 // pred_fallthru
      _
    // Predicated region
    $region66: #{tpu_custom_call.1} parent=1 // pred_check
      _
    $region67: #{tpu_custom_call.1} parent=1 // pred_check_branch
      %126 = sbr.rel (0) target = $region69
    $region68: #{tpu_custom_call.1} parent=1 // pred_region
      _
    $region69: #{tpu_custom_call.1} parent=1 // pred_fallthru
      _
    // Predicated region
    $region70: #{tpu_custom_call.1} parent=1 // pred_check
      _
    $region71: #{tpu_custom_call.1} parent=1 // pred_check_branch
      %128 = sbr.rel (0) target = $region73
    $region72: #{tpu_custom_call.1} parent=1 // pred_region
      _
    $region73: #{tpu_custom_call.1} parent=1 // pred_fallthru
      _
    // Predicated region
    $region74: #{tpu_custom_call.1} parent=1 // pred_check
      _
    $region75: #{tpu_custom_call.1} parent=1 // pred_check_branch
      %130 = sbr.rel (0) target = $region77
    $region76: #{tpu_custom_call.1} parent=1 // pred_region
      _
    $region77: #{tpu_custom_call.1} parent=1 // pred_fallthru
      _
    // Predicated region
    $region78: #{tpu_custom_call.1} parent=1 // pred_check
      _
    $region79: #{tpu_custom_call.1} parent=1 // pred_check_branch
      %132 = sbr.rel (0) target = $region81
    $region80: #{tpu_custom_call.1} parent=1 // pred_region
      _
    $region81: #{tpu_custom_call.1} parent=1 // pred_fallthru
      _
    // Predicated region
    $region82: #{tpu_custom_call.1} parent=1 // pred_check
      _
    $region83: #{tpu_custom_call.1} parent=1 // pred_check_branch
      %134 = sbr.rel (0) target = $region85
    $region84: #{tpu_custom_call.1} parent=1 // pred_region
      _
    $region85: #{tpu_custom_call.1} parent=1 // pred_fallthru
      _
    // Predicated region
    $region86: #{tpu_custom_call.1} parent=1 // pred_check
      _
    $region87: #{tpu_custom_call.1} parent=1 // pred_check_branch
      %136 = sbr.rel (0) target = $region89
    $region88: #{tpu_custom_call.1} parent=1 // pred_region
      _
    $region89: #{tpu_custom_call.1} parent=1 // pred_fallthru
      _
    // Predicated region
    $region90: #{tpu_custom_call.1} parent=1 // pred_check
      _
    $region91: #{tpu_custom_call.1} parent=1 // pred_check_branch
      %138 = sbr.rel (0) target = $region93
    $region92: #{tpu_custom_call.1} parent=1 // pred_region
      _
    $region93: #{tpu_custom_call.1} parent=1 // pred_fallthru
      _
    // Predicated region
    $region94: #{tpu_custom_call.1} parent=1 // pred_check
      _
    $region95: #{tpu_custom_call.1} parent=1 // pred_check_branch
      %140 = sbr.rel (0) target = $region97
    $region96: #{tpu_custom_call.1} parent=1 // pred_region
      _
    $region97: #{tpu_custom_call.1} parent=1 // pred_fallthru
      _
    // Predicated region
    $region98: #{tpu_custom_call.1} parent=1 // pred_check
      _
    $region99: #{tpu_custom_call.1} parent=1 // pred_check_branch
      %142 = sbr.rel (0) target = $region101
    $region100: #{tpu_custom_call.1} parent=1 // pred_region
      _
    $region101: #{tpu_custom_call.1} parent=1 // pred_fallthru
      _
    // Predicated region
    $region102: #{tpu_custom_call.1} parent=1 // pred_check
      _
    $region103: #{tpu_custom_call.1} parent=1 // pred_check_branch
      %144 = sbr.rel (0) target = $region105
    $region104: #{tpu_custom_call.1} parent=1 // pred_region
      %146 = vsyncadd [#allocation7], 0
      %s147 = sshll.u32 %s51, 4
      %s148 = int_to_ptr.hbm [resolvable:$true] %s147
      %s149 = sshll.u32 [#allocation6], 4
      %s150 = int_to_ptr.vmem [resolvable:$true] %s149
      %155 = dma.hbm_to_vmem [thread:$0]  %s148, 16384, %s150, [#allocation7], 4096, 4096, 256
    $region105: #{tpu_custom_call.1} parent=1 // pred_fallthru
      _
    // Predicated region
    $region106: #{tpu_custom_call.1} parent=1 // pred_check
      _
    $region107: #{tpu_custom_call.1} parent=1 // pred_check_branch
      %157 = sbr.rel (0) target = $region109
    $region108: #{tpu_custom_call.1} parent=1 // pred_region
      _
    $region109: #{tpu_custom_call.1} parent=1 // pred_fallthru
      _
    // Predicated region
    $region110: #{tpu_custom_call.1} parent=1 // pred_check
      _
    $region111: #{tpu_custom_call.1} parent=1 // pred_check_branch
      %159 = sbr.rel (0) target = $region113
    $region112: #{tpu_custom_call.1} parent=1 // pred_region
      %161 = vsyncadd [#allocation7], 0
      %s162 = sshll.u32 %s55, 4
      %s163 = int_to_ptr.hbm [resolvable:$true] %s162
      %s164 = sshll.u32 [#allocation8], 4
      %s165 = int_to_ptr.vmem [resolvable:$true] %s164
      %170 = dma.hbm_to_vmem [thread:$0]  %s163, 4096, %s165, [#allocation7], 128, 128, 8
    $region113: #{tpu_custom_call.1} parent=1 // pred_fallthru
      _
    // Predicated region
    $region114: #{tpu_custom_call.1} parent=1 // pred_check
      _
    $region115: #{tpu_custom_call.1} parent=1 // pred_check_branch
      %172 = sbr.rel (0) target = $region117
    $region116: #{tpu_custom_call.1} parent=1 // pred_region
      _
    $region117: #{tpu_custom_call.1} parent=1 // pred_fallthru
      _
    // Predicated region
    $region118: #{tpu_custom_call.1} parent=1 // pred_check
      _
    $region119: #{tpu_custom_call.1} parent=1 // pred_check_branch
      %174 = sbr.rel (0) target = $region121
    $region120: #{tpu_custom_call.1} parent=1 // pred_region
      _
    $region121: #{tpu_custom_call.1} parent=1 // pred_fallthru
      _
    // Predicated region
    $region122: #{tpu_custom_call.1} parent=1 // pred_check
      _
    $region123: #{tpu_custom_call.1} parent=1 // pred_check_branch
      %176 = sbr.rel (0) target = $region125
    $region124: #{tpu_custom_call.1} parent=1 // pred_region
      _
    $region125: #{tpu_custom_call.1} parent=1 // pred_fallthru
      _
    // Predicated region
    $region126: #{tpu_custom_call.1} parent=1 // pred_check
      _
    $region127: #{tpu_custom_call.1} parent=1 // pred_check_branch
      %178 = sbr.rel (0) target = $region129
    $region128: #{tpu_custom_call.1} parent=1 // pred_region
      %180 = dma.done [#allocation4], 8192
    $region129: #{tpu_custom_call.1} parent=1 // pred_fallthru
      _
    // Predicated region
    $region130: #{tpu_custom_call.1} parent=1 // pred_check
      _
    $region131: #{tpu_custom_call.1} parent=1 // pred_check_branch
      %182 = sbr.rel (0) target = $region133
    $region132: #{tpu_custom_call.1} parent=1 // pred_region
      %184 = dma.done [#allocation7], 16384
    $region133: #{tpu_custom_call.1} parent=1 // pred_fallthru
      _
    // Predicated region
    $region134: #{tpu_custom_call.1} parent=1 // pred_check
      _
    $region135: #{tpu_custom_call.1} parent=1 // pred_check_branch
      %186 = sbr.rel (0) target = $region137
    $region136: #{tpu_custom_call.1} parent=1 // pred_region
      %188 = dma.done [#allocation7], 4096
    $region137: #{tpu_custom_call.1} parent=1 // pred_fallthru
      _
    %v190 = vld [vmem:[%s1] sm:$0xff]
    %v191 = vld [vmem:[%s1 + $0x8] sm:$0xff]
    %v192 = vld [vmem:[%s1 + $0x10] sm:$0xff]
    %v193 = vld [vmem:[%s1 + $0x18] sm:$0xff]
    %v194 = vpack.c.bf16 %v190, %v190
    %v195 = vpack.c.bf16 %v191, %v191
    %v196 = vpack.c.bf16 %v192, %v192
    %v197 = vpack.c.bf16 %v193, %v193
    %v198 = vld [vmem:[%s5] sm:$0xff]
    %v199 = vld [vmem:[%s5 + $0x8] sm:$0xff]
    %v200 = vld [vmem:[%s5 + $0x10] sm:$0xff]
    %v201 = vld [vmem:[%s5 + $0x18] sm:$0xff]
    %v202 = vld [vmem:[%s5 + $0x20] sm:$0xff]
    %v203 = vld [vmem:[%s5 + $0x28] sm:$0xff]
    %v204 = vld [vmem:[%s5 + $0x30] sm:$0xff]
    %v205 = vld [vmem:[%s5 + $0x38] sm:$0xff]
    %v206 = vld [vmem:[%s5 + $0x40] sm:$0xff]
    %v207 = vld [vmem:[%s5 + $0x48] sm:$0xff]
    %v208 = vld [vmem:[%s5 + $0x50] sm:$0xff]
    %v209 = vld [vmem:[%s5 + $0x58] sm:$0xff]
    %v210 = vld [vmem:[%s5 + $0x60] sm:$0xff]
    %v211 = vld [vmem:[%s5 + $0x68] sm:$0xff]
    %v212 = vld [vmem:[%s5 + $0x70] sm:$0xff]
    %v213 = vld [vmem:[%s5 + $0x78] sm:$0xff]
    %v214 = vld [vmem:[%s5 + $0x80] sm:$0xff]
    %v215 = vld [vmem:[%s5 + $0x88] sm:$0xff]
    %v216 = vld [vmem:[%s5 + $0x90] sm:$0xff]
    %v217 = vld [vmem:[%s5 + $0x98] sm:$0xff]
    %v218 = vld [vmem:[%s5 + $0xa0] sm:$0xff]
    %v219 = vld [vmem:[%s5 + $0xa8] sm:$0xff]
    %v220 = vld [vmem:[%s5 + $0xb0] sm:$0xff]
    %v221 = vld [vmem:[%s5 + $0xb8] sm:$0xff]
    %v222 = vld [vmem:[%s5 + $0xc0] sm:$0xff]
    %v223 = vld [vmem:[%s5 + $0xc8] sm:$0xff]
    %v224 = vld [vmem:[%s5 + $0xd0] sm:$0xff]
    %v225 = vld [vmem:[%s5 + $0xd8] sm:$0xff]
    %v226 = vld [vmem:[%s5 + $0xe0] sm:$0xff]
    %v227 = vld [vmem:[%s5 + $0xe8] sm:$0xff]
    %v228 = vld [vmem:[%s5 + $0xf0] sm:$0xff]
    %v229 = vld [vmem:[%s5 + $0xf8] sm:$0xff]
    %v230 = vld [vmem:[%s5 + $0x100] sm:$0xff]
    %v231 = vld [vmem:[%s5 + $0x108] sm:$0xff]
    %v232 = vld [vmem:[%s5 + $0x110] sm:$0xff]
    %v233 = vld [vmem:[%s5 + $0x118] sm:$0xff]
    %v234 = vld [vmem:[%s5 + $0x120] sm:$0xff]
    %v235 = vld [vmem:[%s5 + $0x128] sm:$0xff]
    %v236 = vld [vmem:[%s5 + $0x130] sm:$0xff]
    %v237 = vld [vmem:[%s5 + $0x138] sm:$0xff]
    %v238 = vld [vmem:[%s5 + $0x140] sm:$0xff]
    %v239 = vld [vmem:[%s5 + $0x148] sm:$0xff]
    %v240 = vld [vmem:[%s5 + $0x150] sm:$0xff]
    %v241 = vld [vmem:[%s5 + $0x158] sm:$0xff]
    %v242 = vld [vmem:[%s5 + $0x160] sm:$0xff]
    %v243 = vld [vmem:[%s5 + $0x168] sm:$0xff]
    %v244 = vld [vmem:[%s5 + $0x170] sm:$0xff]
    %v245 = vld [vmem:[%s5 + $0x178] sm:$0xff]
    %v246 = vld [vmem:[%s5 + $0x180] sm:$0xff]
    %v247 = vld [vmem:[%s5 + $0x188] sm:$0xff]
    %v248 = vld [vmem:[%s5 + $0x190] sm:$0xff]
    %v249 = vld [vmem:[%s5 + $0x198] sm:$0xff]
    %v250 = vld [vmem:[%s5 + $0x1a0] sm:$0xff]
    %v251 = vld [vmem:[%s5 + $0x1a8] sm:$0xff]
    %v252 = vld [vmem:[%s5 + $0x1b0] sm:$0xff]
    %v253 = vld [vmem:[%s5 + $0x1b8] sm:$0xff]
    %v254 = vld [vmem:[%s5 + $0x1c0] sm:$0xff]
    %v255 = vld [vmem:[%s5 + $0x1c8] sm:$0xff]
    %v256 = vld [vmem:[%s5 + $0x1d0] sm:$0xff]
    %v257 = vld [vmem:[%s5 + $0x1d8] sm:$0xff]
    %v258 = vld [vmem:[%s5 + $0x1e0] sm:$0xff]
    %v259 = vld [vmem:[%s5 + $0x1e8] sm:$0xff]
    %v260 = vld [vmem:[%s5 + $0x1f0] sm:$0xff]
    %v261 = vld [vmem:[%s5 + $0x1f8] sm:$0xff]
    %v262 = vld [vmem:[%s7] sm:$0x3]
    %v264 = vperm.slane %v262, 0
    %v265 = vperm.slane %v262, 1
    %v332 = vunpack.c.l.b16 %v198
    %v333 = vunpack.c.h.b16 %v198
    %v334 = vunpack.c.l.b16 %v199
    %v335 = vunpack.c.h.b16 %v199
    %v336 = vunpack.c.l.b16 %v200
    %v337 = vunpack.c.h.b16 %v200
    %v338 = vunpack.c.l.b16 %v201
    %v339 = vunpack.c.h.b16 %v201
    %v340 = vunpack.c.l.b16 %v202
    %v341 = vunpack.c.h.b16 %v202
    %v342 = vunpack.c.l.b16 %v203
    %v343 = vunpack.c.h.b16 %v203
    %v344 = vunpack.c.l.b16 %v204
    %v345 = vunpack.c.h.b16 %v204
    %v346 = vunpack.c.l.b16 %v205
    %v347 = vunpack.c.h.b16 %v205
    %v348 = vunpack.c.l.b16 %v206
    %v349 = vunpack.c.h.b16 %v206
    %v350 = vunpack.c.l.b16 %v207
    %v351 = vunpack.c.h.b16 %v207
    %v352 = vunpack.c.l.b16 %v208
    %v353 = vunpack.c.h.b16 %v208
    %v354 = vunpack.c.l.b16 %v209
    %v355 = vunpack.c.h.b16 %v209
    %v356 = vunpack.c.l.b16 %v210
    %v357 = vunpack.c.h.b16 %v210
    %v358 = vunpack.c.l.b16 %v211
    %v359 = vunpack.c.h.b16 %v211
    %v360 = vunpack.c.l.b16 %v212
    %v361 = vunpack.c.h.b16 %v212
    %v362 = vunpack.c.l.b16 %v213
    %v363 = vunpack.c.h.b16 %v213
    %v364 = vunpack.c.l.b16 %v214
    %v365 = vunpack.c.h.b16 %v214
    %v366 = vunpack.c.l.b16 %v215
    %v367 = vunpack.c.h.b16 %v215
    %v368 = vunpack.c.l.b16 %v216
    %v369 = vunpack.c.h.b16 %v216
    %v370 = vunpack.c.l.b16 %v217
    %v371 = vunpack.c.h.b16 %v217
    %v372 = vunpack.c.l.b16 %v218
    %v373 = vunpack.c.h.b16 %v218
    %v374 = vunpack.c.l.b16 %v219
    %v375 = vunpack.c.h.b16 %v219
    %v376 = vunpack.c.l.b16 %v220
    %v377 = vunpack.c.h.b16 %v220
    %v378 = vunpack.c.l.b16 %v221
    %v379 = vunpack.c.h.b16 %v221
    %v380 = vunpack.c.l.b16 %v222
    %v381 = vunpack.c.h.b16 %v222
    %v382 = vunpack.c.l.b16 %v223
    %v383 = vunpack.c.h.b16 %v223
    %v384 = vunpack.c.l.b16 %v224
    %v385 = vunpack.c.h.b16 %v224
    %v386 = vunpack.c.l.b16 %v225
    %v387 = vunpack.c.h.b16 %v225
    %v388 = vunpack.c.l.b16 %v226
    %v389 = vunpack.c.h.b16 %v226
    %v390 = vunpack.c.l.b16 %v227
    %v391 = vunpack.c.h.b16 %v227
    %v392 = vunpack.c.l.b16 %v228
    %v393 = vunpack.c.h.b16 %v228
    %v394 = vunpack.c.l.b16 %v229
    %v395 = vunpack.c.h.b16 %v229
    %v396 = vunpack.c.l.b16 %v230
    %v397 = vunpack.c.h.b16 %v230
    %v398 = vunpack.c.l.b16 %v231
    %v399 = vunpack.c.h.b16 %v231
    %v400 = vunpack.c.l.b16 %v232
    %v401 = vunpack.c.h.b16 %v232
    %v402 = vunpack.c.l.b16 %v233
    %v403 = vunpack.c.h.b16 %v233
    %v404 = vunpack.c.l.b16 %v234
    %v405 = vunpack.c.h.b16 %v234
    %v406 = vunpack.c.l.b16 %v235
    %v407 = vunpack.c.h.b16 %v235
    %v408 = vunpack.c.l.b16 %v236
    %v409 = vunpack.c.h.b16 %v236
    %v410 = vunpack.c.l.b16 %v237
    %v411 = vunpack.c.h.b16 %v237
    %v412 = vunpack.c.l.b16 %v238
    %v413 = vunpack.c.h.b16 %v238
    %v414 = vunpack.c.l.b16 %v239
    %v415 = vunpack.c.h.b16 %v239
    %v416 = vunpack.c.l.b16 %v240
    %v417 = vunpack.c.h.b16 %v240
    %v418 = vunpack.c.l.b16 %v241
    %v419 = vunpack.c.h.b16 %v241
    %v420 = vunpack.c.l.b16 %v242
    %v421 = vunpack.c.h.b16 %v242
    %v422 = vunpack.c.l.b16 %v243
    %v423 = vunpack.c.h.b16 %v243
    %v424 = vunpack.c.l.b16 %v244
    %v425 = vunpack.c.h.b16 %v244
    %v426 = vunpack.c.l.b16 %v245
    %v427 = vunpack.c.h.b16 %v245
    %v428 = vunpack.c.l.b16 %v246
    %v429 = vunpack.c.h.b16 %v246
    %v430 = vunpack.c.l.b16 %v247
    %v431 = vunpack.c.h.b16 %v247
    %v432 = vunpack.c.l.b16 %v248
    %v433 = vunpack.c.h.b16 %v248
    %v434 = vunpack.c.l.b16 %v249
    %v435 = vunpack.c.h.b16 %v249
    %v436 = vunpack.c.l.b16 %v250
    %v437 = vunpack.c.h.b16 %v250
    %v438 = vunpack.c.l.b16 %v251
    %v439 = vunpack.c.h.b16 %v251
    %v440 = vunpack.c.l.b16 %v252
    %v441 = vunpack.c.h.b16 %v252
    %v442 = vunpack.c.l.b16 %v253
    %v443 = vunpack.c.h.b16 %v253
    %v444 = vunpack.c.l.b16 %v254
    %v445 = vunpack.c.h.b16 %v254
    %v446 = vunpack.c.l.b16 %v255
    %v447 = vunpack.c.h.b16 %v255
    %v448 = vunpack.c.l.b16 %v256
    %v449 = vunpack.c.h.b16 %v256
    %v450 = vunpack.c.l.b16 %v257
    %v451 = vunpack.c.h.b16 %v257
    %v452 = vunpack.c.l.b16 %v258
    %v453 = vunpack.c.h.b16 %v258
    %v454 = vunpack.c.l.b16 %v259
    %v455 = vunpack.c.h.b16 %v259
    %v456 = vunpack.c.l.b16 %v260
    %v457 = vunpack.c.h.b16 %v260
    %v458 = vunpack.c.l.b16 %v261
    %v459 = vunpack.c.h.b16 %v261
    %v460 = vpack.c.b16 %v334, %v332
    %v461 = vpack.c.b16 %v335, %v333
    %v462 = vpack.c.b16 %v338, %v336
    %v463 = vpack.c.b16 %v339, %v337
    %v464 = vpack.c.b16 %v342, %v340
    %v465 = vpack.c.b16 %v343, %v341
    %v466 = vpack.c.b16 %v346, %v344
    %v467 = vpack.c.b16 %v347, %v345
    %v468 = vpack.c.b16 %v350, %v348
    %v469 = vpack.c.b16 %v351, %v349
    %v470 = vpack.c.b16 %v354, %v352
    %v471 = vpack.c.b16 %v355, %v353
    %v472 = vpack.c.b16 %v358, %v356
    %v473 = vpack.c.b16 %v359, %v357
    %v474 = vpack.c.b16 %v362, %v360
    %v475 = vpack.c.b16 %v363, %v361
    %v476 = vpack.c.b16 %v366, %v364
    %v477 = vpack.c.b16 %v367, %v365
    %v478 = vpack.c.b16 %v370, %v368
    %v479 = vpack.c.b16 %v371, %v369
    %v480 = vpack.c.b16 %v374, %v372
    %v481 = vpack.c.b16 %v375, %v373
    %v482 = vpack.c.b16 %v378, %v376
    %v483 = vpack.c.b16 %v379, %v377
    %v484 = vpack.c.b16 %v382, %v380
    %v485 = vpack.c.b16 %v383, %v381
    %v486 = vpack.c.b16 %v386, %v384
    %v487 = vpack.c.b16 %v387, %v385
    %v488 = vpack.c.b16 %v390, %v388
    %v489 = vpack.c.b16 %v391, %v389
    %v490 = vpack.c.b16 %v394, %v392
    %v491 = vpack.c.b16 %v395, %v393
    %v492 = vpack.c.b16 %v398, %v396
    %v493 = vpack.c.b16 %v399, %v397
    %v494 = vpack.c.b16 %v402, %v400
    %v495 = vpack.c.b16 %v403, %v401
    %v496 = vpack.c.b16 %v406, %v404
    %v497 = vpack.c.b16 %v407, %v405
    %v498 = vpack.c.b16 %v410, %v408
    %v499 = vpack.c.b16 %v411, %v409
    %v500 = vpack.c.b16 %v414, %v412
    %v501 = vpack.c.b16 %v415, %v413
    %v502 = vpack.c.b16 %v418, %v416
    %v503 = vpack.c.b16 %v419, %v417
    %v504 = vpack.c.b16 %v422, %v420
    %v505 = vpack.c.b16 %v423, %v421
    %v506 = vpack.c.b16 %v426, %v424
    %v507 = vpack.c.b16 %v427, %v425
    %v508 = vpack.c.b16 %v430, %v428
    %v509 = vpack.c.b16 %v431, %v429
    %v510 = vpack.c.b16 %v434, %v432
    %v511 = vpack.c.b16 %v435, %v433
    %v512 = vpack.c.b16 %v438, %v436
    %v513 = vpack.c.b16 %v439, %v437
    %v514 = vpack.c.b16 %v442, %v440
    %v515 = vpack.c.b16 %v443, %v441
    %v516 = vpack.c.b16 %v446, %v444
    %v517 = vpack.c.b16 %v447, %v445
    %v518 = vpack.c.b16 %v450, %v448
    %v519 = vpack.c.b16 %v451, %v449
    %v520 = vpack.c.b16 %v454, %v452
    %v521 = vpack.c.b16 %v455, %v453
    %v522 = vpack.c.b16 %v458, %v456
    %v523 = vpack.c.b16 %v459, %v457
    %588 = vmatpush.bf16.msra.mxu0 %v474
    %589 = vmatpush.bf16.msra.mxu0 %v472
    %590 = vmatpush.bf16.msra.mxu0 %v470
    %591 = vmatpush.bf16.msra.mxu0 %v468
    %592 = vmatpush.bf16.msra.mxu0 %v466
    %593 = vmatpush.bf16.msra.mxu0 %v464
    %594 = vmatpush.bf16.msra.mxu0 %v462
    %595 = vmatpush.bf16.msra.mxu0 %v460
    %596 = vmatmul.bf16.gmra.mxu0 %v194
    %v597 = vpop.f32.mrf.mxu0
    %v598 = vadd.f32 %v264, %v597
    %v599 = vpop.f32.mrf.mxu0
    %600 = vdwg.mxu0
    %601 = vmatpush.bf16.msra.mxu0 %v490
    %602 = vmatpush.bf16.msra.mxu0 %v488
    %603 = vmatpush.bf16.msra.mxu0 %v486
    %604 = vmatpush.bf16.msra.mxu0 %v484
    %605 = vmatpush.bf16.msra.mxu0 %v482
    %606 = vmatpush.bf16.msra.mxu0 %v480
    %607 = vmatpush.bf16.msra.mxu0 %v478
    %608 = vmatpush.bf16.msra.mxu0 %v476
    %609 = vmatmul.bf16.gmra.mxu0 %v195
    %v610 = vpop.f32.mrf.mxu0
    %v611 = vadd.f32 %v598, %v610
    %v612 = vpop.f32.mrf.mxu0
    %613 = vdwg.mxu0
    %614 = vmatpush.bf16.msra.mxu0 %v506
    %615 = vmatpush.bf16.msra.mxu0 %v504
    %616 = vmatpush.bf16.msra.mxu0 %v502
    %617 = vmatpush.bf16.msra.mxu0 %v500
    %618 = vmatpush.bf16.msra.mxu0 %v498
    %619 = vmatpush.bf16.msra.mxu0 %v496
    %620 = vmatpush.bf16.msra.mxu0 %v494
    %621 = vmatpush.bf16.msra.mxu0 %v492
    %622 = vmatmul.bf16.gmra.mxu0 %v196
    %v623 = vpop.f32.mrf.mxu0
    %v624 = vadd.f32 %v611, %v623
    %v625 = vpop.f32.mrf.mxu0
    %626 = vdwg.mxu0
    %627 = vmatpush.bf16.msra.mxu0 %v522
    %628 = vmatpush.bf16.msra.mxu0 %v520
    %629 = vmatpush.bf16.msra.mxu0 %v518
    %630 = vmatpush.bf16.msra.mxu0 %v516
    %631 = vmatpush.bf16.msra.mxu0 %v514
    %632 = vmatpush.bf16.msra.mxu0 %v512
    %633 = vmatpush.bf16.msra.mxu0 %v510
    %634 = vmatpush.bf16.msra.mxu0 %v508
    %635 = vmatmul.bf16.gmra.mxu0 %v197
    %v636 = vpop.f32.mrf.mxu0
    %v637 = vadd.f32 %v624, %v636
    %v638 = vpop.f32.mrf.mxu0
    %639 = vdwg.mxu0
    %640 = vmatpush.bf16.msra.mxu0 %v475
    %641 = vmatpush.bf16.msra.mxu0 %v473
    %642 = vmatpush.bf16.msra.mxu0 %v471
    %643 = vmatpush.bf16.msra.mxu0 %v469
    %644 = vmatpush.bf16.msra.mxu0 %v467
    %645 = vmatpush.bf16.msra.mxu0 %v465
    %646 = vmatpush.bf16.msra.mxu0 %v463
    %647 = vmatpush.bf16.msra.mxu0 %v461
    %648 = vmatmul.bf16.gmra.mxu0 %v194
    %v649 = vpop.f32.mrf.mxu0
    %v650 = vadd.f32 %v265, %v649
    %v651 = vpop.f32.mrf.mxu0
    %652 = vdwg.mxu0
    %653 = vmatpush.bf16.msra.mxu0 %v491
    %654 = vmatpush.bf16.msra.mxu0 %v489
    %655 = vmatpush.bf16.msra.mxu0 %v487
    %656 = vmatpush.bf16.msra.mxu0 %v485
    %657 = vmatpush.bf16.msra.mxu0 %v483
    %658 = vmatpush.bf16.msra.mxu0 %v481
    %659 = vmatpush.bf16.msra.mxu0 %v479
    %660 = vmatpush.bf16.msra.mxu0 %v477
    %661 = vmatmul.bf16.gmra.mxu0 %v195
    %v662 = vpop.f32.mrf.mxu0
    %v663 = vadd.f32 %v650, %v662
    %v664 = vpop.f32.mrf.mxu0
    %665 = vdwg.mxu0
    %666 = vmatpush.bf16.msra.mxu0 %v507
    %667 = vmatpush.bf16.msra.mxu0 %v505
    %668 = vmatpush.bf16.msra.mxu0 %v503
    %669 = vmatpush.bf16.msra.mxu0 %v501
    %670 = vmatpush.bf16.msra.mxu0 %v499
    %671 = vmatpush.bf16.msra.mxu0 %v497
    %672 = vmatpush.bf16.msra.mxu0 %v495
    %673 = vmatpush.bf16.msra.mxu0 %v493
    %674 = vmatmul.bf16.gmra.mxu0 %v196
    %v675 = vpop.f32.mrf.mxu0
    %v676 = vadd.f32 %v663, %v675
    %v677 = vpop.f32.mrf.mxu0
    %678 = vdwg.mxu0
    %679 = vmatpush.bf16.msra.mxu0 %v523
    %680 = vmatpush.bf16.msra.mxu0 %v521
    %681 = vmatpush.bf16.msra.mxu0 %v519
    %682 = vmatpush.bf16.msra.mxu0 %v517
    %683 = vmatpush.bf16.msra.mxu0 %v515
    %684 = vmatpush.bf16.msra.mxu0 %v513
    %685 = vmatpush.bf16.msra.mxu0 %v511
    %686 = vmatpush.bf16.msra.mxu0 %v509
    %687 = vmatmul.bf16.gmra.mxu0 %v197
    %v688 = vpop.f32.mrf.mxu0
    %v689 = vadd.f32 %v676, %v688
    %v690 = vpop.f32.mrf.mxu0
    %691 = vdwg.mxu0
    %vm692 = vcmp.gt.f32.partialorder %v637, 0.0
    %vm693 = vcmp.gt.f32.partialorder %v689, 0.0
    %v694 = vmin.f32 %v637, 0.0
    %v695 = vmin.f32 %v689, 0.0
    %v696 = vmul.f32 %v694, 1.442695
    %v697 = vpow.pop %v696
    %v698 = vmul.f32 %v695, 1.442695
    %v699 = vpow.pop %v698
    %v700 = vsub.f32 %v697, 1.0
    %v701 = vsub.f32 %v699, 1.0
    %v702 = vsel %vm692, %v637, %v700
    %v703 = vsel %vm693, %v689, %v701
    %v704 = vld [vmem:[%s3] sm:$0xff]
    %v705 = vld [vmem:[%s3 + $0x8] sm:$0xff]
    %v706 = vld [vmem:[%s3 + $0x10] sm:$0xff]
    %v707 = vld [vmem:[%s3 + $0x18] sm:$0xff]
    %v708 = vpack.c.bf16 %v704, %v704
    %v709 = vpack.c.bf16 %v705, %v705
    %v710 = vpack.c.bf16 %v706, %v706
    %v711 = vpack.c.bf16 %v707, %v707
    %v712 = vld [vmem:[#allocation3] sm:$0xff]
    %v713 = vld [vmem:[#allocation3 + $0x8] sm:$0xff]
    %v714 = vld [vmem:[#allocation3 + $0x10] sm:$0xff]
    %v715 = vld [vmem:[#allocation3 + $0x18] sm:$0xff]
    %v716 = vld [vmem:[#allocation3 + $0x20] sm:$0xff]
    %v717 = vld [vmem:[#allocation3 + $0x28] sm:$0xff]
    %v718 = vld [vmem:[#allocation3 + $0x30] sm:$0xff]
    %v719 = vld [vmem:[#allocation3 + $0x38] sm:$0xff]
    %v720 = vld [vmem:[#allocation3 + $0x40] sm:$0xff]
    %v721 = vld [vmem:[#allocation3 + $0x48] sm:$0xff]
    %v722 = vld [vmem:[#allocation3 + $0x50] sm:$0xff]
    %v723 = vld [vmem:[#allocation3 + $0x58] sm:$0xff]
    %v724 = vld [vmem:[#allocation3 + $0x60] sm:$0xff]
    %v725 = vld [vmem:[#allocation3 + $0x68] sm:$0xff]
    %v726 = vld [vmem:[#allocation3 + $0x70] sm:$0xff]
    %v727 = vld [vmem:[#allocation3 + $0x78] sm:$0xff]
    %v728 = vld [vmem:[#allocation3 + $0x80] sm:$0xff]
    %v729 = vld [vmem:[#allocation3 + $0x88] sm:$0xff]
    %v730 = vld [vmem:[#allocation3 + $0x90] sm:$0xff]
    %v731 = vld [vmem:[#allocation3 + $0x98] sm:$0xff]
    %v732 = vld [vmem:[#allocation3 + $0xa0] sm:$0xff]
    %v733 = vld [vmem:[#allocation3 + $0xa8] sm:$0xff]
    %v734 = vld [vmem:[#allocation3 + $0xb0] sm:$0xff]
    %v735 = vld [vmem:[#allocation3 + $0xb8] sm:$0xff]
    %v736 = vld [vmem:[#allocation3 + $0xc0] sm:$0xff]
    %v737 = vld [vmem:[#allocation3 + $0xc8] sm:$0xff]
    %v738 = vld [vmem:[#allocation3 + $0xd0] sm:$0xff]
    %v739 = vld [vmem:[#allocation3 + $0xd8] sm:$0xff]
    %v740 = vld [vmem:[#allocation3 + $0xe0] sm:$0xff]
    %v741 = vld [vmem:[#allocation3 + $0xe8] sm:$0xff]
    %v742 = vld [vmem:[#allocation3 + $0xf0] sm:$0xff]
    %v743 = vld [vmem:[#allocation3 + $0xf8] sm:$0xff]
    %v744 = vld [vmem:[#allocation3 + $0x100] sm:$0xff]
    %v745 = vld [vmem:[#allocation3 + $0x108] sm:$0xff]
    %v746 = vld [vmem:[#allocation3 + $0x110] sm:$0xff]
    %v747 = vld [vmem:[#allocation3 + $0x118] sm:$0xff]
    %v748 = vld [vmem:[#allocation3 + $0x120] sm:$0xff]
    %v749 = vld [vmem:[#allocation3 + $0x128] sm:$0xff]
    %v750 = vld [vmem:[#allocation3 + $0x130] sm:$0xff]
    %v751 = vld [vmem:[#allocation3 + $0x138] sm:$0xff]
    %v752 = vld [vmem:[#allocation3 + $0x140] sm:$0xff]
    %v753 = vld [vmem:[#allocation3 + $0x148] sm:$0xff]
    %v754 = vld [vmem:[#allocation3 + $0x150] sm:$0xff]
    %v755 = vld [vmem:[#allocation3 + $0x158] sm:$0xff]
    %v756 = vld [vmem:[#allocation3 + $0x160] sm:$0xff]
    %v757 = vld [vmem:[#allocation3 + $0x168] sm:$0xff]
    %v758 = vld [vmem:[#allocation3 + $0x170] sm:$0xff]
    %v759 = vld [vmem:[#allocation3 + $0x178] sm:$0xff]
    %v760 = vld [vmem:[#allocation3 + $0x180] sm:$0xff]
    %v761 = vld [vmem:[#allocation3 + $0x188] sm:$0xff]
    %v762 = vld [vmem:[#allocation3 + $0x190] sm:$0xff]
    %v763 = vld [vmem:[#allocation3 + $0x198] sm:$0xff]
    %v764 = vld [vmem:[#allocation3 + $0x1a0] sm:$0xff]
    %v765 = vld [vmem:[#allocation3 + $0x1a8] sm:$0xff]
    %v766 = vld [vmem:[#allocation3 + $0x1b0] sm:$0xff]
    %v767 = vld [vmem:[#allocation3 + $0x1b8] sm:$0xff]
    %v768 = vld [vmem:[#allocation3 + $0x1c0] sm:$0xff]
    %v769 = vld [vmem:[#allocation3 + $0x1c8] sm:$0xff]
    %v770 = vld [vmem:[#allocation3 + $0x1d0] sm:$0xff]
    %v771 = vld [vmem:[#allocation3 + $0x1d8] sm:$0xff]
    %v772 = vld [vmem:[#allocation3 + $0x1e0] sm:$0xff]
    %v773 = vld [vmem:[#allocation3 + $0x1e8] sm:$0xff]
    %v774 = vld [vmem:[#allocation3 + $0x1f0] sm:$0xff]
    %v775 = vld [vmem:[#allocation3 + $0x1f8] sm:$0xff]
    %v776 = vld [vmem:[%s11] sm:$0x3]
    %v778 = vperm.slane %v776, 0
    %v779 = vperm.slane %v776, 1
    %v846 = vunpack.c.l.b16 %v712
    %v847 = vunpack.c.h.b16 %v712
    %v848 = vunpack.c.l.b16 %v713
    %v849 = vunpack.c.h.b16 %v713
    %v850 = vunpack.c.l.b16 %v714
    %v851 = vunpack.c.h.b16 %v714
    %v852 = vunpack.c.l.b16 %v715
    %v853 = vunpack.c.h.b16 %v715
    %v854 = vunpack.c.l.b16 %v716
    %v855 = vunpack.c.h.b16 %v716
    %v856 = vunpack.c.l.b16 %v717
    %v857 = vunpack.c.h.b16 %v717
    %v858 = vunpack.c.l.b16 %v718
    %v859 = vunpack.c.h.b16 %v718
    %v860 = vunpack.c.l.b16 %v719
    %v861 = vunpack.c.h.b16 %v719
    %v862 = vunpack.c.l.b16 %v720
    %v863 = vunpack.c.h.b16 %v720
    %v864 = vunpack.c.l.b16 %v721
    %v865 = vunpack.c.h.b16 %v721
    %v866 = vunpack.c.l.b16 %v722
    %v867 = vunpack.c.h.b16 %v722
    %v868 = vunpack.c.l.b16 %v723
    %v869 = vunpack.c.h.b16 %v723
    %v870 = vunpack.c.l.b16 %v724
    %v871 = vunpack.c.h.b16 %v724
    %v872 = vunpack.c.l.b16 %v725
    %v873 = vunpack.c.h.b16 %v725
    %v874 = vunpack.c.l.b16 %v726
    %v875 = vunpack.c.h.b16 %v726
    %v876 = vunpack.c.l.b16 %v727
    %v877 = vunpack.c.h.b16 %v727
    %v878 = vunpack.c.l.b16 %v728
    %v879 = vunpack.c.h.b16 %v728
    %v880 = vunpack.c.l.b16 %v729
    %v881 = vunpack.c.h.b16 %v729
    %v882 = vunpack.c.l.b16 %v730
    %v883 = vunpack.c.h.b16 %v730
    %v884 = vunpack.c.l.b16 %v731
    %v885 = vunpack.c.h.b16 %v731
    %v886 = vunpack.c.l.b16 %v732
    %v887 = vunpack.c.h.b16 %v732
    %v888 = vunpack.c.l.b16 %v733
    %v889 = vunpack.c.h.b16 %v733
    %v890 = vunpack.c.l.b16 %v734
    %v891 = vunpack.c.h.b16 %v734
    %v892 = vunpack.c.l.b16 %v735
    %v893 = vunpack.c.h.b16 %v735
    %v894 = vunpack.c.l.b16 %v736
    %v895 = vunpack.c.h.b16 %v736
    %v896 = vunpack.c.l.b16 %v737
    %v897 = vunpack.c.h.b16 %v737
    %v898 = vunpack.c.l.b16 %v738
    %v899 = vunpack.c.h.b16 %v738
    %v900 = vunpack.c.l.b16 %v739
    %v901 = vunpack.c.h.b16 %v739
    %v902 = vunpack.c.l.b16 %v740
    %v903 = vunpack.c.h.b16 %v740
    %v904 = vunpack.c.l.b16 %v741
    %v905 = vunpack.c.h.b16 %v741
    %v906 = vunpack.c.l.b16 %v742
    %v907 = vunpack.c.h.b16 %v742
    %v908 = vunpack.c.l.b16 %v743
    %v909 = vunpack.c.h.b16 %v743
    %v910 = vunpack.c.l.b16 %v744
    %v911 = vunpack.c.h.b16 %v744
    %v912 = vunpack.c.l.b16 %v745
    %v913 = vunpack.c.h.b16 %v745
    %v914 = vunpack.c.l.b16 %v746
    %v915 = vunpack.c.h.b16 %v746
    %v916 = vunpack.c.l.b16 %v747
    %v917 = vunpack.c.h.b16 %v747
    %v918 = vunpack.c.l.b16 %v748
    %v919 = vunpack.c.h.b16 %v748
    %v920 = vunpack.c.l.b16 %v749
    %v921 = vunpack.c.h.b16 %v749
    %v922 = vunpack.c.l.b16 %v750
    %v923 = vunpack.c.h.b16 %v750
    %v924 = vunpack.c.l.b16 %v751
    %v925 = vunpack.c.h.b16 %v751
    %v926 = vunpack.c.l.b16 %v752
    %v927 = vunpack.c.h.b16 %v752
    %v928 = vunpack.c.l.b16 %v753
    %v929 = vunpack.c.h.b16 %v753
    %v930 = vunpack.c.l.b16 %v754
    %v931 = vunpack.c.h.b16 %v754
    %v932 = vunpack.c.l.b16 %v755
    %v933 = vunpack.c.h.b16 %v755
    %v934 = vunpack.c.l.b16 %v756
    %v935 = vunpack.c.h.b16 %v756
    %v936 = vunpack.c.l.b16 %v757
    %v937 = vunpack.c.h.b16 %v757
    %v938 = vunpack.c.l.b16 %v758
    %v939 = vunpack.c.h.b16 %v758
    %v940 = vunpack.c.l.b16 %v759
    %v941 = vunpack.c.h.b16 %v759
    %v942 = vunpack.c.l.b16 %v760
    %v943 = vunpack.c.h.b16 %v760
    %v944 = vunpack.c.l.b16 %v761
    %v945 = vunpack.c.h.b16 %v761
    %v946 = vunpack.c.l.b16 %v762
    %v947 = vunpack.c.h.b16 %v762
    %v948 = vunpack.c.l.b16 %v763
    %v949 = vunpack.c.h.b16 %v763
    %v950 = vunpack.c.l.b16 %v764
    %v951 = vunpack.c.h.b16 %v764
    %v952 = vunpack.c.l.b16 %v765
    %v953 = vunpack.c.h.b16 %v765
    %v954 = vunpack.c.l.b16 %v766
    %v955 = vunpack.c.h.b16 %v766
    %v956 = vunpack.c.l.b16 %v767
    %v957 = vunpack.c.h.b16 %v767
    %v958 = vunpack.c.l.b16 %v768
    %v959 = vunpack.c.h.b16 %v768
    %v960 = vunpack.c.l.b16 %v769
    %v961 = vunpack.c.h.b16 %v769
    %v962 = vunpack.c.l.b16 %v770
    %v963 = vunpack.c.h.b16 %v770
    %v964 = vunpack.c.l.b16 %v771
    %v965 = vunpack.c.h.b16 %v771
    %v966 = vunpack.c.l.b16 %v772
    %v967 = vunpack.c.h.b16 %v772
    %v968 = vunpack.c.l.b16 %v773
    %v969 = vunpack.c.h.b16 %v773
    %v970 = vunpack.c.l.b16 %v774
    %v971 = vunpack.c.h.b16 %v774
    %v972 = vunpack.c.l.b16 %v775
    %v973 = vunpack.c.h.b16 %v775
    %v974 = vpack.c.b16 %v848, %v846
    %v975 = vpack.c.b16 %v849, %v847
    %v976 = vpack.c.b16 %v852, %v850
    %v977 = vpack.c.b16 %v853, %v851
    %v978 = vpack.c.b16 %v856, %v854
    %v979 = vpack.c.b16 %v857, %v855
    %v980 = vpack.c.b16 %v860, %v858
    %v981 = vpack.c.b16 %v861, %v859
    %v982 = vpack.c.b16 %v864, %v862
    %v983 = vpack.c.b16 %v865, %v863
    %v984 = vpack.c.b16 %v868, %v866
    %v985 = vpack.c.b16 %v869, %v867
    %v986 = vpack.c.b16 %v872, %v870
    %v987 = vpack.c.b16 %v873, %v871
    %v988 = vpack.c.b16 %v876, %v874
    %v989 = vpack.c.b16 %v877, %v875
    %v990 = vpack.c.b16 %v880, %v878
    %v991 = vpack.c.b16 %v881, %v879
    %v992 = vpack.c.b16 %v884, %v882
    %v993 = vpack.c.b16 %v885, %v883
    %v994 = vpack.c.b16 %v888, %v886
    %v995 = vpack.c.b16 %v889, %v887
    %v996 = vpack.c.b16 %v892, %v890
    %v997 = vpack.c.b16 %v893, %v891
    %v998 = vpack.c.b16 %v896, %v894
    %v999 = vpack.c.b16 %v897, %v895
    %v1000 = vpack.c.b16 %v900, %v898
    %v1001 = vpack.c.b16 %v901, %v899
    %v1002 = vpack.c.b16 %v904, %v902
    %v1003 = vpack.c.b16 %v905, %v903
    %v1004 = vpack.c.b16 %v908, %v906
    %v1005 = vpack.c.b16 %v909, %v907
    %v1006 = vpack.c.b16 %v912, %v910
    %v1007 = vpack.c.b16 %v913, %v911
    %v1008 = vpack.c.b16 %v916, %v914
    %v1009 = vpack.c.b16 %v917, %v915
    %v1010 = vpack.c.b16 %v920, %v918
    %v1011 = vpack.c.b16 %v921, %v919
    %v1012 = vpack.c.b16 %v924, %v922
    %v1013 = vpack.c.b16 %v925, %v923
    %v1014 = vpack.c.b16 %v928, %v926
    %v1015 = vpack.c.b16 %v929, %v927
    %v1016 = vpack.c.b16 %v932, %v930
    %v1017 = vpack.c.b16 %v933, %v931
    %v1018 = vpack.c.b16 %v936, %v934
    %v1019 = vpack.c.b16 %v937, %v935
    %v1020 = vpack.c.b16 %v940, %v938
    %v1021 = vpack.c.b16 %v941, %v939
    %v1022 = vpack.c.b16 %v944, %v942
    %v1023 = vpack.c.b16 %v945, %v943
    %v1024 = vpack.c.b16 %v948, %v946
    %v1025 = vpack.c.b16 %v949, %v947
    %v1026 = vpack.c.b16 %v952, %v950
    %v1027 = vpack.c.b16 %v953, %v951
    %v1028 = vpack.c.b16 %v956, %v954
    %v1029 = vpack.c.b16 %v957, %v955
    %v1030 = vpack.c.b16 %v960, %v958
    %v1031 = vpack.c.b16 %v961, %v959
    %v1032 = vpack.c.b16 %v964, %v962
    %v1033 = vpack.c.b16 %v965, %v963
    %v1034 = vpack.c.b16 %v968, %v966
    %v1035 = vpack.c.b16 %v969, %v967
    %v1036 = vpack.c.b16 %v972, %v970
    %v1037 = vpack.c.b16 %v973, %v971
    %1102 = vmatpush.bf16.msra.mxu0 %v988
    %1103 = vmatpush.bf16.msra.mxu0 %v986
    %1104 = vmatpush.bf16.msra.mxu0 %v984
    %1105 = vmatpush.bf16.msra.mxu0 %v982
    %1106 = vmatpush.bf16.msra.mxu0 %v980
    %1107 = vmatpush.bf16.msra.mxu0 %v978
    %1108 = vmatpush.bf16.msra.mxu0 %v976
    %1109 = vmatpush.bf16.msra.mxu0 %v974
    %1110 = vmatmul.bf16.gmra.mxu0 %v708
    %v1111 = vpop.f32.mrf.mxu0
    %v1112 = vadd.f32 %v778, %v1111
    %v1113 = vpop.f32.mrf.mxu0
    %1114 = vdwg.mxu0
    %1115 = vmatpush.bf16.msra.mxu0 %v1004
    %1116 = vmatpush.bf16.msra.mxu0 %v1002
    %1117 = vmatpush.bf16.msra.mxu0 %v1000
    %1118 = vmatpush.bf16.msra.mxu0 %v998
    %1119 = vmatpush.bf16.msra.mxu0 %v996
    %1120 = vmatpush.bf16.msra.mxu0 %v994
    %1121 = vmatpush.bf16.msra.mxu0 %v992
    %1122 = vmatpush.bf16.msra.mxu0 %v990
    %1123 = vmatmul.bf16.gmra.mxu0 %v709
    %v1124 = vpop.f32.mrf.mxu0
    %v1125 = vadd.f32 %v1112, %v1124
    %v1126 = vpop.f32.mrf.mxu0
    %1127 = vdwg.mxu0
    %1128 = vmatpush.bf16.msra.mxu0 %v1020
    %1129 = vmatpush.bf16.msra.mxu0 %v1018
    %1130 = vmatpush.bf16.msra.mxu0 %v1016
    %1131 = vmatpush.bf16.msra.mxu0 %v1014
    %1132 = vmatpush.bf16.msra.mxu0 %v1012
    %1133 = vmatpush.bf16.msra.mxu0 %v1010
    %1134 = vmatpush.bf16.msra.mxu0 %v1008
    %1135 = vmatpush.bf16.msra.mxu0 %v1006
    %1136 = vmatmul.bf16.gmra.mxu0 %v710
    %v1137 = vpop.f32.mrf.mxu0
    %v1138 = vadd.f32 %v1125, %v1137
    %v1139 = vpop.f32.mrf.mxu0
    %1140 = vdwg.mxu0
    %1141 = vmatpush.bf16.msra.mxu0 %v1036
    %1142 = vmatpush.bf16.msra.mxu0 %v1034
    %1143 = vmatpush.bf16.msra.mxu0 %v1032
    %1144 = vmatpush.bf16.msra.mxu0 %v1030
    %1145 = vmatpush.bf16.msra.mxu0 %v1028
    %1146 = vmatpush.bf16.msra.mxu0 %v1026
    %1147 = vmatpush.bf16.msra.mxu0 %v1024
    %1148 = vmatpush.bf16.msra.mxu0 %v1022
    %1149 = vmatmul.bf16.gmra.mxu0 %v711
    %v1150 = vpop.f32.mrf.mxu0
    %v1151 = vadd.f32 %v1138, %v1150
    %v1152 = vpop.f32.mrf.mxu0
    %1153 = vdwg.mxu0
    %1154 = vmatpush.bf16.msra.mxu0 %v989
    %1155 = vmatpush.bf16.msra.mxu0 %v987
    %1156 = vmatpush.bf16.msra.mxu0 %v985
    %1157 = vmatpush.bf16.msra.mxu0 %v983
    %1158 = vmatpush.bf16.msra.mxu0 %v981
    %1159 = vmatpush.bf16.msra.mxu0 %v979
    %1160 = vmatpush.bf16.msra.mxu0 %v977
    %1161 = vmatpush.bf16.msra.mxu0 %v975
    %1162 = vmatmul.bf16.gmra.mxu0 %v708
    %v1163 = vpop.f32.mrf.mxu0
    %v1164 = vadd.f32 %v779, %v1163
    %v1165 = vpop.f32.mrf.mxu0
    %1166 = vdwg.mxu0
    %1167 = vmatpush.bf16.msra.mxu0 %v1005
    %1168 = vmatpush.bf16.msra.mxu0 %v1003
    %1169 = vmatpush.bf16.msra.mxu0 %v1001
    %1170 = vmatpush.bf16.msra.mxu0 %v999
    %1171 = vmatpush.bf16.msra.mxu0 %v997
    %1172 = vmatpush.bf16.msra.mxu0 %v995
    %1173 = vmatpush.bf16.msra.mxu0 %v993
    %1174 = vmatpush.bf16.msra.mxu0 %v991
    %1175 = vmatmul.bf16.gmra.mxu0 %v709
    %v1176 = vpop.f32.mrf.mxu0
    %v1177 = vadd.f32 %v1164, %v1176
    %v1178 = vpop.f32.mrf.mxu0
    %1179 = vdwg.mxu0
    %1180 = vmatpush.bf16.msra.mxu0 %v1021
    %1181 = vmatpush.bf16.msra.mxu0 %v1019
    %1182 = vmatpush.bf16.msra.mxu0 %v1017
    %1183 = vmatpush.bf16.msra.mxu0 %v1015
    %1184 = vmatpush.bf16.msra.mxu0 %v1013
    %1185 = vmatpush.bf16.msra.mxu0 %v1011
    %1186 = vmatpush.bf16.msra.mxu0 %v1009
    %1187 = vmatpush.bf16.msra.mxu0 %v1007
    %1188 = vmatmul.bf16.gmra.mxu0 %v710
    %v1189 = vpop.f32.mrf.mxu0
    %v1190 = vadd.f32 %v1177, %v1189
    %v1191 = vpop.f32.mrf.mxu0
    %1192 = vdwg.mxu0
    %1193 = vmatpush.bf16.msra.mxu0 %v1037
    %1194 = vmatpush.bf16.msra.mxu0 %v1035
    %1195 = vmatpush.bf16.msra.mxu0 %v1033
    %1196 = vmatpush.bf16.msra.mxu0 %v1031
    %1197 = vmatpush.bf16.msra.mxu0 %v1029
    %1198 = vmatpush.bf16.msra.mxu0 %v1027
    %1199 = vmatpush.bf16.msra.mxu0 %v1025
    %1200 = vmatpush.bf16.msra.mxu0 %v1023
    %1201 = vmatmul.bf16.gmra.mxu0 %v711
    %v1202 = vpop.f32.mrf.mxu0
    %v1203 = vadd.f32 %v1190, %v1202
    %v1204 = vpop.f32.mrf.mxu0
    %1205 = vdwg.mxu0
    %vm1206 = vcmp.gt.f32.partialorder %v1151, 0.0
    %vm1207 = vcmp.gt.f32.partialorder %v1203, 0.0
    %v1208 = vmin.f32 %v1151, 0.0
    %v1209 = vmin.f32 %v1203, 0.0
    %v1210 = vmul.f32 %v1208, 1.442695
    %v1211 = vpow.pop %v1210
    %v1212 = vmul.f32 %v1209, 1.442695
    %v1213 = vpow.pop %v1212
    %v1214 = vsub.f32 %v1211, 1.0
    %v1215 = vsub.f32 %v1213, 1.0
    %v1216 = vsel %vm1206, %v1151, %v1214
    %v1217 = vsel %vm1207, %v1203, %v1215
    %v1218 = vpack.c.bf16 %v1216, %v702
    %v1219 = vpack.c.bf16 %v1217, %v703
    %v1220 = vld [vmem:[%s13] sm:$0xff]
    %v1221 = vld [vmem:[%s13 + $0x8] sm:$0xff]
    %v1222 = vld [vmem:[%s13 + $0x10] sm:$0xff]
    %v1223 = vld [vmem:[%s13 + $0x18] sm:$0xff]
    %v1224 = vld [vmem:[%s13 + $0x20] sm:$0xff]
    %v1225 = vld [vmem:[%s13 + $0x28] sm:$0xff]
    %v1226 = vld [vmem:[%s13 + $0x30] sm:$0xff]
    %v1227 = vld [vmem:[%s13 + $0x38] sm:$0xff]
    %v1228 = vld [vmem:[%s13 + $0x40] sm:$0xff]
    %v1229 = vld [vmem:[%s13 + $0x48] sm:$0xff]
    %v1230 = vld [vmem:[%s13 + $0x50] sm:$0xff]
    %v1231 = vld [vmem:[%s13 + $0x58] sm:$0xff]
    %v1232 = vld [vmem:[%s13 + $0x60] sm:$0xff]
    %v1233 = vld [vmem:[%s13 + $0x68] sm:$0xff]
    %v1234 = vld [vmem:[%s13 + $0x70] sm:$0xff]
    %v1235 = vld [vmem:[%s13 + $0x78] sm:$0xff]
    %v1236 = vld [vmem:[%s13 + $0x80] sm:$0xff]
    %v1237 = vld [vmem:[%s13 + $0x88] sm:$0xff]
    %v1238 = vld [vmem:[%s13 + $0x90] sm:$0xff]
    %v1239 = vld [vmem:[%s13 + $0x98] sm:$0xff]
    %v1240 = vld [vmem:[%s13 + $0xa0] sm:$0xff]
    %v1241 = vld [vmem:[%s13 + $0xa8] sm:$0xff]
    %v1242 = vld [vmem:[%s13 + $0xb0] sm:$0xff]
    %v1243 = vld [vmem:[%s13 + $0xb8] sm:$0xff]
    %v1244 = vld [vmem:[%s13 + $0xc0] sm:$0xff]
    %v1245 = vld [vmem:[%s13 + $0xc8] sm:$0xff]
    %v1246 = vld [vmem:[%s13 + $0xd0] sm:$0xff]
    %v1247 = vld [vmem:[%s13 + $0xd8] sm:$0xff]
    %v1248 = vld [vmem:[%s13 + $0xe0] sm:$0xff]
    %v1249 = vld [vmem:[%s13 + $0xe8] sm:$0xff]
    %v1250 = vld [vmem:[%s13 + $0xf0] sm:$0xff]
    %v1251 = vld [vmem:[%s13 + $0xf8] sm:$0xff]
    %v1252 = vld [vmem:[%s15] sm:$0x3]
    %v1254 = vperm.slane %v1252, 0
    %v1255 = vperm.slane %v1252, 1
    %v1290 = vunpack.c.l.b16 %v1220
    %v1291 = vunpack.c.h.b16 %v1220
    %v1292 = vunpack.c.l.b16 %v1221
    %v1293 = vunpack.c.h.b16 %v1221
    %v1294 = vunpack.c.l.b16 %v1222
    %v1295 = vunpack.c.h.b16 %v1222
    %v1296 = vunpack.c.l.b16 %v1223
    %v1297 = vunpack.c.h.b16 %v1223
    %v1298 = vunpack.c.l.b16 %v1224
    %v1299 = vunpack.c.h.b16 %v1224
    %v1300 = vunpack.c.l.b16 %v1225
    %v1301 = vunpack.c.h.b16 %v1225
    %v1302 = vunpack.c.l.b16 %v1226
    %v1303 = vunpack.c.h.b16 %v1226
    %v1304 = vunpack.c.l.b16 %v1227
    %v1305 = vunpack.c.h.b16 %v1227
    %v1306 = vunpack.c.l.b16 %v1228
    %v1307 = vunpack.c.h.b16 %v1228
    %v1308 = vunpack.c.l.b16 %v1229
    %v1309 = vunpack.c.h.b16 %v1229
    %v1310 = vunpack.c.l.b16 %v1230
    %v1311 = vunpack.c.h.b16 %v1230
    %v1312 = vunpack.c.l.b16 %v1231
    %v1313 = vunpack.c.h.b16 %v1231
    %v1314 = vunpack.c.l.b16 %v1232
    %v1315 = vunpack.c.h.b16 %v1232
    %v1316 = vunpack.c.l.b16 %v1233
    %v1317 = vunpack.c.h.b16 %v1233
    %v1318 = vunpack.c.l.b16 %v1234
    %v1319 = vunpack.c.h.b16 %v1234
    %v1320 = vunpack.c.l.b16 %v1235
    %v1321 = vunpack.c.h.b16 %v1235
    %v1322 = vunpack.c.l.b16 %v1236
    %v1323 = vunpack.c.h.b16 %v1236
    %v1324 = vunpack.c.l.b16 %v1237
    %v1325 = vunpack.c.h.b16 %v1237
    %v1326 = vunpack.c.l.b16 %v1238
    %v1327 = vunpack.c.h.b16 %v1238
    %v1328 = vunpack.c.l.b16 %v1239
    %v1329 = vunpack.c.h.b16 %v1239
    %v1330 = vunpack.c.l.b16 %v1240
    %v1331 = vunpack.c.h.b16 %v1240
    %v1332 = vunpack.c.l.b16 %v1241
    %v1333 = vunpack.c.h.b16 %v1241
    %v1334 = vunpack.c.l.b16 %v1242
    %v1335 = vunpack.c.h.b16 %v1242
    %v1336 = vunpack.c.l.b16 %v1243
    %v1337 = vunpack.c.h.b16 %v1243
    %v1338 = vunpack.c.l.b16 %v1244
    %v1339 = vunpack.c.h.b16 %v1244
    %v1340 = vunpack.c.l.b16 %v1245
    %v1341 = vunpack.c.h.b16 %v1245
    %v1342 = vunpack.c.l.b16 %v1246
    %v1343 = vunpack.c.h.b16 %v1246
    %v1344 = vunpack.c.l.b16 %v1247
    %v1345 = vunpack.c.h.b16 %v1247
    %v1346 = vunpack.c.l.b16 %v1248
    %v1347 = vunpack.c.h.b16 %v1248
    %v1348 = vunpack.c.l.b16 %v1249
    %v1349 = vunpack.c.h.b16 %v1249
    %v1350 = vunpack.c.l.b16 %v1250
    %v1351 = vunpack.c.h.b16 %v1250
    %v1352 = vunpack.c.l.b16 %v1251
    %v1353 = vunpack.c.h.b16 %v1251
    %v1354 = vpack.c.b16 %v1292, %v1290
    %v1355 = vpack.c.b16 %v1293, %v1291
    %v1356 = vpack.c.b16 %v1296, %v1294
    %v1357 = vpack.c.b16 %v1297, %v1295
    %v1358 = vpack.c.b16 %v1300, %v1298
    %v1359 = vpack.c.b16 %v1301, %v1299
    %v1360 = vpack.c.b16 %v1304, %v1302
    %v1361 = vpack.c.b16 %v1305, %v1303
    %v1362 = vpack.c.b16 %v1308, %v1306
    %v1363 = vpack.c.b16 %v1309, %v1307
    %v1364 = vpack.c.b16 %v1312, %v1310
    %v1365 = vpack.c.b16 %v1313, %v1311
    %v1366 = vpack.c.b16 %v1316, %v1314
    %v1367 = vpack.c.b16 %v1317, %v1315
    %v1368 = vpack.c.b16 %v1320, %v1318
    %v1369 = vpack.c.b16 %v1321, %v1319
    %v1370 = vpack.c.b16 %v1324, %v1322
    %v1371 = vpack.c.b16 %v1325, %v1323
    %v1372 = vpack.c.b16 %v1328, %v1326
    %v1373 = vpack.c.b16 %v1329, %v1327
    %v1374 = vpack.c.b16 %v1332, %v1330
    %v1375 = vpack.c.b16 %v1333, %v1331
    %v1376 = vpack.c.b16 %v1336, %v1334
    %v1377 = vpack.c.b16 %v1337, %v1335
    %v1378 = vpack.c.b16 %v1340, %v1338
    %v1379 = vpack.c.b16 %v1341, %v1339
    %v1380 = vpack.c.b16 %v1344, %v1342
    %v1381 = vpack.c.b16 %v1345, %v1343
    %v1382 = vpack.c.b16 %v1348, %v1346
    %v1383 = vpack.c.b16 %v1349, %v1347
    %v1384 = vpack.c.b16 %v1352, %v1350
    %v1385 = vpack.c.b16 %v1353, %v1351
    %1418 = vmatpush.bf16.msra.mxu0 %v1368
    %1419 = vmatpush.bf16.msra.mxu0 %v1366
    %1420 = vmatpush.bf16.msra.mxu0 %v1364
    %1421 = vmatpush.bf16.msra.mxu0 %v1362
    %1422 = vmatpush.bf16.msra.mxu0 %v1360
    %1423 = vmatpush.bf16.msra.mxu0 %v1358
    %1424 = vmatpush.bf16.msra.mxu0 %v1356
    %1425 = vmatpush.bf16.msra.mxu0 %v1354
    %1426 = vmatmul.bf16.gmra.mxu0 %v1218
    %v1427 = vpop.f32.mrf.mxu0
    %v1428 = vadd.f32 %v1254, %v1427
    %v1429 = vpop.f32.mrf.mxu0
    %v1430 = vadd.f32 %v1254, %v1429
    %1431 = vdwg.mxu0
    %1432 = vmatpush.bf16.msra.mxu0 %v1384
    %1433 = vmatpush.bf16.msra.mxu0 %v1382
    %1434 = vmatpush.bf16.msra.mxu0 %v1380
    %1435 = vmatpush.bf16.msra.mxu0 %v1378
    %1436 = vmatpush.bf16.msra.mxu0 %v1376
    %1437 = vmatpush.bf16.msra.mxu0 %v1374
    %1438 = vmatpush.bf16.msra.mxu0 %v1372
    %1439 = vmatpush.bf16.msra.mxu0 %v1370
    %1440 = vmatmul.bf16.gmra.mxu0 %v1219
    %v1441 = vpop.f32.mrf.mxu0
    %v1442 = vadd.f32 %v1428, %v1441
    %v1443 = vpop.f32.mrf.mxu0
    %v1444 = vadd.f32 %v1430, %v1443
    %1445 = vdwg.mxu0
    %1446 = vmatpush.bf16.msra.mxu0 %v1369
    %1447 = vmatpush.bf16.msra.mxu0 %v1367
    %1448 = vmatpush.bf16.msra.mxu0 %v1365
    %1449 = vmatpush.bf16.msra.mxu0 %v1363
    %1450 = vmatpush.bf16.msra.mxu0 %v1361
    %1451 = vmatpush.bf16.msra.mxu0 %v1359
    %1452 = vmatpush.bf16.msra.mxu0 %v1357
    %1453 = vmatpush.bf16.msra.mxu0 %v1355
    %1454 = vmatmul.bf16.gmra.mxu0 %v1218
    %v1455 = vpop.f32.mrf.mxu0
    %v1456 = vadd.f32 %v1255, %v1455
    %v1457 = vpop.f32.mrf.mxu0
    %v1458 = vadd.f32 %v1255, %v1457
    %1459 = vdwg.mxu0
    %1460 = vmatpush.bf16.msra.mxu0 %v1385
    %1461 = vmatpush.bf16.msra.mxu0 %v1383
    %1462 = vmatpush.bf16.msra.mxu0 %v1381
    %1463 = vmatpush.bf16.msra.mxu0 %v1379
    %1464 = vmatpush.bf16.msra.mxu0 %v1377
    %1465 = vmatpush.bf16.msra.mxu0 %v1375
    %1466 = vmatpush.bf16.msra.mxu0 %v1373
    %1467 = vmatpush.bf16.msra.mxu0 %v1371
    %1468 = vmatmul.bf16.gmra.mxu0 %v1219
    %v1469 = vpop.f32.mrf.mxu0
    %v1470 = vadd.f32 %v1456, %v1469
    %v1471 = vpop.f32.mrf.mxu0
    %v1472 = vadd.f32 %v1458, %v1471
    %1473 = vdwg.mxu0
    %v1474 = vtanh.pop %v1442
    %v1475 = vtanh.pop %v1444
    %v1476 = vxor.u32 %v1470, 2147483648
    %v1477 = vxor.u32 %v1472, 2147483648
    %v1478 = vmul.f32 %v1476, 1.442695
    %v1479 = vpow.pop %v1478
    %v1480 = vmul.f32 %v1477, 1.442695
    %v1481 = vpow.pop %v1480
    %v1482 = vadd.f32 %v1479, 1.0
    %v1483 = vadd.f32 %v1481, 1.0
    %v1484 = vrcp.pop %v1482
    %v1485 = vmul.f32 %v1482, %v1484
    %v1486 = vsub.f32 1.0, %v1485
    %v1487 = vmul.f32 %v1484, %v1486
    %v1488 = vadd.f32 %v1484, %v1487
    %vm1489 = vweird.f32 %v1482
    %vm1490 = vweird.f32 %v1484
    %vm1491 = vmor %vm1489, %vm1490
    %v1492 = vsel %vm1491, %v1484, %v1488
    %v1493 = vand.u32 2147483647, %v1482
    %vm1494 = vcmp.eq.f32.partialorder %v1493, 8.507059e+37
    %v1495 = vand.u32 %v1482, 2147483648
    %v1496 = vor.u32 1.1754944e-38, %v1495
    %v1497 = vsel %vm1494, %v1496, %v1492
    %v1498 = vmul.f32 1.0, %v1497
    %v1499 = vrcp.pop %v1483
    %v1500 = vmul.f32 %v1483, %v1499
    %v1501 = vsub.f32 1.0, %v1500
    %v1502 = vmul.f32 %v1499, %v1501
    %v1503 = vadd.f32 %v1499, %v1502
    %vm1504 = vweird.f32 %v1483
    %vm1505 = vweird.f32 %v1499
    %vm1506 = vmor %vm1504, %vm1505
    %v1507 = vsel %vm1506, %v1499, %v1503
    %v1508 = vand.u32 2147483647, %v1483
    %vm1509 = vcmp.eq.f32.partialorder %v1508, 8.507059e+37
    %v1510 = vand.u32 %v1483, 2147483648
    %v1511 = vor.u32 1.1754944e-38, %v1510
    %v1512 = vsel %vm1509, %v1511, %v1507
    %v1513 = vmul.f32 1.0, %v1512
    %v1514 = vmul.f32 %v1474, %v1498
    %v1515 = vmul.f32 %v1475, %v1513
    %v1516 = vpack.c.bf16 %v1515, %v1514
    %v1517 = vld [vmem:[%s17] sm:$0xf]
    %v1518 = vld [vmem:[%s17 + $0x4] sm:$0xf]
    %v1519 = vld [vmem:[%s17 + $0x8] sm:$0xf]
    %v1520 = vld [vmem:[%s17 + $0xc] sm:$0xf]
    %v1521 = vld [vmem:[%s17 + $0x10] sm:$0xf]
    %v1522 = vld [vmem:[%s17 + $0x14] sm:$0xf]
    %v1523 = vld [vmem:[%s17 + $0x18] sm:$0xf]
    %v1524 = vld [vmem:[%s17 + $0x1c] sm:$0xf]
    %v1525 = vld [vmem:[%s17 + $0x20] sm:$0xf]
    %v1526 = vld [vmem:[%s17 + $0x24] sm:$0xf]
    %v1527 = vld [vmem:[%s17 + $0x28] sm:$0xf]
    %v1528 = vld [vmem:[%s17 + $0x2c] sm:$0xf]
    %v1529 = vld [vmem:[%s17 + $0x30] sm:$0xf]
    %v1530 = vld [vmem:[%s17 + $0x34] sm:$0xf]
    %v1531 = vld [vmem:[%s17 + $0x38] sm:$0xf]
    %v1532 = vld [vmem:[%s17 + $0x3c] sm:$0xf]
    %v1533 = vld [vmem:[#allocation2] sm:$0x1]
    %v1535 = vperm.slane %v1533, 0
    %v1553 = vunpack.c.l.b16 %v1517
    %v1554 = vunpack.c.l.b16 %v1518
    %v1555 = vunpack.c.l.b16 %v1519
    %v1556 = vunpack.c.l.b16 %v1520
    %v1557 = vunpack.c.l.b16 %v1521
    %v1558 = vunpack.c.l.b16 %v1522
    %v1559 = vunpack.c.l.b16 %v1523
    %v1560 = vunpack.c.l.b16 %v1524
    %v1561 = vunpack.c.l.b16 %v1525
    %v1562 = vunpack.c.l.b16 %v1526
    %v1563 = vunpack.c.l.b16 %v1527
    %v1564 = vunpack.c.l.b16 %v1528
    %v1565 = vunpack.c.l.b16 %v1529
    %v1566 = vunpack.c.l.b16 %v1530
    %v1567 = vunpack.c.l.b16 %v1531
    %v1568 = vunpack.c.l.b16 %v1532
    %v1569 = vpack.c.b16 %v1554, %v1553
    %v1570 = vpack.c.b16 %v1556, %v1555
    %v1571 = vpack.c.b16 %v1558, %v1557
    %v1572 = vpack.c.b16 %v1560, %v1559
    %v1573 = vpack.c.b16 %v1562, %v1561
    %v1574 = vpack.c.b16 %v1564, %v1563
    %v1575 = vpack.c.b16 %v1566, %v1565
    %v1576 = vpack.c.b16 %v1568, %v1567
    %1585 = vmatpush.bf16.msra.mxu0 %v1576
    %1586 = vmatpush.bf16.msra.mxu0 %v1575
    %1587 = vmatpush.bf16.msra.mxu0 %v1574
    %1588 = vmatpush.bf16.msra.mxu0 %v1573
    %1589 = vmatpush.bf16.msra.mxu0 %v1572
    %1590 = vmatpush.bf16.msra.mxu0 %v1571
    %1591 = vmatpush.bf16.msra.mxu0 %v1570
    %1592 = vmatpush.bf16.msra.mxu0 %v1569
    %1593 = vmatmul.bf16.gmra.mxu0 %v1516
    %v1594 = vpop.f32.mrf.mxu0
    %v1595 = vadd.f32 %v1535, %v1594
    %v1596 = vpop.f32.mrf.mxu0
    %v1597 = vadd.f32 %v1535, %v1596
    %1598 = vdwg.mxu0
    %vm1599 = vcmask 7168
    %v1600 = vsel %vm1599, %v1595, -inf
    %v1601 = vrot.slane %v1600, 4
    %v1602 = vmax.f32 %v1600, %v1601
    %v1603 = vrot.slane %v1602, 2
    %v1604 = vmax.f32 %v1602, %v1603
    %v1605 = vrot.slane %v1604, 1
    %v1606 = vmax.f32 %v1604, %v1605
    %v1607 = vsub.f32 %v1595, %v1606
    %v1608 = vmul.f32 %v1607, 1.442695
    %v1609 = vpow.pop %v1608
    %v1610 = vsel %vm1599, %v1609, 0.0
    %v1611 = vrot.slane %v1610, 4
    %v1612 = vadd.f32 %v1610, %v1611
    %v1613 = vrot.slane %v1612, 2
    %v1614 = vadd.f32 %v1612, %v1613
    %v1615 = vrot.slane %v1614, 1
    %v1616 = vadd.f32 %v1614, %v1615
    %v1617 = vrcp.pop %v1616
    %v1618 = vmul.f32 %v1616, %v1617
    %v1619 = vsub.f32 1.0, %v1618
    %v1620 = vmul.f32 %v1617, %v1619
    %v1621 = vadd.f32 %v1617, %v1620
    %vm1622 = vweird.f32 %v1616
    %vm1623 = vweird.f32 %v1617
    %vm1624 = vmor %vm1622, %vm1623
    %v1625 = vsel %vm1624, %v1617, %v1621
    %v1626 = vand.u32 2147483647, %v1616
    %vm1627 = vcmp.eq.f32.partialorder %v1626, 8.507059e+37
    %v1628 = vand.u32 %v1616, 2147483648
    %v1629 = vor.u32 1.1754944e-38, %v1628
    %v1630 = vsel %vm1627, %v1629, %v1625
    %v1631 = vmul.f32 %v1609, %v1630
    %1633 = vset.pattern.permute.xlu0 0
    %1634 = vperm.xlu0 %1633, %v1631
    %v1635 = vpop.permute.xlu0 %1634
    %v1637 = vmul.f32 %v1635, %v702
    %v1638 = vmul.f32 %v1635, %v703
    %v1639 = vrot.slane %v1637, 4
    %v1640 = vadd.f32 %v1637, %v1639
    %v1641 = vrot.slane %v1640, 2
    %v1642 = vadd.f32 %v1640, %v1641
    %v1643 = vrot.slane %v1642, 1
    %v1644 = vadd.f32 %v1642, %v1643
    %v1645 = vrot.slane %v1638, 4
    %v1646 = vadd.f32 %v1638, %v1645
    %v1647 = vrot.slane %v1646, 2
    %v1648 = vadd.f32 %v1646, %v1647
    %v1649 = vrot.slane %v1648, 1
    %v1650 = vadd.f32 %v1648, %v1649
    %v1651 = vsel %vm1599, %v1597, -inf
    %v1652 = vrot.slane %v1651, 4
    %v1653 = vmax.f32 %v1651, %v1652
    %v1654 = vrot.slane %v1653, 2
    %v1655 = vmax.f32 %v1653, %v1654
    %v1656 = vrot.slane %v1655, 1
    %v1657 = vmax.f32 %v1655, %v1656
    %v1658 = vsub.f32 %v1597, %v1657
    %v1659 = vmul.f32 %v1658, 1.442695
    %v1660 = vpow.pop %v1659
    %v1661 = vsel %vm1599, %v1660, 0.0
    %v1662 = vrot.slane %v1661, 4
    %v1663 = vadd.f32 %v1661, %v1662
    %v1664 = vrot.slane %v1663, 2
    %v1665 = vadd.f32 %v1663, %v1664
    %v1666 = vrot.slane %v1665, 1
    %v1667 = vadd.f32 %v1665, %v1666
    %v1668 = vrcp.pop %v1667
    %v1669 = vmul.f32 %v1667, %v1668
    %v1670 = vsub.f32 1.0, %v1669
    %v1671 = vmul.f32 %v1668, %v1670
    %v1672 = vadd.f32 %v1668, %v1671
    %vm1673 = vweird.f32 %v1667
    %vm1674 = vweird.f32 %v1668
    %vm1675 = vmor %vm1673, %vm1674
    %v1676 = vsel %vm1675, %v1668, %v1672
    %v1677 = vand.u32 2147483647, %v1667
    %vm1678 = vcmp.eq.f32.partialorder %v1677, 8.507059e+37
    %v1679 = vand.u32 %v1667, 2147483648
    %v1680 = vor.u32 1.1754944e-38, %v1679
    %v1681 = vsel %vm1678, %v1680, %v1676
    %v1682 = vmul.f32 %v1660, %v1681
    %1684 = vset.pattern.permute.xlu0 0
    %1685 = vperm.xlu0 %1684, %v1682
    %v1686 = vpop.permute.xlu0 %1685
    %v1688 = vmul.f32 %v1686, %v1216
    %v1689 = vmul.f32 %v1686, %v1217
    %v1690 = vrot.slane %v1688, 4
    %v1691 = vadd.f32 %v1688, %v1690
    %v1692 = vrot.slane %v1691, 2
    %v1693 = vadd.f32 %v1691, %v1692
    %v1694 = vrot.slane %v1693, 1
    %v1695 = vadd.f32 %v1693, %v1694
    %v1696 = vrot.slane %v1689, 4
    %v1697 = vadd.f32 %v1689, %v1696
    %v1698 = vrot.slane %v1697, 2
    %v1699 = vadd.f32 %v1697, %v1698
    %v1700 = vrot.slane %v1699, 1
    %v1701 = vadd.f32 %v1699, %v1700
    %v1702 = vpack.c.bf16 %v1695, %v1695
    %v1703 = vpack.c.bf16 %v1701, %v1701
    %v1704 = vld [vmem:[%s21] sm:$0xf]
    %v1705 = vld [vmem:[%s21 + $0x4] sm:$0xf]
    %v1706 = vld [vmem:[%s21 + $0x8] sm:$0xf]
    %v1707 = vld [vmem:[%s21 + $0xc] sm:$0xf]
    %v1708 = vld [vmem:[%s21 + $0x10] sm:$0xf]
    %v1709 = vld [vmem:[%s21 + $0x14] sm:$0xf]
    %v1710 = vld [vmem:[%s21 + $0x18] sm:$0xf]
    %v1711 = vld [vmem:[%s21 + $0x1c] sm:$0xf]
    %v1712 = vld [vmem:[%s21 + $0x20] sm:$0xf]
    %v1713 = vld [vmem:[%s21 + $0x24] sm:$0xf]
    %v1714 = vld [vmem:[%s21 + $0x28] sm:$0xf]
    %v1715 = vld [vmem:[%s21 + $0x2c] sm:$0xf]
    %v1716 = vld [vmem:[%s21 + $0x30] sm:$0xf]
    %v1717 = vld [vmem:[%s21 + $0x34] sm:$0xf]
    %v1718 = vld [vmem:[%s21 + $0x38] sm:$0xf]
    %v1719 = vld [vmem:[%s21 + $0x3c] sm:$0xf]
    %v1720 = vld [vmem:[%s21 + $0x40] sm:$0xf]
    %v1721 = vld [vmem:[%s21 + $0x44] sm:$0xf]
    %v1722 = vld [vmem:[%s21 + $0x48] sm:$0xf]
    %v1723 = vld [vmem:[%s21 + $0x4c] sm:$0xf]
    %v1724 = vld [vmem:[%s21 + $0x50] sm:$0xf]
    %v1725 = vld [vmem:[%s21 + $0x54] sm:$0xf]
    %v1726 = vld [vmem:[%s21 + $0x58] sm:$0xf]
    %v1727 = vld [vmem:[%s21 + $0x5c] sm:$0xf]
    %v1728 = vld [vmem:[%s21 + $0x60] sm:$0xf]
    %v1729 = vld [vmem:[%s21 + $0x64] sm:$0xf]
    %v1730 = vld [vmem:[%s21 + $0x68] sm:$0xf]
    %v1731 = vld [vmem:[%s21 + $0x6c] sm:$0xf]
    %v1732 = vld [vmem:[%s21 + $0x70] sm:$0xf]
    %v1733 = vld [vmem:[%s21 + $0x74] sm:$0xf]
    %v1734 = vld [vmem:[%s21 + $0x78] sm:$0xf]
    %v1735 = vld [vmem:[%s21 + $0x7c] sm:$0xf]
    %v1736 = vld [vmem:[%s23] sm:$0x1]
    %v1769 = vunpack.c.l.b16 %v1704
    %v1770 = vunpack.c.l.b16 %v1705
    %v1771 = vunpack.c.l.b16 %v1706
    %v1772 = vunpack.c.l.b16 %v1707
    %v1773 = vunpack.c.l.b16 %v1708
    %v1774 = vunpack.c.l.b16 %v1709
    %v1775 = vunpack.c.l.b16 %v1710
    %v1776 = vunpack.c.l.b16 %v1711
    %v1777 = vunpack.c.l.b16 %v1712
    %v1778 = vunpack.c.l.b16 %v1713
    %v1779 = vunpack.c.l.b16 %v1714
    %v1780 = vunpack.c.l.b16 %v1715
    %v1781 = vunpack.c.l.b16 %v1716
    %v1782 = vunpack.c.l.b16 %v1717
    %v1783 = vunpack.c.l.b16 %v1718
    %v1784 = vunpack.c.l.b16 %v1719
    %v1785 = vunpack.c.l.b16 %v1720
    %v1786 = vunpack.c.l.b16 %v1721
    %v1787 = vunpack.c.l.b16 %v1722
    %v1788 = vunpack.c.l.b16 %v1723
    %v1789 = vunpack.c.l.b16 %v1724
    %v1790 = vunpack.c.l.b16 %v1725
    %v1791 = vunpack.c.l.b16 %v1726
    %v1792 = vunpack.c.l.b16 %v1727
    %v1793 = vunpack.c.l.b16 %v1728
    %v1794 = vunpack.c.l.b16 %v1729
    %v1795 = vunpack.c.l.b16 %v1730
    %v1796 = vunpack.c.l.b16 %v1731
    %v1797 = vunpack.c.l.b16 %v1732
    %v1798 = vunpack.c.l.b16 %v1733
    %v1799 = vunpack.c.l.b16 %v1734
    %v1800 = vunpack.c.l.b16 %v1735
    %v1801 = vpack.c.b16 %v1770, %v1769
    %v1802 = vpack.c.b16 %v1772, %v1771
    %v1803 = vpack.c.b16 %v1774, %v1773
    %v1804 = vpack.c.b16 %v1776, %v1775
    %v1805 = vpack.c.b16 %v1778, %v1777
    %v1806 = vpack.c.b16 %v1780, %v1779
    %v1807 = vpack.c.b16 %v1782, %v1781
    %v1808 = vpack.c.b16 %v1784, %v1783
    %v1809 = vpack.c.b16 %v1786, %v1785
    %v1810 = vpack.c.b16 %v1788, %v1787
    %v1811 = vpack.c.b16 %v1790, %v1789
    %v1812 = vpack.c.b16 %v1792, %v1791
    %v1813 = vpack.c.b16 %v1794, %v1793
    %v1814 = vpack.c.b16 %v1796, %v1795
    %v1815 = vpack.c.b16 %v1798, %v1797
    %v1816 = vpack.c.b16 %v1800, %v1799
    %1833 = vmatpush.bf16.msra.mxu0 %v1808
    %1834 = vmatpush.bf16.msra.mxu0 %v1807
    %1835 = vmatpush.bf16.msra.mxu0 %v1806
    %1836 = vmatpush.bf16.msra.mxu0 %v1805
    %1837 = vmatpush.bf16.msra.mxu0 %v1804
    %1838 = vmatpush.bf16.msra.mxu0 %v1803
    %1839 = vmatpush.bf16.msra.mxu0 %v1802
    %1840 = vmatpush.bf16.msra.mxu0 %v1801
    %1841 = vmatmul.bf16.gmra.mxu0 %v1702
    %v1842 = vpop.f32.mrf.mxu0
    %v1843 = vadd.f32 %v1736, %v1842
    %v1844 = vpop.f32.mrf.mxu0
    %1845 = vdwg.mxu0
    %1846 = vmatpush.bf16.msra.mxu0 %v1816
    %1847 = vmatpush.bf16.msra.mxu0 %v1815
    %1848 = vmatpush.bf16.msra.mxu0 %v1814
    %1849 = vmatpush.bf16.msra.mxu0 %v1813
    %1850 = vmatpush.bf16.msra.mxu0 %v1812
    %1851 = vmatpush.bf16.msra.mxu0 %v1811
    %1852 = vmatpush.bf16.msra.mxu0 %v1810
    %1853 = vmatpush.bf16.msra.mxu0 %v1809
    %1854 = vmatmul.bf16.gmra.mxu0 %v1703
    %v1855 = vpop.f32.mrf.mxu0
    %v1856 = vadd.f32 %v1843, %v1855
    %v1857 = vpop.f32.mrf.mxu0
    %1858 = vdwg.mxu0
    %v1859 = vmax.f32 %v1856, 0.0
    %v1860 = vpack.c.bf16 %v1644, %v1644
    %v1861 = vpack.c.bf16 %v1650, %v1650
    %v1862 = vld [vmem:[%s25] sm:$0xf]
    %v1863 = vld [vmem:[%s25 + $0x4] sm:$0xf]
    %v1864 = vld [vmem:[%s25 + $0x8] sm:$0xf]
    %v1865 = vld [vmem:[%s25 + $0xc] sm:$0xf]
    %v1866 = vld [vmem:[%s25 + $0x10] sm:$0xf]
    %v1867 = vld [vmem:[%s25 + $0x14] sm:$0xf]
    %v1868 = vld [vmem:[%s25 + $0x18] sm:$0xf]
    %v1869 = vld [vmem:[%s25 + $0x1c] sm:$0xf]
    %v1870 = vld [vmem:[%s25 + $0x20] sm:$0xf]
    %v1871 = vld [vmem:[%s25 + $0x24] sm:$0xf]
    %v1872 = vld [vmem:[%s25 + $0x28] sm:$0xf]
    %v1873 = vld [vmem:[%s25 + $0x2c] sm:$0xf]
    %v1874 = vld [vmem:[%s25 + $0x30] sm:$0xf]
    %v1875 = vld [vmem:[%s25 + $0x34] sm:$0xf]
    %v1876 = vld [vmem:[%s25 + $0x38] sm:$0xf]
    %v1877 = vld [vmem:[%s25 + $0x3c] sm:$0xf]
    %v1878 = vld [vmem:[%s25 + $0x40] sm:$0xf]
    %v1879 = vld [vmem:[%s25 + $0x44] sm:$0xf]
    %v1880 = vld [vmem:[%s25 + $0x48] sm:$0xf]
    %v1881 = vld [vmem:[%s25 + $0x4c] sm:$0xf]
    %v1882 = vld [vmem:[%s25 + $0x50] sm:$0xf]
    %v1883 = vld [vmem:[%s25 + $0x54] sm:$0xf]
    %v1884 = vld [vmem:[%s25 + $0x58] sm:$0xf]
    %v1885 = vld [vmem:[%s25 + $0x5c] sm:$0xf]
    %v1886 = vld [vmem:[%s25 + $0x60] sm:$0xf]
    %v1887 = vld [vmem:[%s25 + $0x64] sm:$0xf]
    %v1888 = vld [vmem:[%s25 + $0x68] sm:$0xf]
    %v1889 = vld [vmem:[%s25 + $0x6c] sm:$0xf]
    %v1890 = vld [vmem:[%s25 + $0x70] sm:$0xf]
    %v1891 = vld [vmem:[%s25 + $0x74] sm:$0xf]
    %v1892 = vld [vmem:[%s25 + $0x78] sm:$0xf]
    %v1893 = vld [vmem:[%s25 + $0x7c] sm:$0xf]
    %v1894 = vld [vmem:[%s27] sm:$0x1]
    %v1927 = vunpack.c.l.b16 %v1862
    %v1928 = vunpack.c.l.b16 %v1863
    %v1929 = vunpack.c.l.b16 %v1864
    %v1930 = vunpack.c.l.b16 %v1865
    %v1931 = vunpack.c.l.b16 %v1866
    %v1932 = vunpack.c.l.b16 %v1867
    %v1933 = vunpack.c.l.b16 %v1868
    %v1934 = vunpack.c.l.b16 %v1869
    %v1935 = vunpack.c.l.b16 %v1870
    %v1936 = vunpack.c.l.b16 %v1871
    %v1937 = vunpack.c.l.b16 %v1872
    %v1938 = vunpack.c.l.b16 %v1873
    %v1939 = vunpack.c.l.b16 %v1874
    %v1940 = vunpack.c.l.b16 %v1875
    %v1941 = vunpack.c.l.b16 %v1876
    %v1942 = vunpack.c.l.b16 %v1877
    %v1943 = vunpack.c.l.b16 %v1878
    %v1944 = vunpack.c.l.b16 %v1879
    %v1945 = vunpack.c.l.b16 %v1880
    %v1946 = vunpack.c.l.b16 %v1881
    %v1947 = vunpack.c.l.b16 %v1882
    %v1948 = vunpack.c.l.b16 %v1883
    %v1949 = vunpack.c.l.b16 %v1884
    %v1950 = vunpack.c.l.b16 %v1885
    %v1951 = vunpack.c.l.b16 %v1886
    %v1952 = vunpack.c.l.b16 %v1887
    %v1953 = vunpack.c.l.b16 %v1888
    %v1954 = vunpack.c.l.b16 %v1889
    %v1955 = vunpack.c.l.b16 %v1890
    %v1956 = vunpack.c.l.b16 %v1891
    %v1957 = vunpack.c.l.b16 %v1892
    %v1958 = vunpack.c.l.b16 %v1893
    %v1959 = vpack.c.b16 %v1928, %v1927
    %v1960 = vpack.c.b16 %v1930, %v1929
    %v1961 = vpack.c.b16 %v1932, %v1931
    %v1962 = vpack.c.b16 %v1934, %v1933
    %v1963 = vpack.c.b16 %v1936, %v1935
    %v1964 = vpack.c.b16 %v1938, %v1937
    %v1965 = vpack.c.b16 %v1940, %v1939
    %v1966 = vpack.c.b16 %v1942, %v1941
    %v1967 = vpack.c.b16 %v1944, %v1943
    %v1968 = vpack.c.b16 %v1946, %v1945
    %v1969 = vpack.c.b16 %v1948, %v1947
    %v1970 = vpack.c.b16 %v1950, %v1949
    %v1971 = vpack.c.b16 %v1952, %v1951
    %v1972 = vpack.c.b16 %v1954, %v1953
    %v1973 = vpack.c.b16 %v1956, %v1955
    %v1974 = vpack.c.b16 %v1958, %v1957
    %1991 = vmatpush.bf16.msra.mxu0 %v1966
    %1992 = vmatpush.bf16.msra.mxu0 %v1965
    %1993 = vmatpush.bf16.msra.mxu0 %v1964
    %1994 = vmatpush.bf16.msra.mxu0 %v1963
    %1995 = vmatpush.bf16.msra.mxu0 %v1962
    %1996 = vmatpush.bf16.msra.mxu0 %v1961
    %1997 = vmatpush.bf16.msra.mxu0 %v1960
    %1998 = vmatpush.bf16.msra.mxu0 %v1959
    %1999 = vmatmul.bf16.gmra.mxu0 %v1860
    %v2000 = vpop.f32.mrf.mxu0
    %v2001 = vadd.f32 %v1894, %v2000
    %v2002 = vpop.f32.mrf.mxu0
    %2003 = vdwg.mxu0
    %2004 = vmatpush.bf16.msra.mxu0 %v1974
    %2005 = vmatpush.bf16.msra.mxu0 %v1973
    %2006 = vmatpush.bf16.msra.mxu0 %v1972
    %2007 = vmatpush.bf16.msra.mxu0 %v1971
    %2008 = vmatpush.bf16.msra.mxu0 %v1970
    %2009 = vmatpush.bf16.msra.mxu0 %v1969
    %2010 = vmatpush.bf16.msra.mxu0 %v1968
    %2011 = vmatpush.bf16.msra.mxu0 %v1967
    %2012 = vmatmul.bf16.gmra.mxu0 %v1861
    %v2013 = vpop.f32.mrf.mxu0
    %v2014 = vadd.f32 %v2001, %v2013
    %v2015 = vpop.f32.mrf.mxu0
    %2016 = vdwg.mxu0
    %v2017 = vmax.f32 %v2014, 0.0
    %v2018 = vld [vmem:[%s29] sm:$0xf]
    %v2019 = vld [vmem:[%s29 + $0x4] sm:$0xf]
    %v2020 = vld [vmem:[%s29 + $0x8] sm:$0xf]
    %v2021 = vld [vmem:[%s29 + $0xc] sm:$0xf]
    %v2022 = vld [vmem:[%s29 + $0x10] sm:$0xf]
    %v2023 = vld [vmem:[%s29 + $0x14] sm:$0xf]
    %v2024 = vld [vmem:[%s29 + $0x18] sm:$0xf]
    %v2025 = vld [vmem:[%s29 + $0x1c] sm:$0xf]
    %v2026 = vld [vmem:[%s29 + $0x20] sm:$0xf]
    %v2027 = vld [vmem:[%s29 + $0x24] sm:$0xf]
    %v2028 = vld [vmem:[%s29 + $0x28] sm:$0xf]
    %v2029 = vld [vmem:[%s29 + $0x2c] sm:$0xf]
    %v2030 = vld [vmem:[%s29 + $0x30] sm:$0xf]
    %v2031 = vld [vmem:[%s29 + $0x34] sm:$0xf]
    %v2032 = vld [vmem:[%s29 + $0x38] sm:$0xf]
    %v2033 = vld [vmem:[%s29 + $0x3c] sm:$0xf]
    %v2034 = vld [vmem:[%s29 + $0x40] sm:$0xf]
    %v2035 = vld [vmem:[%s29 + $0x44] sm:$0xf]
    %v2036 = vld [vmem:[%s29 + $0x48] sm:$0xf]
    %v2037 = vld [vmem:[%s29 + $0x4c] sm:$0xf]
    %v2038 = vld [vmem:[%s29 + $0x50] sm:$0xf]
    %v2039 = vld [vmem:[%s29 + $0x54] sm:$0xf]
    %v2040 = vld [vmem:[%s29 + $0x58] sm:$0xf]
    %v2041 = vld [vmem:[%s29 + $0x5c] sm:$0xf]
    %v2042 = vld [vmem:[%s29 + $0x60] sm:$0xf]
    %v2043 = vld [vmem:[%s29 + $0x64] sm:$0xf]
    %v2044 = vld [vmem:[%s29 + $0x68] sm:$0xf]
    %v2045 = vld [vmem:[%s29 + $0x6c] sm:$0xf]
    %v2046 = vld [vmem:[%s29 + $0x70] sm:$0xf]
    %v2047 = vld [vmem:[%s29 + $0x74] sm:$0xf]
    %v2048 = vld [vmem:[%s29 + $0x78] sm:$0xf]
    %v2049 = vld [vmem:[%s29 + $0x7c] sm:$0xf]
    %v2050 = vld [vmem:[%s29 + $0x80] sm:$0xf]
    %v2051 = vld [vmem:[%s29 + $0x84] sm:$0xf]
    %v2052 = vld [vmem:[%s29 + $0x88] sm:$0xf]
    %v2053 = vld [vmem:[%s29 + $0x8c] sm:$0xf]
    %v2054 = vld [vmem:[%s29 + $0x90] sm:$0xf]
    %v2055 = vld [vmem:[%s29 + $0x94] sm:$0xf]
    %v2056 = vld [vmem:[%s29 + $0x98] sm:$0xf]
    %v2057 = vld [vmem:[%s29 + $0x9c] sm:$0xf]
    %v2058 = vld [vmem:[%s29 + $0xa0] sm:$0xf]
    %v2059 = vld [vmem:[%s29 + $0xa4] sm:$0xf]
    %v2060 = vld [vmem:[%s29 + $0xa8] sm:$0xf]
    %v2061 = vld [vmem:[%s29 + $0xac] sm:$0xf]
    %v2062 = vld [vmem:[%s29 + $0xb0] sm:$0xf]
    %v2063 = vld [vmem:[%s29 + $0xb4] sm:$0xf]
    %v2064 = vld [vmem:[%s29 + $0xb8] sm:$0xf]
    %v2065 = vld [vmem:[%s29 + $0xbc] sm:$0xf]
    %v2066 = vld [vmem:[%s29 + $0xc0] sm:$0xf]
    %v2067 = vld [vmem:[%s29 + $0xc4] sm:$0xf]
    %v2068 = vld [vmem:[%s29 + $0xc8] sm:$0xf]
    %v2069 = vld [vmem:[%s29 + $0xcc] sm:$0xf]
    %v2070 = vld [vmem:[%s29 + $0xd0] sm:$0xf]
    %v2071 = vld [vmem:[%s29 + $0xd4] sm:$0xf]
    %v2072 = vld [vmem:[%s29 + $0xd8] sm:$0xf]
    %v2073 = vld [vmem:[%s29 + $0xdc] sm:$0xf]
    %v2074 = vld [vmem:[%s29 + $0xe0] sm:$0xf]
    %v2075 = vld [vmem:[%s29 + $0xe4] sm:$0xf]
    %v2076 = vld [vmem:[%s29 + $0xe8] sm:$0xf]
    %v2077 = vld [vmem:[%s29 + $0xec] sm:$0xf]
    %v2078 = vld [vmem:[%s29 + $0xf0] sm:$0xf]
    %v2079 = vld [vmem:[%s29 + $0xf4] sm:$0xf]
    %v2080 = vld [vmem:[%s29 + $0xf8] sm:$0xf]
    %v2081 = vld [vmem:[%s29 + $0xfc] sm:$0xf]
    %v2082 = vld [vmem:[%s31] sm:$0x1]
    %v2147 = vunpack.c.l.b16 %v2018
    %v2148 = vunpack.c.l.b16 %v2019
    %v2149 = vunpack.c.l.b16 %v2020
    %v2150 = vunpack.c.l.b16 %v2021
    %v2151 = vunpack.c.l.b16 %v2022
    %v2152 = vunpack.c.l.b16 %v2023
    %v2153 = vunpack.c.l.b16 %v2024
    %v2154 = vunpack.c.l.b16 %v2025
    %v2155 = vunpack.c.l.b16 %v2026
    %v2156 = vunpack.c.l.b16 %v2027
    %v2157 = vunpack.c.l.b16 %v2028
    %v2158 = vunpack.c.l.b16 %v2029
    %v2159 = vunpack.c.l.b16 %v2030
    %v2160 = vunpack.c.l.b16 %v2031
    %v2161 = vunpack.c.l.b16 %v2032
    %v2162 = vunpack.c.l.b16 %v2033
    %v2163 = vunpack.c.l.b16 %v2034
    %v2164 = vunpack.c.l.b16 %v2035
    %v2165 = vunpack.c.l.b16 %v2036
    %v2166 = vunpack.c.l.b16 %v2037
    %v2167 = vunpack.c.l.b16 %v2038
    %v2168 = vunpack.c.l.b16 %v2039
    %v2169 = vunpack.c.l.b16 %v2040
    %v2170 = vunpack.c.l.b16 %v2041
    %v2171 = vunpack.c.l.b16 %v2042
    %v2172 = vunpack.c.l.b16 %v2043
    %v2173 = vunpack.c.l.b16 %v2044
    %v2174 = vunpack.c.l.b16 %v2045
    %v2175 = vunpack.c.l.b16 %v2046
    %v2176 = vunpack.c.l.b16 %v2047
    %v2177 = vunpack.c.l.b16 %v2048
    %v2178 = vunpack.c.l.b16 %v2049
    %v2179 = vunpack.c.l.b16 %v2050
    %v2180 = vunpack.c.l.b16 %v2051
    %v2181 = vunpack.c.l.b16 %v2052
    %v2182 = vunpack.c.l.b16 %v2053
    %v2183 = vunpack.c.l.b16 %v2054
    %v2184 = vunpack.c.l.b16 %v2055
    %v2185 = vunpack.c.l.b16 %v2056
    %v2186 = vunpack.c.l.b16 %v2057
    %v2187 = vunpack.c.l.b16 %v2058
    %v2188 = vunpack.c.l.b16 %v2059
    %v2189 = vunpack.c.l.b16 %v2060
    %v2190 = vunpack.c.l.b16 %v2061
    %v2191 = vunpack.c.l.b16 %v2062
    %v2192 = vunpack.c.l.b16 %v2063
    %v2193 = vunpack.c.l.b16 %v2064
    %v2194 = vunpack.c.l.b16 %v2065
    %v2195 = vunpack.c.l.b16 %v2066
    %v2196 = vunpack.c.l.b16 %v2067
    %v2197 = vunpack.c.l.b16 %v2068
    %v2198 = vunpack.c.l.b16 %v2069
    %v2199 = vunpack.c.l.b16 %v2070
    %v2200 = vunpack.c.l.b16 %v2071
    %v2201 = vunpack.c.l.b16 %v2072
    %v2202 = vunpack.c.l.b16 %v2073
    %v2203 = vunpack.c.l.b16 %v2074
    %v2204 = vunpack.c.l.b16 %v2075
    %v2205 = vunpack.c.l.b16 %v2076
    %v2206 = vunpack.c.l.b16 %v2077
    %v2207 = vunpack.c.l.b16 %v2078
    %v2208 = vunpack.c.l.b16 %v2079
    %v2209 = vunpack.c.l.b16 %v2080
    %v2210 = vunpack.c.l.b16 %v2081
    %v2211 = vpack.c.b16 %v2148, %v2147
    %v2212 = vpack.c.b16 %v2150, %v2149
    %v2213 = vpack.c.b16 %v2152, %v2151
    %v2214 = vpack.c.b16 %v2154, %v2153
    %v2215 = vpack.c.b16 %v2156, %v2155
    %v2216 = vpack.c.b16 %v2158, %v2157
    %v2217 = vpack.c.b16 %v2160, %v2159
    %v2218 = vpack.c.b16 %v2162, %v2161
    %v2219 = vpack.c.b16 %v2164, %v2163
    %v2220 = vpack.c.b16 %v2166, %v2165
    %v2221 = vpack.c.b16 %v2168, %v2167
    %v2222 = vpack.c.b16 %v2170, %v2169
    %v2223 = vpack.c.b16 %v2172, %v2171
    %v2224 = vpack.c.b16 %v2174, %v2173
    %v2225 = vpack.c.b16 %v2176, %v2175
    %v2226 = vpack.c.b16 %v2178, %v2177
    %v2227 = vpack.c.b16 %v2180, %v2179
    %v2228 = vpack.c.b16 %v2182, %v2181
    %v2229 = vpack.c.b16 %v2184, %v2183
    %v2230 = vpack.c.b16 %v2186, %v2185
    %v2231 = vpack.c.b16 %v2188, %v2187
    %v2232 = vpack.c.b16 %v2190, %v2189
    %v2233 = vpack.c.b16 %v2192, %v2191
    %v2234 = vpack.c.b16 %v2194, %v2193
    %v2235 = vpack.c.b16 %v2196, %v2195
    %v2236 = vpack.c.b16 %v2198, %v2197
    %v2237 = vpack.c.b16 %v2200, %v2199
    %v2238 = vpack.c.b16 %v2202, %v2201
    %v2239 = vpack.c.b16 %v2204, %v2203
    %v2240 = vpack.c.b16 %v2206, %v2205
    %v2241 = vpack.c.b16 %v2208, %v2207
    %v2242 = vpack.c.b16 %v2210, %v2209
    %2275 = vmatpush.bf16.msra.mxu0 %v2218
    %2276 = vmatpush.bf16.msra.mxu0 %v2217
    %2277 = vmatpush.bf16.msra.mxu0 %v2216
    %2278 = vmatpush.bf16.msra.mxu0 %v2215
    %2279 = vmatpush.bf16.msra.mxu0 %v2214
    %2280 = vmatpush.bf16.msra.mxu0 %v2213
    %2281 = vmatpush.bf16.msra.mxu0 %v2212
    %2282 = vmatpush.bf16.msra.mxu0 %v2211
    %2283 = vmatmul.bf16.gmra.mxu0 %v1702
    %v2284 = vpop.f32.mrf.mxu0
    %v2285 = vadd.f32 %v2082, %v2284
    %v2286 = vpop.f32.mrf.mxu0
    %2287 = vdwg.mxu0
    %2288 = vmatpush.bf16.msra.mxu0 %v2226
    %2289 = vmatpush.bf16.msra.mxu0 %v2225
    %2290 = vmatpush.bf16.msra.mxu0 %v2224
    %2291 = vmatpush.bf16.msra.mxu0 %v2223
    %2292 = vmatpush.bf16.msra.mxu0 %v2222
    %2293 = vmatpush.bf16.msra.mxu0 %v2221
    %2294 = vmatpush.bf16.msra.mxu0 %v2220
    %2295 = vmatpush.bf16.msra.mxu0 %v2219
    %2296 = vmatmul.bf16.gmra.mxu0 %v1703
    %v2297 = vpop.f32.mrf.mxu0
    %v2298 = vadd.f32 %v2285, %v2297
    %v2299 = vpop.f32.mrf.mxu0
    %2300 = vdwg.mxu0
    %2301 = vmatpush.bf16.msra.mxu0 %v2234
    %2302 = vmatpush.bf16.msra.mxu0 %v2233
    %2303 = vmatpush.bf16.msra.mxu0 %v2232
    %2304 = vmatpush.bf16.msra.mxu0 %v2231
    %2305 = vmatpush.bf16.msra.mxu0 %v2230
    %2306 = vmatpush.bf16.msra.mxu0 %v2229
    %2307 = vmatpush.bf16.msra.mxu0 %v2228
    %2308 = vmatpush.bf16.msra.mxu0 %v2227
    %2309 = vmatmul.bf16.gmra.mxu0 %v1860
    %v2310 = vpop.f32.mrf.mxu0
    %v2311 = vadd.f32 %v2298, %v2310
    %v2312 = vpop.f32.mrf.mxu0
    %2313 = vdwg.mxu0
    %2314 = vmatpush.bf16.msra.mxu0 %v2242
    %2315 = vmatpush.bf16.msra.mxu0 %v2241
    %2316 = vmatpush.bf16.msra.mxu0 %v2240
    %2317 = vmatpush.bf16.msra.mxu0 %v2239
    %2318 = vmatpush.bf16.msra.mxu0 %v2238
    %2319 = vmatpush.bf16.msra.mxu0 %v2237
    %2320 = vmatpush.bf16.msra.mxu0 %v2236
    %2321 = vmatpush.bf16.msra.mxu0 %v2235
    %2322 = vmatmul.bf16.gmra.mxu0 %v1861
    %v2323 = vpop.f32.mrf.mxu0
    %v2324 = vadd.f32 %v2311, %v2323
    %v2325 = vpop.f32.mrf.mxu0
    %2326 = vdwg.mxu0
    %v2327 = vld [vmem:[%s33] sm:$0xf]
    %v2328 = vld [vmem:[%s33 + $0x4] sm:$0xf]
    %v2329 = vld [vmem:[%s33 + $0x8] sm:$0xf]
    %v2330 = vld [vmem:[%s33 + $0xc] sm:$0xf]
    %v2331 = vld [vmem:[%s33 + $0x10] sm:$0xf]
    %v2332 = vld [vmem:[%s33 + $0x14] sm:$0xf]
    %v2333 = vld [vmem:[%s33 + $0x18] sm:$0xf]
    %v2334 = vld [vmem:[%s33 + $0x1c] sm:$0xf]
    %v2335 = vld [vmem:[%s33 + $0x20] sm:$0xf]
    %v2336 = vld [vmem:[%s33 + $0x24] sm:$0xf]
    %v2337 = vld [vmem:[%s33 + $0x28] sm:$0xf]
    %v2338 = vld [vmem:[%s33 + $0x2c] sm:$0xf]
    %v2339 = vld [vmem:[%s33 + $0x30] sm:$0xf]
    %v2340 = vld [vmem:[%s33 + $0x34] sm:$0xf]
    %v2341 = vld [vmem:[%s33 + $0x38] sm:$0xf]
    %v2342 = vld [vmem:[%s33 + $0x3c] sm:$0xf]
    %v2343 = vld [vmem:[%s33 + $0x40] sm:$0xf]
    %v2344 = vld [vmem:[%s33 + $0x44] sm:$0xf]
    %v2345 = vld [vmem:[%s33 + $0x48] sm:$0xf]
    %v2346 = vld [vmem:[%s33 + $0x4c] sm:$0xf]
    %v2347 = vld [vmem:[%s33 + $0x50] sm:$0xf]
    %v2348 = vld [vmem:[%s33 + $0x54] sm:$0xf]
    %v2349 = vld [vmem:[%s33 + $0x58] sm:$0xf]
    %v2350 = vld [vmem:[%s33 + $0x5c] sm:$0xf]
    %v2351 = vld [vmem:[%s33 + $0x60] sm:$0xf]
    %v2352 = vld [vmem:[%s33 + $0x64] sm:$0xf]
    %v2353 = vld [vmem:[%s33 + $0x68] sm:$0xf]
    %v2354 = vld [vmem:[%s33 + $0x6c] sm:$0xf]
    %v2355 = vld [vmem:[%s33 + $0x70] sm:$0xf]
    %v2356 = vld [vmem:[%s33 + $0x74] sm:$0xf]
    %v2357 = vld [vmem:[%s33 + $0x78] sm:$0xf]
    %v2358 = vld [vmem:[%s33 + $0x7c] sm:$0xf]
    %v2359 = vld [vmem:[%s33 + $0x80] sm:$0xf]
    %v2360 = vld [vmem:[%s33 + $0x84] sm:$0xf]
    %v2361 = vld [vmem:[%s33 + $0x88] sm:$0xf]
    %v2362 = vld [vmem:[%s33 + $0x8c] sm:$0xf]
    %v2363 = vld [vmem:[%s33 + $0x90] sm:$0xf]
    %v2364 = vld [vmem:[%s33 + $0x94] sm:$0xf]
    %v2365 = vld [vmem:[%s33 + $0x98] sm:$0xf]
    %v2366 = vld [vmem:[%s33 + $0x9c] sm:$0xf]
    %v2367 = vld [vmem:[%s33 + $0xa0] sm:$0xf]
    %v2368 = vld [vmem:[%s33 + $0xa4] sm:$0xf]
    %v2369 = vld [vmem:[%s33 + $0xa8] sm:$0xf]
    %v2370 = vld [vmem:[%s33 + $0xac] sm:$0xf]
    %v2371 = vld [vmem:[%s33 + $0xb0] sm:$0xf]
    %v2372 = vld [vmem:[%s33 + $0xb4] sm:$0xf]
    %v2373 = vld [vmem:[%s33 + $0xb8] sm:$0xf]
    %v2374 = vld [vmem:[%s33 + $0xbc] sm:$0xf]
    %v2375 = vld [vmem:[%s33 + $0xc0] sm:$0xf]
    %v2376 = vld [vmem:[%s33 + $0xc4] sm:$0xf]
    %v2377 = vld [vmem:[%s33 + $0xc8] sm:$0xf]
    %v2378 = vld [vmem:[%s33 + $0xcc] sm:$0xf]
    %v2379 = vld [vmem:[%s33 + $0xd0] sm:$0xf]
    %v2380 = vld [vmem:[%s33 + $0xd4] sm:$0xf]
    %v2381 = vld [vmem:[%s33 + $0xd8] sm:$0xf]
    %v2382 = vld [vmem:[%s33 + $0xdc] sm:$0xf]
    %v2383 = vld [vmem:[%s33 + $0xe0] sm:$0xf]
    %v2384 = vld [vmem:[%s33 + $0xe4] sm:$0xf]
    %v2385 = vld [vmem:[%s33 + $0xe8] sm:$0xf]
    %v2386 = vld [vmem:[%s33 + $0xec] sm:$0xf]
    %v2387 = vld [vmem:[%s33 + $0xf0] sm:$0xf]
    %v2388 = vld [vmem:[%s33 + $0xf4] sm:$0xf]
    %v2389 = vld [vmem:[%s33 + $0xf8] sm:$0xf]
    %v2390 = vld [vmem:[%s33 + $0xfc] sm:$0xf]
    %v2391 = vld [vmem:[%s35] sm:$0x1]
    %v2456 = vunpack.c.l.b16 %v2327
    %v2457 = vunpack.c.l.b16 %v2328
    %v2458 = vunpack.c.l.b16 %v2329
    %v2459 = vunpack.c.l.b16 %v2330
    %v2460 = vunpack.c.l.b16 %v2331
    %v2461 = vunpack.c.l.b16 %v2332
    %v2462 = vunpack.c.l.b16 %v2333
    %v2463 = vunpack.c.l.b16 %v2334
    %v2464 = vunpack.c.l.b16 %v2335
    %v2465 = vunpack.c.l.b16 %v2336
    %v2466 = vunpack.c.l.b16 %v2337
    %v2467 = vunpack.c.l.b16 %v2338
    %v2468 = vunpack.c.l.b16 %v2339
    %v2469 = vunpack.c.l.b16 %v2340
    %v2470 = vunpack.c.l.b16 %v2341
    %v2471 = vunpack.c.l.b16 %v2342
    %v2472 = vunpack.c.l.b16 %v2343
    %v2473 = vunpack.c.l.b16 %v2344
    %v2474 = vunpack.c.l.b16 %v2345
    %v2475 = vunpack.c.l.b16 %v2346
    %v2476 = vunpack.c.l.b16 %v2347
    %v2477 = vunpack.c.l.b16 %v2348
    %v2478 = vunpack.c.l.b16 %v2349
    %v2479 = vunpack.c.l.b16 %v2350
    %v2480 = vunpack.c.l.b16 %v2351
    %v2481 = vunpack.c.l.b16 %v2352
    %v2482 = vunpack.c.l.b16 %v2353
    %v2483 = vunpack.c.l.b16 %v2354
    %v2484 = vunpack.c.l.b16 %v2355
    %v2485 = vunpack.c.l.b16 %v2356
    %v2486 = vunpack.c.l.b16 %v2357
    %v2487 = vunpack.c.l.b16 %v2358
    %v2488 = vunpack.c.l.b16 %v2359
    %v2489 = vunpack.c.l.b16 %v2360
    %v2490 = vunpack.c.l.b16 %v2361
    %v2491 = vunpack.c.l.b16 %v2362
    %v2492 = vunpack.c.l.b16 %v2363
    %v2493 = vunpack.c.l.b16 %v2364
    %v2494 = vunpack.c.l.b16 %v2365
    %v2495 = vunpack.c.l.b16 %v2366
    %v2496 = vunpack.c.l.b16 %v2367
    %v2497 = vunpack.c.l.b16 %v2368
    %v2498 = vunpack.c.l.b16 %v2369
    %v2499 = vunpack.c.l.b16 %v2370
    %v2500 = vunpack.c.l.b16 %v2371
    %v2501 = vunpack.c.l.b16 %v2372
    %v2502 = vunpack.c.l.b16 %v2373
    %v2503 = vunpack.c.l.b16 %v2374
    %v2504 = vunpack.c.l.b16 %v2375
    %v2505 = vunpack.c.l.b16 %v2376
    %v2506 = vunpack.c.l.b16 %v2377
    %v2507 = vunpack.c.l.b16 %v2378
    %v2508 = vunpack.c.l.b16 %v2379
    %v2509 = vunpack.c.l.b16 %v2380
    %v2510 = vunpack.c.l.b16 %v2381
    %v2511 = vunpack.c.l.b16 %v2382
    %v2512 = vunpack.c.l.b16 %v2383
    %v2513 = vunpack.c.l.b16 %v2384
    %v2514 = vunpack.c.l.b16 %v2385
    %v2515 = vunpack.c.l.b16 %v2386
    %v2516 = vunpack.c.l.b16 %v2387
    %v2517 = vunpack.c.l.b16 %v2388
    %v2518 = vunpack.c.l.b16 %v2389
    %v2519 = vunpack.c.l.b16 %v2390
    %v2520 = vpack.c.b16 %v2457, %v2456
    %v2521 = vpack.c.b16 %v2459, %v2458
    %v2522 = vpack.c.b16 %v2461, %v2460
    %v2523 = vpack.c.b16 %v2463, %v2462
    %v2524 = vpack.c.b16 %v2465, %v2464
    %v2525 = vpack.c.b16 %v2467, %v2466
    %v2526 = vpack.c.b16 %v2469, %v2468
    %v2527 = vpack.c.b16 %v2471, %v2470
    %v2528 = vpack.c.b16 %v2473, %v2472
    %v2529 = vpack.c.b16 %v2475, %v2474
    %v2530 = vpack.c.b16 %v2477, %v2476
    %v2531 = vpack.c.b16 %v2479, %v2478
    %v2532 = vpack.c.b16 %v2481, %v2480
    %v2533 = vpack.c.b16 %v2483, %v2482
    %v2534 = vpack.c.b16 %v2485, %v2484
    %v2535 = vpack.c.b16 %v2487, %v2486
    %v2536 = vpack.c.b16 %v2489, %v2488
    %v2537 = vpack.c.b16 %v2491, %v2490
    %v2538 = vpack.c.b16 %v2493, %v2492
    %v2539 = vpack.c.b16 %v2495, %v2494
    %v2540 = vpack.c.b16 %v2497, %v2496
    %v2541 = vpack.c.b16 %v2499, %v2498
    %v2542 = vpack.c.b16 %v2501, %v2500
    %v2543 = vpack.c.b16 %v2503, %v2502
    %v2544 = vpack.c.b16 %v2505, %v2504
    %v2545 = vpack.c.b16 %v2507, %v2506
    %v2546 = vpack.c.b16 %v2509, %v2508
    %v2547 = vpack.c.b16 %v2511, %v2510
    %v2548 = vpack.c.b16 %v2513, %v2512
    %v2549 = vpack.c.b16 %v2515, %v2514
    %v2550 = vpack.c.b16 %v2517, %v2516
    %v2551 = vpack.c.b16 %v2519, %v2518
    %2584 = vmatpush.bf16.msra.mxu0 %v2527
    %2585 = vmatpush.bf16.msra.mxu0 %v2526
    %2586 = vmatpush.bf16.msra.mxu0 %v2525
    %2587 = vmatpush.bf16.msra.mxu0 %v2524
    %2588 = vmatpush.bf16.msra.mxu0 %v2523
    %2589 = vmatpush.bf16.msra.mxu0 %v2522
    %2590 = vmatpush.bf16.msra.mxu0 %v2521
    %2591 = vmatpush.bf16.msra.mxu0 %v2520
    %2592 = vmatmul.bf16.gmra.mxu0 %v1702
    %v2593 = vpop.f32.mrf.mxu0
    %v2594 = vadd.f32 %v2391, %v2593
    %v2595 = vpop.f32.mrf.mxu0
    %2596 = vdwg.mxu0
    %2597 = vmatpush.bf16.msra.mxu0 %v2535
    %2598 = vmatpush.bf16.msra.mxu0 %v2534
    %2599 = vmatpush.bf16.msra.mxu0 %v2533
    %2600 = vmatpush.bf16.msra.mxu0 %v2532
    %2601 = vmatpush.bf16.msra.mxu0 %v2531
    %2602 = vmatpush.bf16.msra.mxu0 %v2530
    %2603 = vmatpush.bf16.msra.mxu0 %v2529
    %2604 = vmatpush.bf16.msra.mxu0 %v2528
    %2605 = vmatmul.bf16.gmra.mxu0 %v1703
    %v2606 = vpop.f32.mrf.mxu0
    %v2607 = vadd.f32 %v2594, %v2606
    %v2608 = vpop.f32.mrf.mxu0
    %2609 = vdwg.mxu0
    %2610 = vmatpush.bf16.msra.mxu0 %v2543
    %2611 = vmatpush.bf16.msra.mxu0 %v2542
    %2612 = vmatpush.bf16.msra.mxu0 %v2541
    %2613 = vmatpush.bf16.msra.mxu0 %v2540
    %2614 = vmatpush.bf16.msra.mxu0 %v2539
    %2615 = vmatpush.bf16.msra.mxu0 %v2538
    %2616 = vmatpush.bf16.msra.mxu0 %v2537
    %2617 = vmatpush.bf16.msra.mxu0 %v2536
    %2618 = vmatmul.bf16.gmra.mxu0 %v1860
    %v2619 = vpop.f32.mrf.mxu0
    %v2620 = vadd.f32 %v2607, %v2619
    %v2621 = vpop.f32.mrf.mxu0
    %2622 = vdwg.mxu0
    %2623 = vmatpush.bf16.msra.mxu0 %v2551
    %2624 = vmatpush.bf16.msra.mxu0 %v2550
    %2625 = vmatpush.bf16.msra.mxu0 %v2549
    %2626 = vmatpush.bf16.msra.mxu0 %v2548
    %2627 = vmatpush.bf16.msra.mxu0 %v2547
    %2628 = vmatpush.bf16.msra.mxu0 %v2546
    %2629 = vmatpush.bf16.msra.mxu0 %v2545
    %2630 = vmatpush.bf16.msra.mxu0 %v2544
    %2631 = vmatmul.bf16.gmra.mxu0 %v1861
    %v2632 = vpop.f32.mrf.mxu0
    %v2633 = vadd.f32 %v2620, %v2632
    %v2634 = vpop.f32.mrf.mxu0
    %2635 = vdwg.mxu0
    %v2636 = vxor.u32 %v2324, 2147483648
    %v2637 = vmul.f32 %v2636, 1.442695
    %v2638 = vpow.pop %v2637
    %v2639 = vadd.f32 %v2638, 1.0
    %v2640 = vrcp.pop %v2639
    %v2641 = vmul.f32 %v2639, %v2640
    %v2642 = vsub.f32 1.0, %v2641
    %v2643 = vmul.f32 %v2640, %v2642
    %v2644 = vadd.f32 %v2640, %v2643
    %vm2645 = vweird.f32 %v2639
    %vm2646 = vweird.f32 %v2640
    %vm2647 = vmor %vm2645, %vm2646
    %v2648 = vsel %vm2647, %v2640, %v2644
    %v2649 = vand.u32 2147483647, %v2639
    %vm2650 = vcmp.eq.f32.partialorder %v2649, 8.507059e+37
    %v2651 = vand.u32 %v2639, 2147483648
    %v2652 = vor.u32 1.1754944e-38, %v2651
    %v2653 = vsel %vm2650, %v2652, %v2648
    %v2654 = vmul.f32 1.0, %v2653
    %v2655 = vmul.f32 %v2654, %v1859
    %v2656 = vpack.c.bf16 %v2655, %v2655
    %v2657 = vld [vmem:[%s37] sm:$0xf]
    %v2658 = vld [vmem:[%s37 + $0x4] sm:$0xf]
    %v2659 = vld [vmem:[%s37 + $0x8] sm:$0xf]
    %v2660 = vld [vmem:[%s37 + $0xc] sm:$0xf]
    %v2661 = vld [vmem:[%s39] sm:$0x1]
    %v2666 = vunpack.c.l.b16 %v2657
    %v2667 = vunpack.c.l.b16 %v2658
    %v2668 = vunpack.c.l.b16 %v2659
    %v2669 = vunpack.c.l.b16 %v2660
    %v2670 = vpack.c.b16 %v2667, %v2666
    %v2671 = vpack.c.b16 %v2669, %v2668
    %vm2674 = vcmask 261120
    %v2676 = vsel %vm2674, %v2656, 0
    %2678 = vmatpush.bf16.msra.mxu0 0
    %2679 = vmatpush.bf16.msra.mxu0 0
    %2680 = vmatpush.bf16.msra.mxu0 0
    %2681 = vmatpush.bf16.msra.mxu0 0
    %2682 = vmatpush.bf16.msra.mxu0 0
    %2683 = vmatpush.bf16.msra.mxu0 0
    %2684 = vmatpush.bf16.msra.mxu0 %v2671
    %2685 = vmatpush.bf16.msra.mxu0 %v2670
    %2686 = vmatmul.bf16.gmra.mxu0 %v2676
    %v2687 = vpop.f32.mrf.mxu0
    %v2688 = vadd.f32 %v2661, %v2687
    %v2689 = vpop.f32.mrf.mxu0
    %2690 = vdwg.mxu0
    %v2691 = vmax.f32 %v2688, 0.0
    %v2692 = vxor.u32 %v2633, 2147483648
    %v2693 = vmul.f32 %v2692, 1.442695
    %v2694 = vpow.pop %v2693
    %v2695 = vadd.f32 %v2694, 1.0
    %v2696 = vrcp.pop %v2695
    %v2697 = vmul.f32 %v2695, %v2696
    %v2698 = vsub.f32 1.0, %v2697
    %v2699 = vmul.f32 %v2696, %v2698
    %v2700 = vadd.f32 %v2696, %v2699
    %vm2701 = vweird.f32 %v2695
    %vm2702 = vweird.f32 %v2696
    %vm2703 = vmor %vm2701, %vm2702
    %v2704 = vsel %vm2703, %v2696, %v2700
    %v2705 = vand.u32 2147483647, %v2695
    %vm2706 = vcmp.eq.f32.partialorder %v2705, 8.507059e+37
    %v2707 = vand.u32 %v2695, 2147483648
    %v2708 = vor.u32 1.1754944e-38, %v2707
    %v2709 = vsel %vm2706, %v2708, %v2704
    %v2710 = vmul.f32 1.0, %v2709
    %v2711 = vmul.f32 %v2710, %v2017
    %v2712 = vpack.c.bf16 %v2711, %v2711
    %v2713 = vld [vmem:[%s41] sm:$0xf]
    %v2714 = vld [vmem:[%s41 + $0x4] sm:$0xf]
    %v2715 = vld [vmem:[%s41 + $0x8] sm:$0xf]
    %v2716 = vld [vmem:[%s41 + $0xc] sm:$0xf]
    %v2717 = vld [vmem:[%s43] sm:$0x1]
    %v2722 = vunpack.c.l.b16 %v2713
    %v2723 = vunpack.c.l.b16 %v2714
    %v2724 = vunpack.c.l.b16 %v2715
    %v2725 = vunpack.c.l.b16 %v2716
    %v2726 = vpack.c.b16 %v2723, %v2722
    %v2727 = vpack.c.b16 %v2725, %v2724
    %v2731 = vsel %vm2674, %v2712, 0
    %2733 = vmatpush.bf16.msra.mxu0 0
    %2734 = vmatpush.bf16.msra.mxu0 0
    %2735 = vmatpush.bf16.msra.mxu0 0
    %2736 = vmatpush.bf16.msra.mxu0 0
    %2737 = vmatpush.bf16.msra.mxu0 0
    %2738 = vmatpush.bf16.msra.mxu0 0
    %2739 = vmatpush.bf16.msra.mxu0 %v2727
    %2740 = vmatpush.bf16.msra.mxu0 %v2726
    %2741 = vmatmul.bf16.gmra.mxu0 %v2731
    %v2742 = vpop.f32.mrf.mxu0
    %v2743 = vadd.f32 %v2717, %v2742
    %v2744 = vpop.f32.mrf.mxu0
    %2745 = vdwg.mxu0
    %v2746 = vmax.f32 %v2743, 0.0
    %v2747 = vpack.c.bf16 %v2691, %v2691
    %v2748 = vld [vmem:[%s45] sm:$0xff]
    %v2749 = vld [vmem:[%s45 + $0x8] sm:$0xff]
    %v2750 = vld [vmem:[%s45 + $0x10] sm:$0xff]
    %v2751 = vld [vmem:[%s45 + $0x18] sm:$0xff]
    %v2752 = vpack.c.bf16 %v2746, %v2746
    %v2753 = vld [vmem:[%s47] sm:$0xff]
    %v2754 = vld [vmem:[%s47 + $0x8] sm:$0xff]
    %v2755 = vld [vmem:[%s47 + $0x10] sm:$0xff]
    %v2756 = vld [vmem:[%s47 + $0x18] sm:$0xff]
    %v2761 = vunpack.c.l.b16 %v2753
    %v2762 = vunpack.c.h.b16 %v2753
    %v2763 = vunpack.c.l.b16 %v2754
    %v2764 = vunpack.c.h.b16 %v2754
    %v2765 = vunpack.c.l.b16 %v2755
    %v2766 = vunpack.c.h.b16 %v2755
    %v2767 = vunpack.c.l.b16 %v2756
    %v2768 = vunpack.c.h.b16 %v2756
    %v2769 = vpack.c.b16 %v2763, %v2761
    %v2770 = vpack.c.b16 %v2764, %v2762
    %v2771 = vpack.c.b16 %v2767, %v2765
    %v2772 = vpack.c.b16 %v2768, %v2766
    %v2778 = vsel %vm2674, %v2752, 0
    %2780 = vmatpush.bf16.msra.mxu0 0
    %2781 = vmatpush.bf16.msra.mxu0 0
    %2782 = vmatpush.bf16.msra.mxu0 0
    %2783 = vmatpush.bf16.msra.mxu0 0
    %2784 = vmatpush.bf16.msra.mxu0 0
    %2785 = vmatpush.bf16.msra.mxu0 0
    %2786 = vmatpush.bf16.msra.mxu0 %v2771
    %2787 = vmatpush.bf16.msra.mxu0 %v2769
    %2788 = vmatmul.bf16.gmra.mxu0 %v2778
    %v2789 = vpop.f32.mrf.mxu0
    %v2790 = vadd.f32 0.0, %v2789
    %v2791 = vpop.f32.mrf.mxu0
    %2792 = vdwg.mxu0
    %2793 = vmatpush.bf16.msra.mxu0 0
    %2794 = vmatpush.bf16.msra.mxu0 0
    %2795 = vmatpush.bf16.msra.mxu0 0
    %2796 = vmatpush.bf16.msra.mxu0 0
    %2797 = vmatpush.bf16.msra.mxu0 0
    %2798 = vmatpush.bf16.msra.mxu0 0
    %2799 = vmatpush.bf16.msra.mxu0 %v2772
    %2800 = vmatpush.bf16.msra.mxu0 %v2770
    %2801 = vmatmul.bf16.gmra.mxu0 %v2778
    %v2802 = vpop.f32.mrf.mxu0
    %v2803 = vadd.f32 0.0, %v2802
    %v2804 = vpop.f32.mrf.mxu0
    %2805 = vdwg.mxu0
    %v2810 = vunpack.c.l.b16 %v2748
    %v2811 = vunpack.c.h.b16 %v2748
    %v2812 = vunpack.c.l.b16 %v2749
    %v2813 = vunpack.c.h.b16 %v2749
    %v2814 = vunpack.c.l.b16 %v2750
    %v2815 = vunpack.c.h.b16 %v2750
    %v2816 = vunpack.c.l.b16 %v2751
    %v2817 = vunpack.c.h.b16 %v2751
    %v2818 = vpack.c.b16 %v2812, %v2810
    %v2819 = vpack.c.b16 %v2813, %v2811
    %v2820 = vpack.c.b16 %v2816, %v2814
    %v2821 = vpack.c.b16 %v2817, %v2815
    %v2827 = vsel %vm2674, %v2747, 0
    %2829 = vmatpush.bf16.msra.mxu0 0
    %2830 = vmatpush.bf16.msra.mxu0 0
    %2831 = vmatpush.bf16.msra.mxu0 0
    %2832 = vmatpush.bf16.msra.mxu0 0
    %2833 = vmatpush.bf16.msra.mxu0 0
    %2834 = vmatpush.bf16.msra.mxu0 0
    %2835 = vmatpush.bf16.msra.mxu0 %v2820
    %2836 = vmatpush.bf16.msra.mxu0 %v2818
    %2837 = vmatmul.bf16.gmra.mxu0 %v2827
    %v2838 = vpop.f32.mrf.mxu0
    %v2839 = vadd.f32 %v2790, %v2838
    %v2840 = vpop.f32.mrf.mxu0
    %2841 = vdwg.mxu0
    %2842 = vmatpush.bf16.msra.mxu0 0
    %2843 = vmatpush.bf16.msra.mxu0 0
    %2844 = vmatpush.bf16.msra.mxu0 0
    %2845 = vmatpush.bf16.msra.mxu0 0
    %2846 = vmatpush.bf16.msra.mxu0 0
    %2847 = vmatpush.bf16.msra.mxu0 0
    %2848 = vmatpush.bf16.msra.mxu0 %v2821
    %2849 = vmatpush.bf16.msra.mxu0 %v2819
    %2850 = vmatmul.bf16.gmra.mxu0 %v2827
    %v2851 = vpop.f32.mrf.mxu0
    %v2852 = vadd.f32 %v2803, %v2851
    %v2853 = vpop.f32.mrf.mxu0
    %2854 = vdwg.mxu0
    %v2855 = vld [vmem:[%s49] sm:$0x3]
    %v2857 = vperm.slane %v2855, 0
    %v2858 = vperm.slane %v2855, 1
    %v2861 = vadd.f32 %v2839, %v2857
    %v2862 = vadd.f32 %v2852, %v2858
    %v2863 = vld [vmem:[%s53] sm:$0x3]
    %v2865 = vperm.slane %v2863, 0
    %v2866 = vperm.slane %v2863, 1
    %v2869 = vadd.f32 %v2861, %v2865
    %v2870 = vadd.f32 %v2862, %v2866
    %v2871 = vld [vmem:[#allocation6] sm:$0xff]
    %v2872 = vld [vmem:[#allocation6 + $0x8] sm:$0xff]
    %v2873 = vld [vmem:[#allocation6 + $0x10] sm:$0xff]
    %v2874 = vld [vmem:[#allocation6 + $0x18] sm:$0xff]
    %v2875 = vld [vmem:[#allocation6 + $0x20] sm:$0xff]
    %v2876 = vld [vmem:[#allocation6 + $0x28] sm:$0xff]
    %v2877 = vld [vmem:[#allocation6 + $0x30] sm:$0xff]
    %v2878 = vld [vmem:[#allocation6 + $0x38] sm:$0xff]
    %v2879 = vld [vmem:[#allocation6 + $0x40] sm:$0xff]
    %v2880 = vld [vmem:[#allocation6 + $0x48] sm:$0xff]
    %v2881 = vld [vmem:[#allocation6 + $0x50] sm:$0xff]
    %v2882 = vld [vmem:[#allocation6 + $0x58] sm:$0xff]
    %v2883 = vld [vmem:[#allocation6 + $0x60] sm:$0xff]
    %v2884 = vld [vmem:[#allocation6 + $0x68] sm:$0xff]
    %v2885 = vld [vmem:[#allocation6 + $0x70] sm:$0xff]
    %v2886 = vld [vmem:[#allocation6 + $0x78] sm:$0xff]
    %v2887 = vld [vmem:[#allocation6 + $0x80] sm:$0xff]
    %v2888 = vld [vmem:[#allocation6 + $0x88] sm:$0xff]
    %v2889 = vld [vmem:[#allocation6 + $0x90] sm:$0xff]
    %v2890 = vld [vmem:[#allocation6 + $0x98] sm:$0xff]
    %v2891 = vld [vmem:[#allocation6 + $0xa0] sm:$0xff]
    %v2892 = vld [vmem:[#allocation6 + $0xa8] sm:$0xff]
    %v2893 = vld [vmem:[#allocation6 + $0xb0] sm:$0xff]
    %v2894 = vld [vmem:[#allocation6 + $0xb8] sm:$0xff]
    %v2895 = vld [vmem:[#allocation6 + $0xc0] sm:$0xff]
    %v2896 = vld [vmem:[#allocation6 + $0xc8] sm:$0xff]
    %v2897 = vld [vmem:[#allocation6 + $0xd0] sm:$0xff]
    %v2898 = vld [vmem:[#allocation6 + $0xd8] sm:$0xff]
    %v2899 = vld [vmem:[#allocation6 + $0xe0] sm:$0xff]
    %v2900 = vld [vmem:[#allocation6 + $0xe8] sm:$0xff]
    %v2901 = vld [vmem:[#allocation6 + $0xf0] sm:$0xff]
    %v2902 = vld [vmem:[#allocation6 + $0xf8] sm:$0xff]
    %v2903 = vld [vmem:[#allocation6 + $0x100] sm:$0xff]
    %v2904 = vld [vmem:[#allocation6 + $0x108] sm:$0xff]
    %v2905 = vld [vmem:[#allocation6 + $0x110] sm:$0xff]
    %v2906 = vld [vmem:[#allocation6 + $0x118] sm:$0xff]
    %v2907 = vld [vmem:[#allocation6 + $0x120] sm:$0xff]
    %v2908 = vld [vmem:[#allocation6 + $0x128] sm:$0xff]
    %v2909 = vld [vmem:[#allocation6 + $0x130] sm:$0xff]
    %v2910 = vld [vmem:[#allocation6 + $0x138] sm:$0xff]
    %v2911 = vld [vmem:[#allocation6 + $0x140] sm:$0xff]
    %v2912 = vld [vmem:[#allocation6 + $0x148] sm:$0xff]
    %v2913 = vld [vmem:[#allocation6 + $0x150] sm:$0xff]
    %v2914 = vld [vmem:[#allocation6 + $0x158] sm:$0xff]
    %v2915 = vld [vmem:[#allocation6 + $0x160] sm:$0xff]
    %v2916 = vld [vmem:[#allocation6 + $0x168] sm:$0xff]
    %v2917 = vld [vmem:[#allocation6 + $0x170] sm:$0xff]
    %v2918 = vld [vmem:[#allocation6 + $0x178] sm:$0xff]
    %v2919 = vld [vmem:[#allocation6 + $0x180] sm:$0xff]
    %v2920 = vld [vmem:[#allocation6 + $0x188] sm:$0xff]
    %v2921 = vld [vmem:[#allocation6 + $0x190] sm:$0xff]
    %v2922 = vld [vmem:[#allocation6 + $0x198] sm:$0xff]
    %v2923 = vld [vmem:[#allocation6 + $0x1a0] sm:$0xff]
    %v2924 = vld [vmem:[#allocation6 + $0x1a8] sm:$0xff]
    %v2925 = vld [vmem:[#allocation6 + $0x1b0] sm:$0xff]
    %v2926 = vld [vmem:[#allocation6 + $0x1b8] sm:$0xff]
    %v2927 = vld [vmem:[#allocation6 + $0x1c0] sm:$0xff]
    %v2928 = vld [vmem:[#allocation6 + $0x1c8] sm:$0xff]
    %v2929 = vld [vmem:[#allocation6 + $0x1d0] sm:$0xff]
    %v2930 = vld [vmem:[#allocation6 + $0x1d8] sm:$0xff]
    %v2931 = vld [vmem:[#allocation6 + $0x1e0] sm:$0xff]
    %v2932 = vld [vmem:[#allocation6 + $0x1e8] sm:$0xff]
    %v2933 = vld [vmem:[#allocation6 + $0x1f0] sm:$0xff]
    %v2934 = vld [vmem:[#allocation6 + $0x1f8] sm:$0xff]
    %v2935 = vld [vmem:[#allocation6 + $0x200] sm:$0xff]
    %v2936 = vld [vmem:[#allocation6 + $0x208] sm:$0xff]
    %v2937 = vld [vmem:[#allocation6 + $0x210] sm:$0xff]
    %v2938 = vld [vmem:[#allocation6 + $0x218] sm:$0xff]
    %v2939 = vld [vmem:[#allocation6 + $0x220] sm:$0xff]
    %v2940 = vld [vmem:[#allocation6 + $0x228] sm:$0xff]
    %v2941 = vld [vmem:[#allocation6 + $0x230] sm:$0xff]
    %v2942 = vld [vmem:[#allocation6 + $0x238] sm:$0xff]
    %v2943 = vld [vmem:[#allocation6 + $0x240] sm:$0xff]
    %v2944 = vld [vmem:[#allocation6 + $0x248] sm:$0xff]
    %v2945 = vld [vmem:[#allocation6 + $0x250] sm:$0xff]
    %v2946 = vld [vmem:[#allocation6 + $0x258] sm:$0xff]
    %v2947 = vld [vmem:[#allocation6 + $0x260] sm:$0xff]
    %v2948 = vld [vmem:[#allocation6 + $0x268] sm:$0xff]
    %v2949 = vld [vmem:[#allocation6 + $0x270] sm:$0xff]
    %v2950 = vld [vmem:[#allocation6 + $0x278] sm:$0xff]
    %v2951 = vld [vmem:[#allocation6 + $0x280] sm:$0xff]
    %v2952 = vld [vmem:[#allocation6 + $0x288] sm:$0xff]
    %v2953 = vld [vmem:[#allocation6 + $0x290] sm:$0xff]
    %v2954 = vld [vmem:[#allocation6 + $0x298] sm:$0xff]
    %v2955 = vld [vmem:[#allocation6 + $0x2a0] sm:$0xff]
    %v2956 = vld [vmem:[#allocation6 + $0x2a8] sm:$0xff]
    %v2957 = vld [vmem:[#allocation6 + $0x2b0] sm:$0xff]
    %v2958 = vld [vmem:[#allocation6 + $0x2b8] sm:$0xff]
    %v2959 = vld [vmem:[#allocation6 + $0x2c0] sm:$0xff]
    %v2960 = vld [vmem:[#allocation6 + $0x2c8] sm:$0xff]
    %v2961 = vld [vmem:[#allocation6 + $0x2d0] sm:$0xff]
    %v2962 = vld [vmem:[#allocation6 + $0x2d8] sm:$0xff]
    %v2963 = vld [vmem:[#allocation6 + $0x2e0] sm:$0xff]
    %v2964 = vld [vmem:[#allocation6 + $0x2e8] sm:$0xff]
    %v2965 = vld [vmem:[#allocation6 + $0x2f0] sm:$0xff]
    %v2966 = vld [vmem:[#allocation6 + $0x2f8] sm:$0xff]
    %v2967 = vld [vmem:[#allocation6 + $0x300] sm:$0xff]
    %v2968 = vld [vmem:[#allocation6 + $0x308] sm:$0xff]
    %v2969 = vld [vmem:[#allocation6 + $0x310] sm:$0xff]
    %v2970 = vld [vmem:[#allocation6 + $0x318] sm:$0xff]
    %v2971 = vld [vmem:[#allocation6 + $0x320] sm:$0xff]
    %v2972 = vld [vmem:[#allocation6 + $0x328] sm:$0xff]
    %v2973 = vld [vmem:[#allocation6 + $0x330] sm:$0xff]
    %v2974 = vld [vmem:[#allocation6 + $0x338] sm:$0xff]
    %v2975 = vld [vmem:[#allocation6 + $0x340] sm:$0xff]
    %v2976 = vld [vmem:[#allocation6 + $0x348] sm:$0xff]
    %v2977 = vld [vmem:[#allocation6 + $0x350] sm:$0xff]
    %v2978 = vld [vmem:[#allocation6 + $0x358] sm:$0xff]
    %v2979 = vld [vmem:[#allocation6 + $0x360] sm:$0xff]
    %v2980 = vld [vmem:[#allocation6 + $0x368] sm:$0xff]
    %v2981 = vld [vmem:[#allocation6 + $0x370] sm:$0xff]
    %v2982 = vld [vmem:[#allocation6 + $0x378] sm:$0xff]
    %v2983 = vld [vmem:[#allocation6 + $0x380] sm:$0xff]
    %v2984 = vld [vmem:[#allocation6 + $0x388] sm:$0xff]
    %v2985 = vld [vmem:[#allocation6 + $0x390] sm:$0xff]
    %v2986 = vld [vmem:[#allocation6 + $0x398] sm:$0xff]
    %v2987 = vld [vmem:[#allocation6 + $0x3a0] sm:$0xff]
    %v2988 = vld [vmem:[#allocation6 + $0x3a8] sm:$0xff]
    %v2989 = vld [vmem:[#allocation6 + $0x3b0] sm:$0xff]
    %v2990 = vld [vmem:[#allocation6 + $0x3b8] sm:$0xff]
    %v2991 = vld [vmem:[#allocation6 + $0x3c0] sm:$0xff]
    %v2992 = vld [vmem:[#allocation6 + $0x3c8] sm:$0xff]
    %v2993 = vld [vmem:[#allocation6 + $0x3d0] sm:$0xff]
    %v2994 = vld [vmem:[#allocation6 + $0x3d8] sm:$0xff]
    %v2995 = vld [vmem:[#allocation6 + $0x3e0] sm:$0xff]
    %v2996 = vld [vmem:[#allocation6 + $0x3e8] sm:$0xff]
    %v2997 = vld [vmem:[#allocation6 + $0x3f0] sm:$0xff]
    %v2998 = vld [vmem:[#allocation6 + $0x3f8] sm:$0xff]
    %v3127 = vunpack.c.l.b16 %v2871
    %v3128 = vunpack.c.h.b16 %v2871
    %v3129 = vunpack.c.l.b16 %v2872
    %v3130 = vunpack.c.h.b16 %v2872
    %v3131 = vunpack.c.l.b16 %v2873
    %v3132 = vunpack.c.h.b16 %v2873
    %v3133 = vunpack.c.l.b16 %v2874
    %v3134 = vunpack.c.h.b16 %v2874
    %v3135 = vunpack.c.l.b16 %v2875
    %v3136 = vunpack.c.h.b16 %v2875
    %v3137 = vunpack.c.l.b16 %v2876
    %v3138 = vunpack.c.h.b16 %v2876
    %v3139 = vunpack.c.l.b16 %v2877
    %v3140 = vunpack.c.h.b16 %v2877
    %v3141 = vunpack.c.l.b16 %v2878
    %v3142 = vunpack.c.h.b16 %v2878
    %v3143 = vunpack.c.l.b16 %v2879
    %v3144 = vunpack.c.h.b16 %v2879
    %v3145 = vunpack.c.l.b16 %v2880
    %v3146 = vunpack.c.h.b16 %v2880
    %v3147 = vunpack.c.l.b16 %v2881
    %v3148 = vunpack.c.h.b16 %v2881
    %v3149 = vunpack.c.l.b16 %v2882
    %v3150 = vunpack.c.h.b16 %v2882
    %v3151 = vunpack.c.l.b16 %v2883
    %v3152 = vunpack.c.h.b16 %v2883
    %v3153 = vunpack.c.l.b16 %v2884
    %v3154 = vunpack.c.h.b16 %v2884
    %v3155 = vunpack.c.l.b16 %v2885
    %v3156 = vunpack.c.h.b16 %v2885
    %v3157 = vunpack.c.l.b16 %v2886
    %v3158 = vunpack.c.h.b16 %v2886
    %v3159 = vunpack.c.l.b16 %v2887
    %v3160 = vunpack.c.h.b16 %v2887
    %v3161 = vunpack.c.l.b16 %v2888
    %v3162 = vunpack.c.h.b16 %v2888
    %v3163 = vunpack.c.l.b16 %v2889
    %v3164 = vunpack.c.h.b16 %v2889
    %v3165 = vunpack.c.l.b16 %v2890
    %v3166 = vunpack.c.h.b16 %v2890
    %v3167 = vunpack.c.l.b16 %v2891
    %v3168 = vunpack.c.h.b16 %v2891
    %v3169 = vunpack.c.l.b16 %v2892
    %v3170 = vunpack.c.h.b16 %v2892
    %v3171 = vunpack.c.l.b16 %v2893
    %v3172 = vunpack.c.h.b16 %v2893
    %v3173 = vunpack.c.l.b16 %v2894
    %v3174 = vunpack.c.h.b16 %v2894
    %v3175 = vunpack.c.l.b16 %v2895
    %v3176 = vunpack.c.h.b16 %v2895
    %v3177 = vunpack.c.l.b16 %v2896
    %v3178 = vunpack.c.h.b16 %v2896
    %v3179 = vunpack.c.l.b16 %v2897
    %v3180 = vunpack.c.h.b16 %v2897
    %v3181 = vunpack.c.l.b16 %v2898
    %v3182 = vunpack.c.h.b16 %v2898
    %v3183 = vunpack.c.l.b16 %v2899
    %v3184 = vunpack.c.h.b16 %v2899
    %v3185 = vunpack.c.l.b16 %v2900
    %v3186 = vunpack.c.h.b16 %v2900
    %v3187 = vunpack.c.l.b16 %v2901
    %v3188 = vunpack.c.h.b16 %v2901
    %v3189 = vunpack.c.l.b16 %v2902
    %v3190 = vunpack.c.h.b16 %v2902
    %v3191 = vunpack.c.l.b16 %v2903
    %v3192 = vunpack.c.h.b16 %v2903
    %v3193 = vunpack.c.l.b16 %v2904
    %v3194 = vunpack.c.h.b16 %v2904
    %v3195 = vunpack.c.l.b16 %v2905
    %v3196 = vunpack.c.h.b16 %v2905
    %v3197 = vunpack.c.l.b16 %v2906
    %v3198 = vunpack.c.h.b16 %v2906
    %v3199 = vunpack.c.l.b16 %v2907
    %v3200 = vunpack.c.h.b16 %v2907
    %v3201 = vunpack.c.l.b16 %v2908
    %v3202 = vunpack.c.h.b16 %v2908
    %v3203 = vunpack.c.l.b16 %v2909
    %v3204 = vunpack.c.h.b16 %v2909
    %v3205 = vunpack.c.l.b16 %v2910
    %v3206 = vunpack.c.h.b16 %v2910
    %v3207 = vunpack.c.l.b16 %v2911
    %v3208 = vunpack.c.h.b16 %v2911
    %v3209 = vunpack.c.l.b16 %v2912
    %v3210 = vunpack.c.h.b16 %v2912
    %v3211 = vunpack.c.l.b16 %v2913
    %v3212 = vunpack.c.h.b16 %v2913
    %v3213 = vunpack.c.l.b16 %v2914
    %v3214 = vunpack.c.h.b16 %v2914
    %v3215 = vunpack.c.l.b16 %v2915
    %v3216 = vunpack.c.h.b16 %v2915
    %v3217 = vunpack.c.l.b16 %v2916
    %v3218 = vunpack.c.h.b16 %v2916
    %v3219 = vunpack.c.l.b16 %v2917
    %v3220 = vunpack.c.h.b16 %v2917
    %v3221 = vunpack.c.l.b16 %v2918
    %v3222 = vunpack.c.h.b16 %v2918
    %v3223 = vunpack.c.l.b16 %v2919
    %v3224 = vunpack.c.h.b16 %v2919
    %v3225 = vunpack.c.l.b16 %v2920
    %v3226 = vunpack.c.h.b16 %v2920
    %v3227 = vunpack.c.l.b16 %v2921
    %v3228 = vunpack.c.h.b16 %v2921
    %v3229 = vunpack.c.l.b16 %v2922
    %v3230 = vunpack.c.h.b16 %v2922
    %v3231 = vunpack.c.l.b16 %v2923
    %v3232 = vunpack.c.h.b16 %v2923
    %v3233 = vunpack.c.l.b16 %v2924
    %v3234 = vunpack.c.h.b16 %v2924
    %v3235 = vunpack.c.l.b16 %v2925
    %v3236 = vunpack.c.h.b16 %v2925
    %v3237 = vunpack.c.l.b16 %v2926
    %v3238 = vunpack.c.h.b16 %v2926
    %v3239 = vunpack.c.l.b16 %v2927
    %v3240 = vunpack.c.h.b16 %v2927
    %v3241 = vunpack.c.l.b16 %v2928
    %v3242 = vunpack.c.h.b16 %v2928
    %v3243 = vunpack.c.l.b16 %v2929
    %v3244 = vunpack.c.h.b16 %v2929
    %v3245 = vunpack.c.l.b16 %v2930
    %v3246 = vunpack.c.h.b16 %v2930
    %v3247 = vunpack.c.l.b16 %v2931
    %v3248 = vunpack.c.h.b16 %v2931
    %v3249 = vunpack.c.l.b16 %v2932
    %v3250 = vunpack.c.h.b16 %v2932
    %v3251 = vunpack.c.l.b16 %v2933
    %v3252 = vunpack.c.h.b16 %v2933
    %v3253 = vunpack.c.l.b16 %v2934
    %v3254 = vunpack.c.h.b16 %v2934
    %v3255 = vunpack.c.l.b16 %v2935
    %v3256 = vunpack.c.h.b16 %v2935
    %v3257 = vunpack.c.l.b16 %v2936
    %v3258 = vunpack.c.h.b16 %v2936
    %v3259 = vunpack.c.l.b16 %v2937
    %v3260 = vunpack.c.h.b16 %v2937
    %v3261 = vunpack.c.l.b16 %v2938
    %v3262 = vunpack.c.h.b16 %v2938
    %v3263 = vunpack.c.l.b16 %v2939
    %v3264 = vunpack.c.h.b16 %v2939
    %v3265 = vunpack.c.l.b16 %v2940
    %v3266 = vunpack.c.h.b16 %v2940
    %v3267 = vunpack.c.l.b16 %v2941
    %v3268 = vunpack.c.h.b16 %v2941
    %v3269 = vunpack.c.l.b16 %v2942
    %v3270 = vunpack.c.h.b16 %v2942
    %v3271 = vunpack.c.l.b16 %v2943
    %v3272 = vunpack.c.h.b16 %v2943
    %v3273 = vunpack.c.l.b16 %v2944
    %v3274 = vunpack.c.h.b16 %v2944
    %v3275 = vunpack.c.l.b16 %v2945
    %v3276 = vunpack.c.h.b16 %v2945
    %v3277 = vunpack.c.l.b16 %v2946
    %v3278 = vunpack.c.h.b16 %v2946
    %v3279 = vunpack.c.l.b16 %v2947
    %v3280 = vunpack.c.h.b16 %v2947
    %v3281 = vunpack.c.l.b16 %v2948
    %v3282 = vunpack.c.h.b16 %v2948
    %v3283 = vunpack.c.l.b16 %v2949
    %v3284 = vunpack.c.h.b16 %v2949
    %v3285 = vunpack.c.l.b16 %v2950
    %v3286 = vunpack.c.h.b16 %v2950
    %v3287 = vunpack.c.l.b16 %v2951
    %v3288 = vunpack.c.h.b16 %v2951
    %v3289 = vunpack.c.l.b16 %v2952
    %v3290 = vunpack.c.h.b16 %v2952
    %v3291 = vunpack.c.l.b16 %v2953
    %v3292 = vunpack.c.h.b16 %v2953
    %v3293 = vunpack.c.l.b16 %v2954
    %v3294 = vunpack.c.h.b16 %v2954
    %v3295 = vunpack.c.l.b16 %v2955
    %v3296 = vunpack.c.h.b16 %v2955
    %v3297 = vunpack.c.l.b16 %v2956
    %v3298 = vunpack.c.h.b16 %v2956
    %v3299 = vunpack.c.l.b16 %v2957
    %v3300 = vunpack.c.h.b16 %v2957
    %v3301 = vunpack.c.l.b16 %v2958
    %v3302 = vunpack.c.h.b16 %v2958
    %v3303 = vunpack.c.l.b16 %v2959
    %v3304 = vunpack.c.h.b16 %v2959
    %v3305 = vunpack.c.l.b16 %v2960
    %v3306 = vunpack.c.h.b16 %v2960
    %v3307 = vunpack.c.l.b16 %v2961
    %v3308 = vunpack.c.h.b16 %v2961
    %v3309 = vunpack.c.l.b16 %v2962
    %v3310 = vunpack.c.h.b16 %v2962
    %v3311 = vunpack.c.l.b16 %v2963
    %v3312 = vunpack.c.h.b16 %v2963
    %v3313 = vunpack.c.l.b16 %v2964
    %v3314 = vunpack.c.h.b16 %v2964
    %v3315 = vunpack.c.l.b16 %v2965
    %v3316 = vunpack.c.h.b16 %v2965
    %v3317 = vunpack.c.l.b16 %v2966
    %v3318 = vunpack.c.h.b16 %v2966
    %v3319 = vunpack.c.l.b16 %v2967
    %v3320 = vunpack.c.h.b16 %v2967
    %v3321 = vunpack.c.l.b16 %v2968
    %v3322 = vunpack.c.h.b16 %v2968
    %v3323 = vunpack.c.l.b16 %v2969
    %v3324 = vunpack.c.h.b16 %v2969
    %v3325 = vunpack.c.l.b16 %v2970
    %v3326 = vunpack.c.h.b16 %v2970
    %v3327 = vunpack.c.l.b16 %v2971
    %v3328 = vunpack.c.h.b16 %v2971
    %v3329 = vunpack.c.l.b16 %v2972
    %v3330 = vunpack.c.h.b16 %v2972
    %v3331 = vunpack.c.l.b16 %v2973
    %v3332 = vunpack.c.h.b16 %v2973
    %v3333 = vunpack.c.l.b16 %v2974
    %v3334 = vunpack.c.h.b16 %v2974
    %v3335 = vunpack.c.l.b16 %v2975
    %v3336 = vunpack.c.h.b16 %v2975
    %v3337 = vunpack.c.l.b16 %v2976
    %v3338 = vunpack.c.h.b16 %v2976
    %v3339 = vunpack.c.l.b16 %v2977
    %v3340 = vunpack.c.h.b16 %v2977
    %v3341 = vunpack.c.l.b16 %v2978
    %v3342 = vunpack.c.h.b16 %v2978
    %v3343 = vunpack.c.l.b16 %v2979
    %v3344 = vunpack.c.h.b16 %v2979
    %v3345 = vunpack.c.l.b16 %v2980
    %v3346 = vunpack.c.h.b16 %v2980
    %v3347 = vunpack.c.l.b16 %v2981
    %v3348 = vunpack.c.h.b16 %v2981
    %v3349 = vunpack.c.l.b16 %v2982
    %v3350 = vunpack.c.h.b16 %v2982
    %v3351 = vunpack.c.l.b16 %v2983
    %v3352 = vunpack.c.h.b16 %v2983
    %v3353 = vunpack.c.l.b16 %v2984
    %v3354 = vunpack.c.h.b16 %v2984
    %v3355 = vunpack.c.l.b16 %v2985
    %v3356 = vunpack.c.h.b16 %v2985
    %v3357 = vunpack.c.l.b16 %v2986
    %v3358 = vunpack.c.h.b16 %v2986
    %v3359 = vunpack.c.l.b16 %v2987
    %v3360 = vunpack.c.h.b16 %v2987
    %v3361 = vunpack.c.l.b16 %v2988
    %v3362 = vunpack.c.h.b16 %v2988
    %v3363 = vunpack.c.l.b16 %v2989
    %v3364 = vunpack.c.h.b16 %v2989
    %v3365 = vunpack.c.l.b16 %v2990
    %v3366 = vunpack.c.h.b16 %v2990
    %v3367 = vunpack.c.l.b16 %v2991
    %v3368 = vunpack.c.h.b16 %v2991
    %v3369 = vunpack.c.l.b16 %v2992
    %v3370 = vunpack.c.h.b16 %v2992
    %v3371 = vunpack.c.l.b16 %v2993
    %v3372 = vunpack.c.h.b16 %v2993
    %v3373 = vunpack.c.l.b16 %v2994
    %v3374 = vunpack.c.h.b16 %v2994
    %v3375 = vunpack.c.l.b16 %v2995
    %v3376 = vunpack.c.h.b16 %v2995
    %v3377 = vunpack.c.l.b16 %v2996
    %v3378 = vunpack.c.h.b16 %v2996
    %v3379 = vunpack.c.l.b16 %v2997
    %v3380 = vunpack.c.h.b16 %v2997
    %v3381 = vunpack.c.l.b16 %v2998
    %v3382 = vunpack.c.h.b16 %v2998
    %v3383 = vpack.c.b16 %v3191, %v3127
    %v3384 = vpack.c.b16 %v3192, %v3128
    %v3385 = vpack.c.b16 %v3193, %v3129
    %v3386 = vpack.c.b16 %v3194, %v3130
    %v3387 = vpack.c.b16 %v3195, %v3131
    %v3388 = vpack.c.b16 %v3196, %v3132
    %v3389 = vpack.c.b16 %v3197, %v3133
    %v3390 = vpack.c.b16 %v3198, %v3134
    %v3391 = vpack.c.b16 %v3199, %v3135
    %v3392 = vpack.c.b16 %v3200, %v3136
    %v3393 = vpack.c.b16 %v3201, %v3137
    %v3394 = vpack.c.b16 %v3202, %v3138
    %v3395 = vpack.c.b16 %v3203, %v3139
    %v3396 = vpack.c.b16 %v3204, %v3140
    %v3397 = vpack.c.b16 %v3205, %v3141
    %v3398 = vpack.c.b16 %v3206, %v3142
    %v3399 = vpack.c.b16 %v3207, %v3143
    %v3400 = vpack.c.b16 %v3208, %v3144
    %v3401 = vpack.c.b16 %v3209, %v3145
    %v3402 = vpack.c.b16 %v3210, %v3146
    %v3403 = vpack.c.b16 %v3211, %v3147
    %v3404 = vpack.c.b16 %v3212, %v3148
    %v3405 = vpack.c.b16 %v3213, %v3149
    %v3406 = vpack.c.b16 %v3214, %v3150
    %v3407 = vpack.c.b16 %v3215, %v3151
    %v3408 = vpack.c.b16 %v3216, %v3152
    %v3409 = vpack.c.b16 %v3217, %v3153
    %v3410 = vpack.c.b16 %v3218, %v3154
    %v3411 = vpack.c.b16 %v3219, %v3155
    %v3412 = vpack.c.b16 %v3220, %v3156
    %v3413 = vpack.c.b16 %v3221, %v3157
    %v3414 = vpack.c.b16 %v3222, %v3158
    %v3415 = vpack.c.b16 %v3223, %v3159
    %v3416 = vpack.c.b16 %v3224, %v3160
    %v3417 = vpack.c.b16 %v3225, %v3161
    %v3418 = vpack.c.b16 %v3226, %v3162
    %v3419 = vpack.c.b16 %v3227, %v3163
    %v3420 = vpack.c.b16 %v3228, %v3164
    %v3421 = vpack.c.b16 %v3229, %v3165
    %v3422 = vpack.c.b16 %v3230, %v3166
    %v3423 = vpack.c.b16 %v3231, %v3167
    %v3424 = vpack.c.b16 %v3232, %v3168
    %v3425 = vpack.c.b16 %v3233, %v3169
    %v3426 = vpack.c.b16 %v3234, %v3170
    %v3427 = vpack.c.b16 %v3235, %v3171
    %v3428 = vpack.c.b16 %v3236, %v3172
    %v3429 = vpack.c.b16 %v3237, %v3173
    %v3430 = vpack.c.b16 %v3238, %v3174
    %v3431 = vpack.c.b16 %v3239, %v3175
    %v3432 = vpack.c.b16 %v3240, %v3176
    %v3433 = vpack.c.b16 %v3241, %v3177
    %v3434 = vpack.c.b16 %v3242, %v3178
    %v3435 = vpack.c.b16 %v3243, %v3179
    %v3436 = vpack.c.b16 %v3244, %v3180
    %v3437 = vpack.c.b16 %v3245, %v3181
    %v3438 = vpack.c.b16 %v3246, %v3182
    %v3439 = vpack.c.b16 %v3247, %v3183
    %v3440 = vpack.c.b16 %v3248, %v3184
    %v3441 = vpack.c.b16 %v3249, %v3185
    %v3442 = vpack.c.b16 %v3250, %v3186
    %v3443 = vpack.c.b16 %v3251, %v3187
    %v3444 = vpack.c.b16 %v3252, %v3188
    %v3445 = vpack.c.b16 %v3253, %v3189
    %v3446 = vpack.c.b16 %v3254, %v3190
    %v3447 = vpack.c.b16 %v3319, %v3255
    %v3448 = vpack.c.b16 %v3320, %v3256
    %v3449 = vpack.c.b16 %v3321, %v3257
    %v3450 = vpack.c.b16 %v3322, %v3258
    %v3451 = vpack.c.b16 %v3323, %v3259
    %v3452 = vpack.c.b16 %v3324, %v3260
    %v3453 = vpack.c.b16 %v3325, %v3261
    %v3454 = vpack.c.b16 %v3326, %v3262
    %v3455 = vpack.c.b16 %v3327, %v3263
    %v3456 = vpack.c.b16 %v3328, %v3264
    %v3457 = vpack.c.b16 %v3329, %v3265
    %v3458 = vpack.c.b16 %v3330, %v3266
    %v3459 = vpack.c.b16 %v3331, %v3267
    %v3460 = vpack.c.b16 %v3332, %v3268
    %v3461 = vpack.c.b16 %v3333, %v3269
    %v3462 = vpack.c.b16 %v3334, %v3270
    %v3463 = vpack.c.b16 %v3335, %v3271
    %v3464 = vpack.c.b16 %v3336, %v3272
    %v3465 = vpack.c.b16 %v3337, %v3273
    %v3466 = vpack.c.b16 %v3338, %v3274
    %v3467 = vpack.c.b16 %v3339, %v3275
    %v3468 = vpack.c.b16 %v3340, %v3276
    %v3469 = vpack.c.b16 %v3341, %v3277
    %v3470 = vpack.c.b16 %v3342, %v3278
    %v3471 = vpack.c.b16 %v3343, %v3279
    %v3472 = vpack.c.b16 %v3344, %v3280
    %v3473 = vpack.c.b16 %v3345, %v3281
    %v3474 = vpack.c.b16 %v3346, %v3282
    %v3475 = vpack.c.b16 %v3347, %v3283
    %v3476 = vpack.c.b16 %v3348, %v3284
    %v3477 = vpack.c.b16 %v3349, %v3285
    %v3478 = vpack.c.b16 %v3350, %v3286
    %v3479 = vpack.c.b16 %v3351, %v3287
    %v3480 = vpack.c.b16 %v3352, %v3288
    %v3481 = vpack.c.b16 %v3353, %v3289
    %v3482 = vpack.c.b16 %v3354, %v3290
    %v3483 = vpack.c.b16 %v3355, %v3291
    %v3484 = vpack.c.b16 %v3356, %v3292
    %v3485 = vpack.c.b16 %v3357, %v3293
    %v3486 = vpack.c.b16 %v3358, %v3294
    %v3487 = vpack.c.b16 %v3359, %v3295
    %v3488 = vpack.c.b16 %v3360, %v3296
    %v3489 = vpack.c.b16 %v3361, %v3297
    %v3490 = vpack.c.b16 %v3362, %v3298
    %v3491 = vpack.c.b16 %v3363, %v3299
    %v3492 = vpack.c.b16 %v3364, %v3300
    %v3493 = vpack.c.b16 %v3365, %v3301
    %v3494 = vpack.c.b16 %v3366, %v3302
    %v3495 = vpack.c.b16 %v3367, %v3303
    %v3496 = vpack.c.b16 %v3368, %v3304
    %v3497 = vpack.c.b16 %v3369, %v3305
    %v3498 = vpack.c.b16 %v3370, %v3306
    %v3499 = vpack.c.b16 %v3371, %v3307
    %v3500 = vpack.c.b16 %v3372, %v3308
    %v3501 = vpack.c.b16 %v3373, %v3309
    %v3502 = vpack.c.b16 %v3374, %v3310
    %v3503 = vpack.c.b16 %v3375, %v3311
    %v3504 = vpack.c.b16 %v3376, %v3312
    %v3505 = vpack.c.b16 %v3377, %v3313
    %v3506 = vpack.c.b16 %v3378, %v3314
    %v3507 = vpack.c.b16 %v3379, %v3315
    %v3508 = vpack.c.b16 %v3380, %v3316
    %v3509 = vpack.c.b16 %v3381, %v3317
    %v3510 = vpack.c.b16 %v3382, %v3318
    %3639 = vmatpush.bf16.msra.mxu0 0
    %3640 = vmatpush.bf16.msra.mxu0 0
    %3641 = vmatpush.bf16.msra.mxu0 0
    %3642 = vmatpush.bf16.msra.mxu0 0
    %3643 = vmatpush.bf16.msra.mxu0 0
    %3644 = vmatpush.bf16.msra.mxu0 0
    %3645 = vmatpush.bf16.msra.mxu0 %v3447
    %3646 = vmatpush.bf16.msra.mxu0 %v3383
    %3647 = vmatmul.bf16.gmra.mxu0 %v2827
    %v3648 = vpop.f32.mrf.mxu0
    %v3649 = vadd.f32 0.0, %v3648
    %v3650 = vpop.f32.mrf.mxu0
    %3651 = vdwg.mxu0
    %3652 = vmatpush.bf16.msra.mxu0 0
    %3653 = vmatpush.bf16.msra.mxu0 0
    %3654 = vmatpush.bf16.msra.mxu0 0
    %3655 = vmatpush.bf16.msra.mxu0 0
    %3656 = vmatpush.bf16.msra.mxu0 0
    %3657 = vmatpush.bf16.msra.mxu0 0
    %3658 = vmatpush.bf16.msra.mxu0 %v3448
    %3659 = vmatpush.bf16.msra.mxu0 %v3384
    %3660 = vmatmul.bf16.gmra.mxu0 %v2827
    %v3661 = vpop.f32.mrf.mxu0
    %v3662 = vadd.f32 0.0, %v3661
    %v3663 = vpop.f32.mrf.mxu0
    %3664 = vdwg.mxu0
    %3665 = vmatpush.bf16.msra.mxu0 0
    %3666 = vmatpush.bf16.msra.mxu0 0
    %3667 = vmatpush.bf16.msra.mxu0 0
    %3668 = vmatpush.bf16.msra.mxu0 0
    %3669 = vmatpush.bf16.msra.mxu0 0
    %3670 = vmatpush.bf16.msra.mxu0 0
    %3671 = vmatpush.bf16.msra.mxu0 %v3449
    %3672 = vmatpush.bf16.msra.mxu0 %v3385
    %3673 = vmatmul.bf16.gmra.mxu0 %v2827
    %v3674 = vpop.f32.mrf.mxu0
    %v3675 = vadd.f32 0.0, %v3674
    %v3676 = vpop.f32.mrf.mxu0
    %3677 = vdwg.mxu0
    %3678 = vmatpush.bf16.msra.mxu0 0
    %3679 = vmatpush.bf16.msra.mxu0 0
    %3680 = vmatpush.bf16.msra.mxu0 0
    %3681 = vmatpush.bf16.msra.mxu0 0
    %3682 = vmatpush.bf16.msra.mxu0 0
    %3683 = vmatpush.bf16.msra.mxu0 0
    %3684 = vmatpush.bf16.msra.mxu0 %v3450
    %3685 = vmatpush.bf16.msra.mxu0 %v3386
    %3686 = vmatmul.bf16.gmra.mxu0 %v2827
    %v3687 = vpop.f32.mrf.mxu0
    %v3688 = vadd.f32 0.0, %v3687
    %v3689 = vpop.f32.mrf.mxu0
    %3690 = vdwg.mxu0
    %3691 = vmatpush.bf16.msra.mxu0 0
    %3692 = vmatpush.bf16.msra.mxu0 0
    %3693 = vmatpush.bf16.msra.mxu0 0
    %3694 = vmatpush.bf16.msra.mxu0 0
    %3695 = vmatpush.bf16.msra.mxu0 0
    %3696 = vmatpush.bf16.msra.mxu0 0
    %3697 = vmatpush.bf16.msra.mxu0 %v3451
    %3698 = vmatpush.bf16.msra.mxu0 %v3387
    %3699 = vmatmul.bf16.gmra.mxu0 %v2827
    %v3700 = vpop.f32.mrf.mxu0
    %v3701 = vadd.f32 0.0, %v3700
    %v3702 = vpop.f32.mrf.mxu0
    %3703 = vdwg.mxu0
    %3704 = vmatpush.bf16.msra.mxu0 0
    %3705 = vmatpush.bf16.msra.mxu0 0
    %3706 = vmatpush.bf16.msra.mxu0 0
    %3707 = vmatpush.bf16.msra.mxu0 0
    %3708 = vmatpush.bf16.msra.mxu0 0
    %3709 = vmatpush.bf16.msra.mxu0 0
    %3710 = vmatpush.bf16.msra.mxu0 %v3452
    %3711 = vmatpush.bf16.msra.mxu0 %v3388
    %3712 = vmatmul.bf16.gmra.mxu0 %v2827
    %v3713 = vpop.f32.mrf.mxu0
    %v3714 = vadd.f32 0.0, %v3713
    %v3715 = vpop.f32.mrf.mxu0
    %3716 = vdwg.mxu0
    %3717 = vmatpush.bf16.msra.mxu0 0
    %3718 = vmatpush.bf16.msra.mxu0 0
    %3719 = vmatpush.bf16.msra.mxu0 0
    %3720 = vmatpush.bf16.msra.mxu0 0
    %3721 = vmatpush.bf16.msra.mxu0 0
    %3722 = vmatpush.bf16.msra.mxu0 0
    %3723 = vmatpush.bf16.msra.mxu0 %v3453
    %3724 = vmatpush.bf16.msra.mxu0 %v3389
    %3725 = vmatmul.bf16.gmra.mxu0 %v2827
    %v3726 = vpop.f32.mrf.mxu0
    %v3727 = vadd.f32 0.0, %v3726
    %v3728 = vpop.f32.mrf.mxu0
    %3729 = vdwg.mxu0
    %3730 = vmatpush.bf16.msra.mxu0 0
    %3731 = vmatpush.bf16.msra.mxu0 0
    %3732 = vmatpush.bf16.msra.mxu0 0
    %3733 = vmatpush.bf16.msra.mxu0 0
    %3734 = vmatpush.bf16.msra.mxu0 0
    %3735 = vmatpush.bf16.msra.mxu0 0
    %3736 = vmatpush.bf16.msra.mxu0 %v3454
    %3737 = vmatpush.bf16.msra.mxu0 %v3390
    %3738 = vmatmul.bf16.gmra.mxu0 %v2827
    %v3739 = vpop.f32.mrf.mxu0
    %v3740 = vadd.f32 0.0, %v3739
    %v3741 = vpop.f32.mrf.mxu0
    %3742 = vdwg.mxu0
    %3743 = vmatpush.bf16.msra.mxu0 0
    %3744 = vmatpush.bf16.msra.mxu0 0
    %3745 = vmatpush.bf16.msra.mxu0 0
    %3746 = vmatpush.bf16.msra.mxu0 0
    %3747 = vmatpush.bf16.msra.mxu0 0
    %3748 = vmatpush.bf16.msra.mxu0 0
    %3749 = vmatpush.bf16.msra.mxu0 %v3455
    %3750 = vmatpush.bf16.msra.mxu0 %v3391
    %3751 = vmatmul.bf16.gmra.mxu0 %v2827
    %v3752 = vpop.f32.mrf.mxu0
    %v3753 = vadd.f32 0.0, %v3752
    %v3754 = vpop.f32.mrf.mxu0
    %3755 = vdwg.mxu0
    %3756 = vmatpush.bf16.msra.mxu0 0
    %3757 = vmatpush.bf16.msra.mxu0 0
    %3758 = vmatpush.bf16.msra.mxu0 0
    %3759 = vmatpush.bf16.msra.mxu0 0
    %3760 = vmatpush.bf16.msra.mxu0 0
    %3761 = vmatpush.bf16.msra.mxu0 0
    %3762 = vmatpush.bf16.msra.mxu0 %v3456
    %3763 = vmatpush.bf16.msra.mxu0 %v3392
    %3764 = vmatmul.bf16.gmra.mxu0 %v2827
    %v3765 = vpop.f32.mrf.mxu0
    %v3766 = vadd.f32 0.0, %v3765
    %v3767 = vpop.f32.mrf.mxu0
    %3768 = vdwg.mxu0
    %3769 = vmatpush.bf16.msra.mxu0 0
    %3770 = vmatpush.bf16.msra.mxu0 0
    %3771 = vmatpush.bf16.msra.mxu0 0
    %3772 = vmatpush.bf16.msra.mxu0 0
    %3773 = vmatpush.bf16.msra.mxu0 0
    %3774 = vmatpush.bf16.msra.mxu0 0
    %3775 = vmatpush.bf16.msra.mxu0 %v3457
    %3776 = vmatpush.bf16.msra.mxu0 %v3393
    %3777 = vmatmul.bf16.gmra.mxu0 %v2827
    %v3778 = vpop.f32.mrf.mxu0
    %v3779 = vadd.f32 0.0, %v3778
    %v3780 = vpop.f32.mrf.mxu0
    %3781 = vdwg.mxu0
    %3782 = vmatpush.bf16.msra.mxu0 0
    %3783 = vmatpush.bf16.msra.mxu0 0
    %3784 = vmatpush.bf16.msra.mxu0 0
    %3785 = vmatpush.bf16.msra.mxu0 0
    %3786 = vmatpush.bf16.msra.mxu0 0
    %3787 = vmatpush.bf16.msra.mxu0 0
    %3788 = vmatpush.bf16.msra.mxu0 %v3458
    %3789 = vmatpush.bf16.msra.mxu0 %v3394
    %3790 = vmatmul.bf16.gmra.mxu0 %v2827
    %v3791 = vpop.f32.mrf.mxu0
    %v3792 = vadd.f32 0.0, %v3791
    %v3793 = vpop.f32.mrf.mxu0
    %3794 = vdwg.mxu0
    %3795 = vmatpush.bf16.msra.mxu0 0
    %3796 = vmatpush.bf16.msra.mxu0 0
    %3797 = vmatpush.bf16.msra.mxu0 0
    %3798 = vmatpush.bf16.msra.mxu0 0
    %3799 = vmatpush.bf16.msra.mxu0 0
    %3800 = vmatpush.bf16.msra.mxu0 0
    %3801 = vmatpush.bf16.msra.mxu0 %v3459
    %3802 = vmatpush.bf16.msra.mxu0 %v3395
    %3803 = vmatmul.bf16.gmra.mxu0 %v2827
    %v3804 = vpop.f32.mrf.mxu0
    %v3805 = vadd.f32 0.0, %v3804
    %v3806 = vpop.f32.mrf.mxu0
    %3807 = vdwg.mxu0
    %3808 = vmatpush.bf16.msra.mxu0 0
    %3809 = vmatpush.bf16.msra.mxu0 0
    %3810 = vmatpush.bf16.msra.mxu0 0
    %3811 = vmatpush.bf16.msra.mxu0 0
    %3812 = vmatpush.bf16.msra.mxu0 0
    %3813 = vmatpush.bf16.msra.mxu0 0
    %3814 = vmatpush.bf16.msra.mxu0 %v3460
    %3815 = vmatpush.bf16.msra.mxu0 %v3396
    %3816 = vmatmul.bf16.gmra.mxu0 %v2827
    %v3817 = vpop.f32.mrf.mxu0
    %v3818 = vadd.f32 0.0, %v3817
    %v3819 = vpop.f32.mrf.mxu0
    %3820 = vdwg.mxu0
    %3821 = vmatpush.bf16.msra.mxu0 0
    %3822 = vmatpush.bf16.msra.mxu0 0
    %3823 = vmatpush.bf16.msra.mxu0 0
    %3824 = vmatpush.bf16.msra.mxu0 0
    %3825 = vmatpush.bf16.msra.mxu0 0
    %3826 = vmatpush.bf16.msra.mxu0 0
    %3827 = vmatpush.bf16.msra.mxu0 %v3461
    %3828 = vmatpush.bf16.msra.mxu0 %v3397
    %3829 = vmatmul.bf16.gmra.mxu0 %v2827
    %v3830 = vpop.f32.mrf.mxu0
    %v3831 = vadd.f32 0.0, %v3830
    %v3832 = vpop.f32.mrf.mxu0
    %3833 = vdwg.mxu0
    %3834 = vmatpush.bf16.msra.mxu0 0
    %3835 = vmatpush.bf16.msra.mxu0 0
    %3836 = vmatpush.bf16.msra.mxu0 0
    %3837 = vmatpush.bf16.msra.mxu0 0
    %3838 = vmatpush.bf16.msra.mxu0 0
    %3839 = vmatpush.bf16.msra.mxu0 0
    %3840 = vmatpush.bf16.msra.mxu0 %v3462
    %3841 = vmatpush.bf16.msra.mxu0 %v3398
    %3842 = vmatmul.bf16.gmra.mxu0 %v2827
    %v3843 = vpop.f32.mrf.mxu0
    %v3844 = vadd.f32 0.0, %v3843
    %v3845 = vpop.f32.mrf.mxu0
    %3846 = vdwg.mxu0
    %3847 = vmatpush.bf16.msra.mxu0 0
    %3848 = vmatpush.bf16.msra.mxu0 0
    %3849 = vmatpush.bf16.msra.mxu0 0
    %3850 = vmatpush.bf16.msra.mxu0 0
    %3851 = vmatpush.bf16.msra.mxu0 0
    %3852 = vmatpush.bf16.msra.mxu0 0
    %3853 = vmatpush.bf16.msra.mxu0 %v3463
    %3854 = vmatpush.bf16.msra.mxu0 %v3399
    %3855 = vmatmul.bf16.gmra.mxu0 %v2827
    %v3856 = vpop.f32.mrf.mxu0
    %v3857 = vadd.f32 0.0, %v3856
    %v3858 = vpop.f32.mrf.mxu0
    %3859 = vdwg.mxu0
    %3860 = vmatpush.bf16.msra.mxu0 0
    %3861 = vmatpush.bf16.msra.mxu0 0
    %3862 = vmatpush.bf16.msra.mxu0 0
    %3863 = vmatpush.bf16.msra.mxu0 0
    %3864 = vmatpush.bf16.msra.mxu0 0
    %3865 = vmatpush.bf16.msra.mxu0 0
    %3866 = vmatpush.bf16.msra.mxu0 %v3464
    %3867 = vmatpush.bf16.msra.mxu0 %v3400
    %3868 = vmatmul.bf16.gmra.mxu0 %v2827
    %v3869 = vpop.f32.mrf.mxu0
    %v3870 = vadd.f32 0.0, %v3869
    %v3871 = vpop.f32.mrf.mxu0
    %3872 = vdwg.mxu0
    %3873 = vmatpush.bf16.msra.mxu0 0
    %3874 = vmatpush.bf16.msra.mxu0 0
    %3875 = vmatpush.bf16.msra.mxu0 0
    %3876 = vmatpush.bf16.msra.mxu0 0
    %3877 = vmatpush.bf16.msra.mxu0 0
    %3878 = vmatpush.bf16.msra.mxu0 0
    %3879 = vmatpush.bf16.msra.mxu0 %v3465
    %3880 = vmatpush.bf16.msra.mxu0 %v3401
    %3881 = vmatmul.bf16.gmra.mxu0 %v2827
    %v3882 = vpop.f32.mrf.mxu0
    %v3883 = vadd.f32 0.0, %v3882
    %v3884 = vpop.f32.mrf.mxu0
    %3885 = vdwg.mxu0
    %3886 = vmatpush.bf16.msra.mxu0 0
    %3887 = vmatpush.bf16.msra.mxu0 0
    %3888 = vmatpush.bf16.msra.mxu0 0
    %3889 = vmatpush.bf16.msra.mxu0 0
    %3890 = vmatpush.bf16.msra.mxu0 0
    %3891 = vmatpush.bf16.msra.mxu0 0
    %3892 = vmatpush.bf16.msra.mxu0 %v3466
    %3893 = vmatpush.bf16.msra.mxu0 %v3402
    %3894 = vmatmul.bf16.gmra.mxu0 %v2827
    %v3895 = vpop.f32.mrf.mxu0
    %v3896 = vadd.f32 0.0, %v3895
    %v3897 = vpop.f32.mrf.mxu0
    %3898 = vdwg.mxu0
    %3899 = vmatpush.bf16.msra.mxu0 0
    %3900 = vmatpush.bf16.msra.mxu0 0
    %3901 = vmatpush.bf16.msra.mxu0 0
    %3902 = vmatpush.bf16.msra.mxu0 0
    %3903 = vmatpush.bf16.msra.mxu0 0
    %3904 = vmatpush.bf16.msra.mxu0 0
    %3905 = vmatpush.bf16.msra.mxu0 %v3467
    %3906 = vmatpush.bf16.msra.mxu0 %v3403
    %3907 = vmatmul.bf16.gmra.mxu0 %v2827
    %v3908 = vpop.f32.mrf.mxu0
    %v3909 = vadd.f32 0.0, %v3908
    %v3910 = vpop.f32.mrf.mxu0
    %3911 = vdwg.mxu0
    %3912 = vmatpush.bf16.msra.mxu0 0
    %3913 = vmatpush.bf16.msra.mxu0 0
    %3914 = vmatpush.bf16.msra.mxu0 0
    %3915 = vmatpush.bf16.msra.mxu0 0
    %3916 = vmatpush.bf16.msra.mxu0 0
    %3917 = vmatpush.bf16.msra.mxu0 0
    %3918 = vmatpush.bf16.msra.mxu0 %v3468
    %3919 = vmatpush.bf16.msra.mxu0 %v3404
    %3920 = vmatmul.bf16.gmra.mxu0 %v2827
    %v3921 = vpop.f32.mrf.mxu0
    %v3922 = vadd.f32 0.0, %v3921
    %v3923 = vpop.f32.mrf.mxu0
    %3924 = vdwg.mxu0
    %3925 = vmatpush.bf16.msra.mxu0 0
    %3926 = vmatpush.bf16.msra.mxu0 0
    %3927 = vmatpush.bf16.msra.mxu0 0
    %3928 = vmatpush.bf16.msra.mxu0 0
    %3929 = vmatpush.bf16.msra.mxu0 0
    %3930 = vmatpush.bf16.msra.mxu0 0
    %3931 = vmatpush.bf16.msra.mxu0 %v3469
    %3932 = vmatpush.bf16.msra.mxu0 %v3405
    %3933 = vmatmul.bf16.gmra.mxu0 %v2827
    %v3934 = vpop.f32.mrf.mxu0
    %v3935 = vadd.f32 0.0, %v3934
    %v3936 = vpop.f32.mrf.mxu0
    %3937 = vdwg.mxu0
    %3938 = vmatpush.bf16.msra.mxu0 0
    %3939 = vmatpush.bf16.msra.mxu0 0
    %3940 = vmatpush.bf16.msra.mxu0 0
    %3941 = vmatpush.bf16.msra.mxu0 0
    %3942 = vmatpush.bf16.msra.mxu0 0
    %3943 = vmatpush.bf16.msra.mxu0 0
    %3944 = vmatpush.bf16.msra.mxu0 %v3470
    %3945 = vmatpush.bf16.msra.mxu0 %v3406
    %3946 = vmatmul.bf16.gmra.mxu0 %v2827
    %v3947 = vpop.f32.mrf.mxu0
    %v3948 = vadd.f32 0.0, %v3947
    %v3949 = vpop.f32.mrf.mxu0
    %3950 = vdwg.mxu0
    %3951 = vmatpush.bf16.msra.mxu0 0
    %3952 = vmatpush.bf16.msra.mxu0 0
    %3953 = vmatpush.bf16.msra.mxu0 0
    %3954 = vmatpush.bf16.msra.mxu0 0
    %3955 = vmatpush.bf16.msra.mxu0 0
    %3956 = vmatpush.bf16.msra.mxu0 0
    %3957 = vmatpush.bf16.msra.mxu0 %v3471
    %3958 = vmatpush.bf16.msra.mxu0 %v3407
    %3959 = vmatmul.bf16.gmra.mxu0 %v2827
    %v3960 = vpop.f32.mrf.mxu0
    %v3961 = vadd.f32 0.0, %v3960
    %v3962 = vpop.f32.mrf.mxu0
    %3963 = vdwg.mxu0
    %3964 = vmatpush.bf16.msra.mxu0 0
    %3965 = vmatpush.bf16.msra.mxu0 0
    %3966 = vmatpush.bf16.msra.mxu0 0
    %3967 = vmatpush.bf16.msra.mxu0 0
    %3968 = vmatpush.bf16.msra.mxu0 0
    %3969 = vmatpush.bf16.msra.mxu0 0
    %3970 = vmatpush.bf16.msra.mxu0 %v3472
    %3971 = vmatpush.bf16.msra.mxu0 %v3408
    %3972 = vmatmul.bf16.gmra.mxu0 %v2827
    %v3973 = vpop.f32.mrf.mxu0
    %v3974 = vadd.f32 0.0, %v3973
    %v3975 = vpop.f32.mrf.mxu0
    %3976 = vdwg.mxu0
    %3977 = vmatpush.bf16.msra.mxu0 0
    %3978 = vmatpush.bf16.msra.mxu0 0
    %3979 = vmatpush.bf16.msra.mxu0 0
    %3980 = vmatpush.bf16.msra.mxu0 0
    %3981 = vmatpush.bf16.msra.mxu0 0
    %3982 = vmatpush.bf16.msra.mxu0 0
    %3983 = vmatpush.bf16.msra.mxu0 %v3473
    %3984 = vmatpush.bf16.msra.mxu0 %v3409
    %3985 = vmatmul.bf16.gmra.mxu0 %v2827
    %v3986 = vpop.f32.mrf.mxu0
    %v3987 = vadd.f32 0.0, %v3986
    %v3988 = vpop.f32.mrf.mxu0
    %3989 = vdwg.mxu0
    %3990 = vmatpush.bf16.msra.mxu0 0
    %3991 = vmatpush.bf16.msra.mxu0 0
    %3992 = vmatpush.bf16.msra.mxu0 0
    %3993 = vmatpush.bf16.msra.mxu0 0
    %3994 = vmatpush.bf16.msra.mxu0 0
    %3995 = vmatpush.bf16.msra.mxu0 0
    %3996 = vmatpush.bf16.msra.mxu0 %v3474
    %3997 = vmatpush.bf16.msra.mxu0 %v3410
    %3998 = vmatmul.bf16.gmra.mxu0 %v2827
    %v3999 = vpop.f32.mrf.mxu0
    %v4000 = vadd.f32 0.0, %v3999
    %v4001 = vpop.f32.mrf.mxu0
    %4002 = vdwg.mxu0
    %4003 = vmatpush.bf16.msra.mxu0 0
    %4004 = vmatpush.bf16.msra.mxu0 0
    %4005 = vmatpush.bf16.msra.mxu0 0
    %4006 = vmatpush.bf16.msra.mxu0 0
    %4007 = vmatpush.bf16.msra.mxu0 0
    %4008 = vmatpush.bf16.msra.mxu0 0
    %4009 = vmatpush.bf16.msra.mxu0 %v3475
    %4010 = vmatpush.bf16.msra.mxu0 %v3411
    %4011 = vmatmul.bf16.gmra.mxu0 %v2827
    %v4012 = vpop.f32.mrf.mxu0
    %v4013 = vadd.f32 0.0, %v4012
    %v4014 = vpop.f32.mrf.mxu0
    %4015 = vdwg.mxu0
    %4016 = vmatpush.bf16.msra.mxu0 0
    %4017 = vmatpush.bf16.msra.mxu0 0
    %4018 = vmatpush.bf16.msra.mxu0 0
    %4019 = vmatpush.bf16.msra.mxu0 0
    %4020 = vmatpush.bf16.msra.mxu0 0
    %4021 = vmatpush.bf16.msra.mxu0 0
    %4022 = vmatpush.bf16.msra.mxu0 %v3476
    %4023 = vmatpush.bf16.msra.mxu0 %v3412
    %4024 = vmatmul.bf16.gmra.mxu0 %v2827
    %v4025 = vpop.f32.mrf.mxu0
    %v4026 = vadd.f32 0.0, %v4025
    %v4027 = vpop.f32.mrf.mxu0
    %4028 = vdwg.mxu0
    %4029 = vmatpush.bf16.msra.mxu0 0
    %4030 = vmatpush.bf16.msra.mxu0 0
    %4031 = vmatpush.bf16.msra.mxu0 0
    %4032 = vmatpush.bf16.msra.mxu0 0
    %4033 = vmatpush.bf16.msra.mxu0 0
    %4034 = vmatpush.bf16.msra.mxu0 0
    %4035 = vmatpush.bf16.msra.mxu0 %v3477
    %4036 = vmatpush.bf16.msra.mxu0 %v3413
    %4037 = vmatmul.bf16.gmra.mxu0 %v2827
    %v4038 = vpop.f32.mrf.mxu0
    %v4039 = vadd.f32 0.0, %v4038
    %v4040 = vpop.f32.mrf.mxu0
    %4041 = vdwg.mxu0
    %4042 = vmatpush.bf16.msra.mxu0 0
    %4043 = vmatpush.bf16.msra.mxu0 0
    %4044 = vmatpush.bf16.msra.mxu0 0
    %4045 = vmatpush.bf16.msra.mxu0 0
    %4046 = vmatpush.bf16.msra.mxu0 0
    %4047 = vmatpush.bf16.msra.mxu0 0
    %4048 = vmatpush.bf16.msra.mxu0 %v3478
    %4049 = vmatpush.bf16.msra.mxu0 %v3414
    %4050 = vmatmul.bf16.gmra.mxu0 %v2827
    %v4051 = vpop.f32.mrf.mxu0
    %v4052 = vadd.f32 0.0, %v4051
    %v4053 = vpop.f32.mrf.mxu0
    %4054 = vdwg.mxu0
    %4055 = vmatpush.bf16.msra.mxu0 0
    %4056 = vmatpush.bf16.msra.mxu0 0
    %4057 = vmatpush.bf16.msra.mxu0 0
    %4058 = vmatpush.bf16.msra.mxu0 0
    %4059 = vmatpush.bf16.msra.mxu0 0
    %4060 = vmatpush.bf16.msra.mxu0 0
    %4061 = vmatpush.bf16.msra.mxu0 %v3479
    %4062 = vmatpush.bf16.msra.mxu0 %v3415
    %4063 = vmatmul.bf16.gmra.mxu0 %v2827
    %v4064 = vpop.f32.mrf.mxu0
    %v4065 = vadd.f32 0.0, %v4064
    %v4066 = vpop.f32.mrf.mxu0
    %4067 = vdwg.mxu0
    %4068 = vmatpush.bf16.msra.mxu0 0
    %4069 = vmatpush.bf16.msra.mxu0 0
    %4070 = vmatpush.bf16.msra.mxu0 0
    %4071 = vmatpush.bf16.msra.mxu0 0
    %4072 = vmatpush.bf16.msra.mxu0 0
    %4073 = vmatpush.bf16.msra.mxu0 0
    %4074 = vmatpush.bf16.msra.mxu0 %v3480
    %4075 = vmatpush.bf16.msra.mxu0 %v3416
    %4076 = vmatmul.bf16.gmra.mxu0 %v2827
    %v4077 = vpop.f32.mrf.mxu0
    %v4078 = vadd.f32 0.0, %v4077
    %v4079 = vpop.f32.mrf.mxu0
    %4080 = vdwg.mxu0
    %4081 = vmatpush.bf16.msra.mxu0 0
    %4082 = vmatpush.bf16.msra.mxu0 0
    %4083 = vmatpush.bf16.msra.mxu0 0
    %4084 = vmatpush.bf16.msra.mxu0 0
    %4085 = vmatpush.bf16.msra.mxu0 0
    %4086 = vmatpush.bf16.msra.mxu0 0
    %4087 = vmatpush.bf16.msra.mxu0 %v3481
    %4088 = vmatpush.bf16.msra.mxu0 %v3417
    %4089 = vmatmul.bf16.gmra.mxu0 %v2827
    %v4090 = vpop.f32.mrf.mxu0
    %v4091 = vadd.f32 0.0, %v4090
    %v4092 = vpop.f32.mrf.mxu0
    %4093 = vdwg.mxu0
    %4094 = vmatpush.bf16.msra.mxu0 0
    %4095 = vmatpush.bf16.msra.mxu0 0
    %4096 = vmatpush.bf16.msra.mxu0 0
    %4097 = vmatpush.bf16.msra.mxu0 0
    %4098 = vmatpush.bf16.msra.mxu0 0
    %4099 = vmatpush.bf16.msra.mxu0 0
    %4100 = vmatpush.bf16.msra.mxu0 %v3482
    %4101 = vmatpush.bf16.msra.mxu0 %v3418
    %4102 = vmatmul.bf16.gmra.mxu0 %v2827
    %v4103 = vpop.f32.mrf.mxu0
    %v4104 = vadd.f32 0.0, %v4103
    %v4105 = vpop.f32.mrf.mxu0
    %4106 = vdwg.mxu0
    %4107 = vmatpush.bf16.msra.mxu0 0
    %4108 = vmatpush.bf16.msra.mxu0 0
    %4109 = vmatpush.bf16.msra.mxu0 0
    %4110 = vmatpush.bf16.msra.mxu0 0
    %4111 = vmatpush.bf16.msra.mxu0 0
    %4112 = vmatpush.bf16.msra.mxu0 0
    %4113 = vmatpush.bf16.msra.mxu0 %v3483
    %4114 = vmatpush.bf16.msra.mxu0 %v3419
    %4115 = vmatmul.bf16.gmra.mxu0 %v2827
    %v4116 = vpop.f32.mrf.mxu0
    %v4117 = vadd.f32 0.0, %v4116
    %v4118 = vpop.f32.mrf.mxu0
    %4119 = vdwg.mxu0
    %4120 = vmatpush.bf16.msra.mxu0 0
    %4121 = vmatpush.bf16.msra.mxu0 0
    %4122 = vmatpush.bf16.msra.mxu0 0
    %4123 = vmatpush.bf16.msra.mxu0 0
    %4124 = vmatpush.bf16.msra.mxu0 0
    %4125 = vmatpush.bf16.msra.mxu0 0
    %4126 = vmatpush.bf16.msra.mxu0 %v3484
    %4127 = vmatpush.bf16.msra.mxu0 %v3420
    %4128 = vmatmul.bf16.gmra.mxu0 %v2827
    %v4129 = vpop.f32.mrf.mxu0
    %v4130 = vadd.f32 0.0, %v4129
    %v4131 = vpop.f32.mrf.mxu0
    %4132 = vdwg.mxu0
    %4133 = vmatpush.bf16.msra.mxu0 0
    %4134 = vmatpush.bf16.msra.mxu0 0
    %4135 = vmatpush.bf16.msra.mxu0 0
    %4136 = vmatpush.bf16.msra.mxu0 0
    %4137 = vmatpush.bf16.msra.mxu0 0
    %4138 = vmatpush.bf16.msra.mxu0 0
    %4139 = vmatpush.bf16.msra.mxu0 %v3485
    %4140 = vmatpush.bf16.msra.mxu0 %v3421
    %4141 = vmatmul.bf16.gmra.mxu0 %v2827
    %v4142 = vpop.f32.mrf.mxu0
    %v4143 = vadd.f32 0.0, %v4142
    %v4144 = vpop.f32.mrf.mxu0
    %4145 = vdwg.mxu0
    %4146 = vmatpush.bf16.msra.mxu0 0
    %4147 = vmatpush.bf16.msra.mxu0 0
    %4148 = vmatpush.bf16.msra.mxu0 0
    %4149 = vmatpush.bf16.msra.mxu0 0
    %4150 = vmatpush.bf16.msra.mxu0 0
    %4151 = vmatpush.bf16.msra.mxu0 0
    %4152 = vmatpush.bf16.msra.mxu0 %v3486
    %4153 = vmatpush.bf16.msra.mxu0 %v3422
    %4154 = vmatmul.bf16.gmra.mxu0 %v2827
    %v4155 = vpop.f32.mrf.mxu0
    %v4156 = vadd.f32 0.0, %v4155
    %v4157 = vpop.f32.mrf.mxu0
    %4158 = vdwg.mxu0
    %4159 = vmatpush.bf16.msra.mxu0 0
    %4160 = vmatpush.bf16.msra.mxu0 0
    %4161 = vmatpush.bf16.msra.mxu0 0
    %4162 = vmatpush.bf16.msra.mxu0 0
    %4163 = vmatpush.bf16.msra.mxu0 0
    %4164 = vmatpush.bf16.msra.mxu0 0
    %4165 = vmatpush.bf16.msra.mxu0 %v3487
    %4166 = vmatpush.bf16.msra.mxu0 %v3423
    %4167 = vmatmul.bf16.gmra.mxu0 %v2827
    %v4168 = vpop.f32.mrf.mxu0
    %v4169 = vadd.f32 0.0, %v4168
    %v4170 = vpop.f32.mrf.mxu0
    %4171 = vdwg.mxu0
    %4172 = vmatpush.bf16.msra.mxu0 0
    %4173 = vmatpush.bf16.msra.mxu0 0
    %4174 = vmatpush.bf16.msra.mxu0 0
    %4175 = vmatpush.bf16.msra.mxu0 0
    %4176 = vmatpush.bf16.msra.mxu0 0
    %4177 = vmatpush.bf16.msra.mxu0 0
    %4178 = vmatpush.bf16.msra.mxu0 %v3488
    %4179 = vmatpush.bf16.msra.mxu0 %v3424
    %4180 = vmatmul.bf16.gmra.mxu0 %v2827
    %v4181 = vpop.f32.mrf.mxu0
    %v4182 = vadd.f32 0.0, %v4181
    %v4183 = vpop.f32.mrf.mxu0
    %4184 = vdwg.mxu0
    %4185 = vmatpush.bf16.msra.mxu0 0
    %4186 = vmatpush.bf16.msra.mxu0 0
    %4187 = vmatpush.bf16.msra.mxu0 0
    %4188 = vmatpush.bf16.msra.mxu0 0
    %4189 = vmatpush.bf16.msra.mxu0 0
    %4190 = vmatpush.bf16.msra.mxu0 0
    %4191 = vmatpush.bf16.msra.mxu0 %v3489
    %4192 = vmatpush.bf16.msra.mxu0 %v3425
    %4193 = vmatmul.bf16.gmra.mxu0 %v2827
    %v4194 = vpop.f32.mrf.mxu0
    %v4195 = vadd.f32 0.0, %v4194
    %v4196 = vpop.f32.mrf.mxu0
    %4197 = vdwg.mxu0
    %4198 = vmatpush.bf16.msra.mxu0 0
    %4199 = vmatpush.bf16.msra.mxu0 0
    %4200 = vmatpush.bf16.msra.mxu0 0
    %4201 = vmatpush.bf16.msra.mxu0 0
    %4202 = vmatpush.bf16.msra.mxu0 0
    %4203 = vmatpush.bf16.msra.mxu0 0
    %4204 = vmatpush.bf16.msra.mxu0 %v3490
    %4205 = vmatpush.bf16.msra.mxu0 %v3426
    %4206 = vmatmul.bf16.gmra.mxu0 %v2827
    %v4207 = vpop.f32.mrf.mxu0
    %v4208 = vadd.f32 0.0, %v4207
    %v4209 = vpop.f32.mrf.mxu0
    %4210 = vdwg.mxu0
    %4211 = vmatpush.bf16.msra.mxu0 0
    %4212 = vmatpush.bf16.msra.mxu0 0
    %4213 = vmatpush.bf16.msra.mxu0 0
    %4214 = vmatpush.bf16.msra.mxu0 0
    %4215 = vmatpush.bf16.msra.mxu0 0
    %4216 = vmatpush.bf16.msra.mxu0 0
    %4217 = vmatpush.bf16.msra.mxu0 %v3491
    %4218 = vmatpush.bf16.msra.mxu0 %v3427
    %4219 = vmatmul.bf16.gmra.mxu0 %v2827
    %v4220 = vpop.f32.mrf.mxu0
    %v4221 = vadd.f32 0.0, %v4220
    %v4222 = vpop.f32.mrf.mxu0
    %4223 = vdwg.mxu0
    %4224 = vmatpush.bf16.msra.mxu0 0
    %4225 = vmatpush.bf16.msra.mxu0 0
    %4226 = vmatpush.bf16.msra.mxu0 0
    %4227 = vmatpush.bf16.msra.mxu0 0
    %4228 = vmatpush.bf16.msra.mxu0 0
    %4229 = vmatpush.bf16.msra.mxu0 0
    %4230 = vmatpush.bf16.msra.mxu0 %v3492
    %4231 = vmatpush.bf16.msra.mxu0 %v3428
    %4232 = vmatmul.bf16.gmra.mxu0 %v2827
    %v4233 = vpop.f32.mrf.mxu0
    %v4234 = vadd.f32 0.0, %v4233
    %v4235 = vpop.f32.mrf.mxu0
    %4236 = vdwg.mxu0
    %4237 = vmatpush.bf16.msra.mxu0 0
    %4238 = vmatpush.bf16.msra.mxu0 0
    %4239 = vmatpush.bf16.msra.mxu0 0
    %4240 = vmatpush.bf16.msra.mxu0 0
    %4241 = vmatpush.bf16.msra.mxu0 0
    %4242 = vmatpush.bf16.msra.mxu0 0
    %4243 = vmatpush.bf16.msra.mxu0 %v3493
    %4244 = vmatpush.bf16.msra.mxu0 %v3429
    %4245 = vmatmul.bf16.gmra.mxu0 %v2827
    %v4246 = vpop.f32.mrf.mxu0
    %v4247 = vadd.f32 0.0, %v4246
    %v4248 = vpop.f32.mrf.mxu0
    %4249 = vdwg.mxu0
    %4250 = vmatpush.bf16.msra.mxu0 0
    %4251 = vmatpush.bf16.msra.mxu0 0
    %4252 = vmatpush.bf16.msra.mxu0 0
    %4253 = vmatpush.bf16.msra.mxu0 0
    %4254 = vmatpush.bf16.msra.mxu0 0
    %4255 = vmatpush.bf16.msra.mxu0 0
    %4256 = vmatpush.bf16.msra.mxu0 %v3494
    %4257 = vmatpush.bf16.msra.mxu0 %v3430
    %4258 = vmatmul.bf16.gmra.mxu0 %v2827
    %v4259 = vpop.f32.mrf.mxu0
    %v4260 = vadd.f32 0.0, %v4259
    %v4261 = vpop.f32.mrf.mxu0
    %4262 = vdwg.mxu0
    %4263 = vmatpush.bf16.msra.mxu0 0
    %4264 = vmatpush.bf16.msra.mxu0 0
    %4265 = vmatpush.bf16.msra.mxu0 0
    %4266 = vmatpush.bf16.msra.mxu0 0
    %4267 = vmatpush.bf16.msra.mxu0 0
    %4268 = vmatpush.bf16.msra.mxu0 0
    %4269 = vmatpush.bf16.msra.mxu0 %v3495
    %4270 = vmatpush.bf16.msra.mxu0 %v3431
    %4271 = vmatmul.bf16.gmra.mxu0 %v2827
    %v4272 = vpop.f32.mrf.mxu0
    %v4273 = vadd.f32 0.0, %v4272
    %v4274 = vpop.f32.mrf.mxu0
    %4275 = vdwg.mxu0
    %4276 = vmatpush.bf16.msra.mxu0 0
    %4277 = vmatpush.bf16.msra.mxu0 0
    %4278 = vmatpush.bf16.msra.mxu0 0
    %4279 = vmatpush.bf16.msra.mxu0 0
    %4280 = vmatpush.bf16.msra.mxu0 0
    %4281 = vmatpush.bf16.msra.mxu0 0
    %4282 = vmatpush.bf16.msra.mxu0 %v3496
    %4283 = vmatpush.bf16.msra.mxu0 %v3432
    %4284 = vmatmul.bf16.gmra.mxu0 %v2827
    %v4285 = vpop.f32.mrf.mxu0
    %v4286 = vadd.f32 0.0, %v4285
    %v4287 = vpop.f32.mrf.mxu0
    %4288 = vdwg.mxu0
    %4289 = vmatpush.bf16.msra.mxu0 0
    %4290 = vmatpush.bf16.msra.mxu0 0
    %4291 = vmatpush.bf16.msra.mxu0 0
    %4292 = vmatpush.bf16.msra.mxu0 0
    %4293 = vmatpush.bf16.msra.mxu0 0
    %4294 = vmatpush.bf16.msra.mxu0 0
    %4295 = vmatpush.bf16.msra.mxu0 %v3497
    %4296 = vmatpush.bf16.msra.mxu0 %v3433
    %4297 = vmatmul.bf16.gmra.mxu0 %v2827
    %v4298 = vpop.f32.mrf.mxu0
    %v4299 = vadd.f32 0.0, %v4298
    %v4300 = vpop.f32.mrf.mxu0
    %4301 = vdwg.mxu0
    %4302 = vmatpush.bf16.msra.mxu0 0
    %4303 = vmatpush.bf16.msra.mxu0 0
    %4304 = vmatpush.bf16.msra.mxu0 0
    %4305 = vmatpush.bf16.msra.mxu0 0
    %4306 = vmatpush.bf16.msra.mxu0 0
    %4307 = vmatpush.bf16.msra.mxu0 0
    %4308 = vmatpush.bf16.msra.mxu0 %v3498
    %4309 = vmatpush.bf16.msra.mxu0 %v3434
    %4310 = vmatmul.bf16.gmra.mxu0 %v2827
    %v4311 = vpop.f32.mrf.mxu0
    %v4312 = vadd.f32 0.0, %v4311
    %v4313 = vpop.f32.mrf.mxu0
    %4314 = vdwg.mxu0
    %4315 = vmatpush.bf16.msra.mxu0 0
    %4316 = vmatpush.bf16.msra.mxu0 0
    %4317 = vmatpush.bf16.msra.mxu0 0
    %4318 = vmatpush.bf16.msra.mxu0 0
    %4319 = vmatpush.bf16.msra.mxu0 0
    %4320 = vmatpush.bf16.msra.mxu0 0
    %4321 = vmatpush.bf16.msra.mxu0 %v3499
    %4322 = vmatpush.bf16.msra.mxu0 %v3435
    %4323 = vmatmul.bf16.gmra.mxu0 %v2827
    %v4324 = vpop.f32.mrf.mxu0
    %v4325 = vadd.f32 0.0, %v4324
    %v4326 = vpop.f32.mrf.mxu0
    %4327 = vdwg.mxu0
    %4328 = vmatpush.bf16.msra.mxu0 0
    %4329 = vmatpush.bf16.msra.mxu0 0
    %4330 = vmatpush.bf16.msra.mxu0 0
    %4331 = vmatpush.bf16.msra.mxu0 0
    %4332 = vmatpush.bf16.msra.mxu0 0
    %4333 = vmatpush.bf16.msra.mxu0 0
    %4334 = vmatpush.bf16.msra.mxu0 %v3500
    %4335 = vmatpush.bf16.msra.mxu0 %v3436
    %4336 = vmatmul.bf16.gmra.mxu0 %v2827
    %v4337 = vpop.f32.mrf.mxu0
    %v4338 = vadd.f32 0.0, %v4337
    %v4339 = vpop.f32.mrf.mxu0
    %4340 = vdwg.mxu0
    %4341 = vmatpush.bf16.msra.mxu0 0
    %4342 = vmatpush.bf16.msra.mxu0 0
    %4343 = vmatpush.bf16.msra.mxu0 0
    %4344 = vmatpush.bf16.msra.mxu0 0
    %4345 = vmatpush.bf16.msra.mxu0 0
    %4346 = vmatpush.bf16.msra.mxu0 0
    %4347 = vmatpush.bf16.msra.mxu0 %v3501
    %4348 = vmatpush.bf16.msra.mxu0 %v3437
    %4349 = vmatmul.bf16.gmra.mxu0 %v2827
    %v4350 = vpop.f32.mrf.mxu0
    %v4351 = vadd.f32 0.0, %v4350
    %v4352 = vpop.f32.mrf.mxu0
    %4353 = vdwg.mxu0
    %4354 = vmatpush.bf16.msra.mxu0 0
    %4355 = vmatpush.bf16.msra.mxu0 0
    %4356 = vmatpush.bf16.msra.mxu0 0
    %4357 = vmatpush.bf16.msra.mxu0 0
    %4358 = vmatpush.bf16.msra.mxu0 0
    %4359 = vmatpush.bf16.msra.mxu0 0
    %4360 = vmatpush.bf16.msra.mxu0 %v3502
    %4361 = vmatpush.bf16.msra.mxu0 %v3438
    %4362 = vmatmul.bf16.gmra.mxu0 %v2827
    %v4363 = vpop.f32.mrf.mxu0
    %v4364 = vadd.f32 0.0, %v4363
    %v4365 = vpop.f32.mrf.mxu0
    %4366 = vdwg.mxu0
    %4367 = vmatpush.bf16.msra.mxu0 0
    %4368 = vmatpush.bf16.msra.mxu0 0
    %4369 = vmatpush.bf16.msra.mxu0 0
    %4370 = vmatpush.bf16.msra.mxu0 0
    %4371 = vmatpush.bf16.msra.mxu0 0
    %4372 = vmatpush.bf16.msra.mxu0 0
    %4373 = vmatpush.bf16.msra.mxu0 %v3503
    %4374 = vmatpush.bf16.msra.mxu0 %v3439
    %4375 = vmatmul.bf16.gmra.mxu0 %v2827
    %v4376 = vpop.f32.mrf.mxu0
    %v4377 = vadd.f32 0.0, %v4376
    %v4378 = vpop.f32.mrf.mxu0
    %4379 = vdwg.mxu0
    %4380 = vmatpush.bf16.msra.mxu0 0
    %4381 = vmatpush.bf16.msra.mxu0 0
    %4382 = vmatpush.bf16.msra.mxu0 0
    %4383 = vmatpush.bf16.msra.mxu0 0
    %4384 = vmatpush.bf16.msra.mxu0 0
    %4385 = vmatpush.bf16.msra.mxu0 0
    %4386 = vmatpush.bf16.msra.mxu0 %v3504
    %4387 = vmatpush.bf16.msra.mxu0 %v3440
    %4388 = vmatmul.bf16.gmra.mxu0 %v2827
    %v4389 = vpop.f32.mrf.mxu0
    %v4390 = vadd.f32 0.0, %v4389
    %v4391 = vpop.f32.mrf.mxu0
    %4392 = vdwg.mxu0
    %4393 = vmatpush.bf16.msra.mxu0 0
    %4394 = vmatpush.bf16.msra.mxu0 0
    %4395 = vmatpush.bf16.msra.mxu0 0
    %4396 = vmatpush.bf16.msra.mxu0 0
    %4397 = vmatpush.bf16.msra.mxu0 0
    %4398 = vmatpush.bf16.msra.mxu0 0
    %4399 = vmatpush.bf16.msra.mxu0 %v3505
    %4400 = vmatpush.bf16.msra.mxu0 %v3441
    %4401 = vmatmul.bf16.gmra.mxu0 %v2827
    %v4402 = vpop.f32.mrf.mxu0
    %v4403 = vadd.f32 0.0, %v4402
    %v4404 = vpop.f32.mrf.mxu0
    %4405 = vdwg.mxu0
    %4406 = vmatpush.bf16.msra.mxu0 0
    %4407 = vmatpush.bf16.msra.mxu0 0
    %4408 = vmatpush.bf16.msra.mxu0 0
    %4409 = vmatpush.bf16.msra.mxu0 0
    %4410 = vmatpush.bf16.msra.mxu0 0
    %4411 = vmatpush.bf16.msra.mxu0 0
    %4412 = vmatpush.bf16.msra.mxu0 %v3506
    %4413 = vmatpush.bf16.msra.mxu0 %v3442
    %4414 = vmatmul.bf16.gmra.mxu0 %v2827
    %v4415 = vpop.f32.mrf.mxu0
    %v4416 = vadd.f32 0.0, %v4415
    %v4417 = vpop.f32.mrf.mxu0
    %4418 = vdwg.mxu0
    %4419 = vmatpush.bf16.msra.mxu0 0
    %4420 = vmatpush.bf16.msra.mxu0 0
    %4421 = vmatpush.bf16.msra.mxu0 0
    %4422 = vmatpush.bf16.msra.mxu0 0
    %4423 = vmatpush.bf16.msra.mxu0 0
    %4424 = vmatpush.bf16.msra.mxu0 0
    %4425 = vmatpush.bf16.msra.mxu0 %v3507
    %4426 = vmatpush.bf16.msra.mxu0 %v3443
    %4427 = vmatmul.bf16.gmra.mxu0 %v2827
    %v4428 = vpop.f32.mrf.mxu0
    %v4429 = vadd.f32 0.0, %v4428
    %v4430 = vpop.f32.mrf.mxu0
    %4431 = vdwg.mxu0
    %4432 = vmatpush.bf16.msra.mxu0 0
    %4433 = vmatpush.bf16.msra.mxu0 0
    %4434 = vmatpush.bf16.msra.mxu0 0
    %4435 = vmatpush.bf16.msra.mxu0 0
    %4436 = vmatpush.bf16.msra.mxu0 0
    %4437 = vmatpush.bf16.msra.mxu0 0
    %4438 = vmatpush.bf16.msra.mxu0 %v3508
    %4439 = vmatpush.bf16.msra.mxu0 %v3444
    %4440 = vmatmul.bf16.gmra.mxu0 %v2827
    %v4441 = vpop.f32.mrf.mxu0
    %v4442 = vadd.f32 0.0, %v4441
    %v4443 = vpop.f32.mrf.mxu0
    %4444 = vdwg.mxu0
    %4445 = vmatpush.bf16.msra.mxu0 0
    %4446 = vmatpush.bf16.msra.mxu0 0
    %4447 = vmatpush.bf16.msra.mxu0 0
    %4448 = vmatpush.bf16.msra.mxu0 0
    %4449 = vmatpush.bf16.msra.mxu0 0
    %4450 = vmatpush.bf16.msra.mxu0 0
    %4451 = vmatpush.bf16.msra.mxu0 %v3509
    %4452 = vmatpush.bf16.msra.mxu0 %v3445
    %4453 = vmatmul.bf16.gmra.mxu0 %v2827
    %v4454 = vpop.f32.mrf.mxu0
    %v4455 = vadd.f32 0.0, %v4454
    %v4456 = vpop.f32.mrf.mxu0
    %4457 = vdwg.mxu0
    %4458 = vmatpush.bf16.msra.mxu0 0
    %4459 = vmatpush.bf16.msra.mxu0 0
    %4460 = vmatpush.bf16.msra.mxu0 0
    %4461 = vmatpush.bf16.msra.mxu0 0
    %4462 = vmatpush.bf16.msra.mxu0 0
    %4463 = vmatpush.bf16.msra.mxu0 0
    %4464 = vmatpush.bf16.msra.mxu0 %v3510
    %4465 = vmatpush.bf16.msra.mxu0 %v3446
    %4466 = vmatmul.bf16.gmra.mxu0 %v2827
    %v4467 = vpop.f32.mrf.mxu0
    %v4468 = vadd.f32 0.0, %v4467
    %v4469 = vpop.f32.mrf.mxu0
    %4470 = vdwg.mxu0
    %v4471 = vlaneseq
    %v4472 = vand.u32 %v4471, 127
    %vm4473 = vcmp.eq.s32.totalorder %v4472, 0
    %v4474 = vsel %vm4473, %v2746, 0.0
    %vm4475 = vcmask 253952
    %v4476 = vsel %vm4475, %v4474, 0.0
    %4477 = vadd.xlane.f32.xlu0 %v4476
    %v4478 = vpop.xlane.xlu0 %4477
    %v4479 = vmul.f32 %v4478, %v3649
    %v4480 = vmul.f32 %v4478, %v3662
    %v4481 = vadd.f32 %v2869, %v4479
    %v4482 = vadd.f32 %v2870, %v4480
    %vm4483 = vcmp.eq.s32.totalorder %v4472, 1
    %v4484 = vsel %vm4483, %v2746, 0.0
    %v4485 = vsel %vm4475, %v4484, 0.0
    %4486 = vadd.xlane.f32.xlu0 %v4485
    %v4487 = vpop.xlane.xlu0 %4486
    %v4488 = vmul.f32 %v4487, %v3675
    %v4489 = vmul.f32 %v4487, %v3688
    %v4490 = vadd.f32 %v4481, %v4488
    %v4491 = vadd.f32 %v4482, %v4489
    %vm4492 = vcmp.eq.s32.totalorder %v4472, 2
    %v4493 = vsel %vm4492, %v2746, 0.0
    %v4494 = vsel %vm4475, %v4493, 0.0
    %4495 = vadd.xlane.f32.xlu0 %v4494
    %v4496 = vpop.xlane.xlu0 %4495
    %v4497 = vmul.f32 %v4496, %v3701
    %v4498 = vmul.f32 %v4496, %v3714
    %v4499 = vadd.f32 %v4490, %v4497
    %v4500 = vadd.f32 %v4491, %v4498
    %vm4501 = vcmp.eq.s32.totalorder %v4472, 3
    %v4502 = vsel %vm4501, %v2746, 0.0
    %v4503 = vsel %vm4475, %v4502, 0.0
    %4504 = vadd.xlane.f32.xlu0 %v4503
    %v4505 = vpop.xlane.xlu0 %4504
    %v4506 = vmul.f32 %v4505, %v3727
    %v4507 = vmul.f32 %v4505, %v3740
    %v4508 = vadd.f32 %v4499, %v4506
    %v4509 = vadd.f32 %v4500, %v4507
    %vm4510 = vcmp.eq.s32.totalorder %v4472, 4
    %v4511 = vsel %vm4510, %v2746, 0.0
    %v4512 = vsel %vm4475, %v4511, 0.0
    %4513 = vadd.xlane.f32.xlu0 %v4512
    %v4514 = vpop.xlane.xlu0 %4513
    %v4515 = vmul.f32 %v4514, %v3753
    %v4516 = vmul.f32 %v4514, %v3766
    %v4517 = vadd.f32 %v4508, %v4515
    %v4518 = vadd.f32 %v4509, %v4516
    %vm4519 = vcmp.eq.s32.totalorder %v4472, 5
    %v4520 = vsel %vm4519, %v2746, 0.0
    %v4521 = vsel %vm4475, %v4520, 0.0
    %4522 = vadd.xlane.f32.xlu0 %v4521
    %v4523 = vpop.xlane.xlu0 %4522
    %v4524 = vmul.f32 %v4523, %v3779
    %v4525 = vmul.f32 %v4523, %v3792
    %v4526 = vadd.f32 %v4517, %v4524
    %v4527 = vadd.f32 %v4518, %v4525
    %vm4528 = vcmp.eq.s32.totalorder %v4472, 6
    %v4529 = vsel %vm4528, %v2746, 0.0
    %v4530 = vsel %vm4475, %v4529, 0.0
    %4531 = vadd.xlane.f32.xlu0 %v4530
    %v4532 = vpop.xlane.xlu0 %4531
    %v4533 = vmul.f32 %v4532, %v3805
    %v4534 = vmul.f32 %v4532, %v3818
    %v4535 = vadd.f32 %v4526, %v4533
    %v4536 = vadd.f32 %v4527, %v4534
    %vm4537 = vcmp.eq.s32.totalorder %v4472, 7
    %v4538 = vsel %vm4537, %v2746, 0.0
    %v4539 = vsel %vm4475, %v4538, 0.0
    %4540 = vadd.xlane.f32.xlu0 %v4539
    %v4541 = vpop.xlane.xlu0 %4540
    %v4542 = vmul.f32 %v4541, %v3831
    %v4543 = vmul.f32 %v4541, %v3844
    %v4544 = vadd.f32 %v4535, %v4542
    %v4545 = vadd.f32 %v4536, %v4543
    %vm4546 = vcmp.eq.s32.totalorder %v4472, 8
    %v4547 = vsel %vm4546, %v2746, 0.0
    %v4548 = vsel %vm4475, %v4547, 0.0
    %4549 = vadd.xlane.f32.xlu0 %v4548
    %v4550 = vpop.xlane.xlu0 %4549
    %v4551 = vmul.f32 %v4550, %v3857
    %v4552 = vmul.f32 %v4550, %v3870
    %v4553 = vadd.f32 %v4544, %v4551
    %v4554 = vadd.f32 %v4545, %v4552
    %vm4555 = vcmp.eq.s32.totalorder %v4472, 9
    %v4556 = vsel %vm4555, %v2746, 0.0
    %v4557 = vsel %vm4475, %v4556, 0.0
    %4558 = vadd.xlane.f32.xlu0 %v4557
    %v4559 = vpop.xlane.xlu0 %4558
    %v4560 = vmul.f32 %v4559, %v3883
    %v4561 = vmul.f32 %v4559, %v3896
    %v4562 = vadd.f32 %v4553, %v4560
    %v4563 = vadd.f32 %v4554, %v4561
    %vm4564 = vcmp.eq.s32.totalorder %v4472, 10
    %v4565 = vsel %vm4564, %v2746, 0.0
    %v4566 = vsel %vm4475, %v4565, 0.0
    %4567 = vadd.xlane.f32.xlu0 %v4566
    %v4568 = vpop.xlane.xlu0 %4567
    %v4569 = vmul.f32 %v4568, %v3909
    %v4570 = vmul.f32 %v4568, %v3922
    %v4571 = vadd.f32 %v4562, %v4569
    %v4572 = vadd.f32 %v4563, %v4570
    %vm4573 = vcmp.eq.s32.totalorder %v4472, 11
    %v4574 = vsel %vm4573, %v2746, 0.0
    %v4575 = vsel %vm4475, %v4574, 0.0
    %4576 = vadd.xlane.f32.xlu0 %v4575
    %v4577 = vpop.xlane.xlu0 %4576
    %v4578 = vmul.f32 %v4577, %v3935
    %v4579 = vmul.f32 %v4577, %v3948
    %v4580 = vadd.f32 %v4571, %v4578
    %v4581 = vadd.f32 %v4572, %v4579
    %vm4582 = vcmp.eq.s32.totalorder %v4472, 12
    %v4583 = vsel %vm4582, %v2746, 0.0
    %v4584 = vsel %vm4475, %v4583, 0.0
    %4585 = vadd.xlane.f32.xlu0 %v4584
    %v4586 = vpop.xlane.xlu0 %4585
    %v4587 = vmul.f32 %v4586, %v3961
    %v4588 = vmul.f32 %v4586, %v3974
    %v4589 = vadd.f32 %v4580, %v4587
    %v4590 = vadd.f32 %v4581, %v4588
    %vm4591 = vcmp.eq.s32.totalorder %v4472, 13
    %v4592 = vsel %vm4591, %v2746, 0.0
    %v4593 = vsel %vm4475, %v4592, 0.0
    %4594 = vadd.xlane.f32.xlu0 %v4593
    %v4595 = vpop.xlane.xlu0 %4594
    %v4596 = vmul.f32 %v4595, %v3987
    %v4597 = vmul.f32 %v4595, %v4000
    %v4598 = vadd.f32 %v4589, %v4596
    %v4599 = vadd.f32 %v4590, %v4597
    %vm4600 = vcmp.eq.s32.totalorder %v4472, 14
    %v4601 = vsel %vm4600, %v2746, 0.0
    %v4602 = vsel %vm4475, %v4601, 0.0
    %4603 = vadd.xlane.f32.xlu0 %v4602
    %v4604 = vpop.xlane.xlu0 %4603
    %v4605 = vmul.f32 %v4604, %v4013
    %v4606 = vmul.f32 %v4604, %v4026
    %v4607 = vadd.f32 %v4598, %v4605
    %v4608 = vadd.f32 %v4599, %v4606
    %vm4609 = vcmp.eq.s32.totalorder %v4472, 15
    %v4610 = vsel %vm4609, %v2746, 0.0
    %v4611 = vsel %vm4475, %v4610, 0.0
    %4612 = vadd.xlane.f32.xlu0 %v4611
    %v4613 = vpop.xlane.xlu0 %4612
    %v4614 = vmul.f32 %v4613, %v4039
    %v4615 = vmul.f32 %v4613, %v4052
    %v4616 = vadd.f32 %v4607, %v4614
    %v4617 = vadd.f32 %v4608, %v4615
    %vm4618 = vcmp.eq.s32.totalorder %v4472, 16
    %v4619 = vsel %vm4618, %v2746, 0.0
    %v4620 = vsel %vm4475, %v4619, 0.0
    %4621 = vadd.xlane.f32.xlu0 %v4620
    %v4622 = vpop.xlane.xlu0 %4621
    %v4623 = vmul.f32 %v4622, %v4065
    %v4624 = vmul.f32 %v4622, %v4078
    %v4625 = vadd.f32 %v4616, %v4623
    %v4626 = vadd.f32 %v4617, %v4624
    %vm4627 = vcmp.eq.s32.totalorder %v4472, 17
    %v4628 = vsel %vm4627, %v2746, 0.0
    %v4629 = vsel %vm4475, %v4628, 0.0
    %4630 = vadd.xlane.f32.xlu0 %v4629
    %v4631 = vpop.xlane.xlu0 %4630
    %v4632 = vmul.f32 %v4631, %v4091
    %v4633 = vmul.f32 %v4631, %v4104
    %v4634 = vadd.f32 %v4625, %v4632
    %v4635 = vadd.f32 %v4626, %v4633
    %vm4636 = vcmp.eq.s32.totalorder %v4472, 18
    %v4637 = vsel %vm4636, %v2746, 0.0
    %v4638 = vsel %vm4475, %v4637, 0.0
    %4639 = vadd.xlane.f32.xlu0 %v4638
    %v4640 = vpop.xlane.xlu0 %4639
    %v4641 = vmul.f32 %v4640, %v4117
    %v4642 = vmul.f32 %v4640, %v4130
    %v4643 = vadd.f32 %v4634, %v4641
    %v4644 = vadd.f32 %v4635, %v4642
    %vm4645 = vcmp.eq.s32.totalorder %v4472, 19
    %v4646 = vsel %vm4645, %v2746, 0.0
    %v4647 = vsel %vm4475, %v4646, 0.0
    %4648 = vadd.xlane.f32.xlu0 %v4647
    %v4649 = vpop.xlane.xlu0 %4648
    %v4650 = vmul.f32 %v4649, %v4143
    %v4651 = vmul.f32 %v4649, %v4156
    %v4652 = vadd.f32 %v4643, %v4650
    %v4653 = vadd.f32 %v4644, %v4651
    %vm4654 = vcmp.eq.s32.totalorder %v4472, 20
    %v4655 = vsel %vm4654, %v2746, 0.0
    %v4656 = vsel %vm4475, %v4655, 0.0
    %4657 = vadd.xlane.f32.xlu0 %v4656
    %v4658 = vpop.xlane.xlu0 %4657
    %v4659 = vmul.f32 %v4658, %v4169
    %v4660 = vmul.f32 %v4658, %v4182
    %v4661 = vadd.f32 %v4652, %v4659
    %v4662 = vadd.f32 %v4653, %v4660
    %vm4663 = vcmp.eq.s32.totalorder %v4472, 21
    %v4664 = vsel %vm4663, %v2746, 0.0
    %v4665 = vsel %vm4475, %v4664, 0.0
    %4666 = vadd.xlane.f32.xlu0 %v4665
    %v4667 = vpop.xlane.xlu0 %4666
    %v4668 = vmul.f32 %v4667, %v4195
    %v4669 = vmul.f32 %v4667, %v4208
    %v4670 = vadd.f32 %v4661, %v4668
    %v4671 = vadd.f32 %v4662, %v4669
    %vm4672 = vcmp.eq.s32.totalorder %v4472, 22
    %v4673 = vsel %vm4672, %v2746, 0.0
    %v4674 = vsel %vm4475, %v4673, 0.0
    %4675 = vadd.xlane.f32.xlu0 %v4674
    %v4676 = vpop.xlane.xlu0 %4675
    %v4677 = vmul.f32 %v4676, %v4221
    %v4678 = vmul.f32 %v4676, %v4234
    %v4679 = vadd.f32 %v4670, %v4677
    %v4680 = vadd.f32 %v4671, %v4678
    %vm4681 = vcmp.eq.s32.totalorder %v4472, 23
    %v4682 = vsel %vm4681, %v2746, 0.0
    %v4683 = vsel %vm4475, %v4682, 0.0
    %4684 = vadd.xlane.f32.xlu0 %v4683
    %v4685 = vpop.xlane.xlu0 %4684
    %v4686 = vmul.f32 %v4685, %v4247
    %v4687 = vmul.f32 %v4685, %v4260
    %v4688 = vadd.f32 %v4679, %v4686
    %v4689 = vadd.f32 %v4680, %v4687
    %vm4690 = vcmp.eq.s32.totalorder %v4472, 24
    %v4691 = vsel %vm4690, %v2746, 0.0
    %v4692 = vsel %vm4475, %v4691, 0.0
    %4693 = vadd.xlane.f32.xlu0 %v4692
    %v4694 = vpop.xlane.xlu0 %4693
    %v4695 = vmul.f32 %v4694, %v4273
    %v4696 = vmul.f32 %v4694, %v4286
    %v4697 = vadd.f32 %v4688, %v4695
    %v4698 = vadd.f32 %v4689, %v4696
    %vm4699 = vcmp.eq.s32.totalorder %v4472, 25
    %v4700 = vsel %vm4699, %v2746, 0.0
    %v4701 = vsel %vm4475, %v4700, 0.0
    %4702 = vadd.xlane.f32.xlu0 %v4701
    %v4703 = vpop.xlane.xlu0 %4702
    %v4704 = vmul.f32 %v4703, %v4299
    %v4705 = vmul.f32 %v4703, %v4312
    %v4706 = vadd.f32 %v4697, %v4704
    %v4707 = vadd.f32 %v4698, %v4705
    %vm4708 = vcmp.eq.s32.totalorder %v4472, 26
    %v4709 = vsel %vm4708, %v2746, 0.0
    %v4710 = vsel %vm4475, %v4709, 0.0
    %4711 = vadd.xlane.f32.xlu0 %v4710
    %v4712 = vpop.xlane.xlu0 %4711
    %v4713 = vmul.f32 %v4712, %v4325
    %v4714 = vmul.f32 %v4712, %v4338
    %v4715 = vadd.f32 %v4706, %v4713
    %v4716 = vadd.f32 %v4707, %v4714
    %vm4717 = vcmp.eq.s32.totalorder %v4472, 27
    %v4718 = vsel %vm4717, %v2746, 0.0
    %v4719 = vsel %vm4475, %v4718, 0.0
    %4720 = vadd.xlane.f32.xlu0 %v4719
    %v4721 = vpop.xlane.xlu0 %4720
    %v4722 = vmul.f32 %v4721, %v4351
    %v4723 = vmul.f32 %v4721, %v4364
    %v4724 = vadd.f32 %v4715, %v4722
    %v4725 = vadd.f32 %v4716, %v4723
    %vm4726 = vcmp.eq.s32.totalorder %v4472, 28
    %v4727 = vsel %vm4726, %v2746, 0.0
    %v4728 = vsel %vm4475, %v4727, 0.0
    %4729 = vadd.xlane.f32.xlu0 %v4728
    %v4730 = vpop.xlane.xlu0 %4729
    %v4731 = vmul.f32 %v4730, %v4377
    %v4732 = vmul.f32 %v4730, %v4390
    %v4733 = vadd.f32 %v4724, %v4731
    %v4734 = vadd.f32 %v4725, %v4732
    %vm4735 = vcmp.eq.s32.totalorder %v4472, 29
    %v4736 = vsel %vm4735, %v2746, 0.0
    %v4737 = vsel %vm4475, %v4736, 0.0
    %4738 = vadd.xlane.f32.xlu0 %v4737
    %v4739 = vpop.xlane.xlu0 %4738
    %v4740 = vmul.f32 %v4739, %v4403
    %v4741 = vmul.f32 %v4739, %v4416
    %v4742 = vadd.f32 %v4733, %v4740
    %v4743 = vadd.f32 %v4734, %v4741
    %vm4744 = vcmp.eq.s32.totalorder %v4472, 30
    %v4745 = vsel %vm4744, %v2746, 0.0
    %v4746 = vsel %vm4475, %v4745, 0.0
    %4747 = vadd.xlane.f32.xlu0 %v4746
    %v4748 = vpop.xlane.xlu0 %4747
    %v4749 = vmul.f32 %v4748, %v4429
    %v4750 = vmul.f32 %v4748, %v4442
    %v4751 = vadd.f32 %v4742, %v4749
    %v4752 = vadd.f32 %v4743, %v4750
    %vm4753 = vcmp.eq.s32.totalorder %v4472, 31
    %v4754 = vsel %vm4753, %v2746, 0.0
    %v4755 = vsel %vm4475, %v4754, 0.0
    %4756 = vadd.xlane.f32.xlu0 %v4755
    %v4757 = vpop.xlane.xlu0 %4756
    %v4758 = vmul.f32 %v4757, %v4455
    %v4759 = vmul.f32 %v4757, %v4468
    %v4760 = vadd.f32 %v4751, %v4758
    %v4761 = vadd.f32 %v4752, %v4759
    %v4762 = vmax.f32 %v4760, 0.0
    %v4763 = vmax.f32 %v4761, 0.0
    %v4764 = vpack.c.bf16 %v4762, %v4762
    %v4765 = vpack.c.bf16 %v4763, %v4763
    %v4766 = vld [vmem:[#allocation8] sm:$0xff]
    %v4767 = vld [vmem:[#allocation8 + $0x8] sm:$0xff]
    %v4768 = vld [vmem:[#allocation8 + $0x10] sm:$0xff]
    %v4769 = vld [vmem:[#allocation8 + $0x18] sm:$0xff]
    %v4770 = vld [vmem:[#allocation8 + $0x20] sm:$0xff]
    %v4771 = vld [vmem:[#allocation8 + $0x28] sm:$0xff]
    %v4772 = vld [vmem:[#allocation8 + $0x30] sm:$0xff]
    %v4773 = vld [vmem:[#allocation8 + $0x38] sm:$0xff]
    %v4774 = vld [vmem:[#allocation8 + $0x40] sm:$0xff]
    %v4775 = vld [vmem:[#allocation8 + $0x48] sm:$0xff]
    %v4776 = vld [vmem:[#allocation8 + $0x50] sm:$0xff]
    %v4777 = vld [vmem:[#allocation8 + $0x58] sm:$0xff]
    %v4778 = vld [vmem:[#allocation8 + $0x60] sm:$0xff]
    %v4779 = vld [vmem:[#allocation8 + $0x68] sm:$0xff]
    %v4780 = vld [vmem:[#allocation8 + $0x70] sm:$0xff]
    %v4781 = vld [vmem:[#allocation8 + $0x78] sm:$0xff]
    %v4782 = vld [vmem:[#allocation8 + $0x80] sm:$0xff]
    %v4783 = vld [vmem:[#allocation8 + $0x88] sm:$0xff]
    %v4784 = vld [vmem:[#allocation8 + $0x90] sm:$0xff]
    %v4785 = vld [vmem:[#allocation8 + $0x98] sm:$0xff]
    %v4786 = vld [vmem:[#allocation8 + $0xa0] sm:$0xff]
    %v4787 = vld [vmem:[#allocation8 + $0xa8] sm:$0xff]
    %v4788 = vld [vmem:[#allocation8 + $0xb0] sm:$0xff]
    %v4789 = vld [vmem:[#allocation8 + $0xb8] sm:$0xff]
    %v4790 = vld [vmem:[#allocation8 + $0xc0] sm:$0xff]
    %v4791 = vld [vmem:[#allocation8 + $0xc8] sm:$0xff]
    %v4792 = vld [vmem:[#allocation8 + $0xd0] sm:$0xff]
    %v4793 = vld [vmem:[#allocation8 + $0xd8] sm:$0xff]
    %v4794 = vld [vmem:[#allocation8 + $0xe0] sm:$0xff]
    %v4795 = vld [vmem:[#allocation8 + $0xe8] sm:$0xff]
    %v4796 = vld [vmem:[#allocation8 + $0xf0] sm:$0xff]
    %v4797 = vld [vmem:[#allocation8 + $0xf8] sm:$0xff]
    %v4798 = vld [vmem:[%s57] sm:$0x3]
    %v4831 = vunpack.c.l.b16 %v4766
    %v4832 = vunpack.c.h.b16 %v4766
    %v4833 = vunpack.c.l.b16 %v4767
    %v4834 = vunpack.c.h.b16 %v4767
    %v4835 = vunpack.c.l.b16 %v4768
    %v4836 = vunpack.c.h.b16 %v4768
    %v4837 = vunpack.c.l.b16 %v4769
    %v4838 = vunpack.c.h.b16 %v4769
    %v4839 = vunpack.c.l.b16 %v4770
    %v4840 = vunpack.c.h.b16 %v4770
    %v4841 = vunpack.c.l.b16 %v4771
    %v4842 = vunpack.c.h.b16 %v4771
    %v4843 = vunpack.c.l.b16 %v4772
    %v4844 = vunpack.c.h.b16 %v4772
    %v4845 = vunpack.c.l.b16 %v4773
    %v4846 = vunpack.c.h.b16 %v4773
    %v4847 = vunpack.c.l.b16 %v4774
    %v4848 = vunpack.c.h.b16 %v4774
    %v4849 = vunpack.c.l.b16 %v4775
    %v4850 = vunpack.c.h.b16 %v4775
    %v4851 = vunpack.c.l.b16 %v4776
    %v4852 = vunpack.c.h.b16 %v4776
    %v4853 = vunpack.c.l.b16 %v4777
    %v4854 = vunpack.c.h.b16 %v4777
    %v4855 = vunpack.c.l.b16 %v4778
    %v4856 = vunpack.c.h.b16 %v4778
    %v4857 = vunpack.c.l.b16 %v4779
    %v4858 = vunpack.c.h.b16 %v4779
    %v4859 = vunpack.c.l.b16 %v4780
    %v4860 = vunpack.c.h.b16 %v4780
    %v4861 = vunpack.c.l.b16 %v4781
    %v4862 = vunpack.c.h.b16 %v4781
    %v4863 = vunpack.c.l.b16 %v4782
    %v4864 = vunpack.c.h.b16 %v4782
    %v4865 = vunpack.c.l.b16 %v4783
    %v4866 = vunpack.c.h.b16 %v4783
    %v4867 = vunpack.c.l.b16 %v4784
    %v4868 = vunpack.c.h.b16 %v4784
    %v4869 = vunpack.c.l.b16 %v4785
    %v4870 = vunpack.c.h.b16 %v4785
    %v4871 = vunpack.c.l.b16 %v4786
    %v4872 = vunpack.c.h.b16 %v4786
    %v4873 = vunpack.c.l.b16 %v4787
    %v4874 = vunpack.c.h.b16 %v4787
    %v4875 = vunpack.c.l.b16 %v4788
    %v4876 = vunpack.c.h.b16 %v4788
    %v4877 = vunpack.c.l.b16 %v4789
    %v4878 = vunpack.c.h.b16 %v4789
    %v4879 = vunpack.c.l.b16 %v4790
    %v4880 = vunpack.c.h.b16 %v4790
    %v4881 = vunpack.c.l.b16 %v4791
    %v4882 = vunpack.c.h.b16 %v4791
    %v4883 = vunpack.c.l.b16 %v4792
    %v4884 = vunpack.c.h.b16 %v4792
    %v4885 = vunpack.c.l.b16 %v4793
    %v4886 = vunpack.c.h.b16 %v4793
    %v4887 = vunpack.c.l.b16 %v4794
    %v4888 = vunpack.c.h.b16 %v4794
    %v4889 = vunpack.c.l.b16 %v4795
    %v4890 = vunpack.c.h.b16 %v4795
    %v4891 = vunpack.c.l.b16 %v4796
    %v4892 = vunpack.c.h.b16 %v4796
    %v4893 = vunpack.c.l.b16 %v4797
    %v4894 = vunpack.c.h.b16 %v4797
    %v4895 = vpack.c.b16 %v4833, %v4831
    %v4896 = vpack.c.b16 %v4834, %v4832
    %v4897 = vpack.c.b16 %v4837, %v4835
    %v4898 = vpack.c.b16 %v4838, %v4836
    %v4899 = vpack.c.b16 %v4841, %v4839
    %v4900 = vpack.c.b16 %v4842, %v4840
    %v4901 = vpack.c.b16 %v4845, %v4843
    %v4902 = vpack.c.b16 %v4846, %v4844
    %v4903 = vpack.c.b16 %v4849, %v4847
    %v4904 = vpack.c.b16 %v4850, %v4848
    %v4905 = vpack.c.b16 %v4853, %v4851
    %v4906 = vpack.c.b16 %v4854, %v4852
    %v4907 = vpack.c.b16 %v4857, %v4855
    %v4908 = vpack.c.b16 %v4858, %v4856
    %v4909 = vpack.c.b16 %v4861, %v4859
    %v4910 = vpack.c.b16 %v4862, %v4860
    %v4911 = vpack.c.b16 %v4865, %v4863
    %v4912 = vpack.c.b16 %v4866, %v4864
    %v4913 = vpack.c.b16 %v4869, %v4867
    %v4914 = vpack.c.b16 %v4870, %v4868
    %v4915 = vpack.c.b16 %v4873, %v4871
    %v4916 = vpack.c.b16 %v4874, %v4872
    %v4917 = vpack.c.b16 %v4877, %v4875
    %v4918 = vpack.c.b16 %v4878, %v4876
    %v4919 = vpack.c.b16 %v4881, %v4879
    %v4920 = vpack.c.b16 %v4882, %v4880
    %v4921 = vpack.c.b16 %v4885, %v4883
    %v4922 = vpack.c.b16 %v4886, %v4884
    %v4923 = vpack.c.b16 %v4889, %v4887
    %v4924 = vpack.c.b16 %v4890, %v4888
    %v4925 = vpack.c.b16 %v4893, %v4891
    %v4926 = vpack.c.b16 %v4894, %v4892
    %v4960 = vperm.slane %v4798, 0
    %v4961 = vperm.slane %v4798, 1
    %4964 = vmatpush.bf16.msra.mxu0 %v4909
    %4965 = vmatpush.bf16.msra.mxu0 %v4907
    %4966 = vmatpush.bf16.msra.mxu0 %v4905
    %4967 = vmatpush.bf16.msra.mxu0 %v4903
    %4968 = vmatpush.bf16.msra.mxu0 %v4901
    %4969 = vmatpush.bf16.msra.mxu0 %v4899
    %4970 = vmatpush.bf16.msra.mxu0 %v4897
    %4971 = vmatpush.bf16.msra.mxu0 %v4895
    %4972 = vmatmul.bf16.gmra.mxu0 %v4764
    %v4973 = vpop.f32.mrf.mxu0
    %v4974 = vadd.f32 %v4960, %v4973
    %v4975 = vpop.f32.mrf.mxu0
    %4976 = vdwg.mxu0
    %4977 = vmatpush.bf16.msra.mxu0 %v4925
    %4978 = vmatpush.bf16.msra.mxu0 %v4923
    %4979 = vmatpush.bf16.msra.mxu0 %v4921
    %4980 = vmatpush.bf16.msra.mxu0 %v4919
    %4981 = vmatpush.bf16.msra.mxu0 %v4917
    %4982 = vmatpush.bf16.msra.mxu0 %v4915
    %4983 = vmatpush.bf16.msra.mxu0 %v4913
    %4984 = vmatpush.bf16.msra.mxu0 %v4911
    %4985 = vmatmul.bf16.gmra.mxu0 %v4765
    %v4986 = vpop.f32.mrf.mxu0
    %v4987 = vadd.f32 %v4974, %v4986
    %v4988 = vpop.f32.mrf.mxu0
    %4989 = vdwg.mxu0
    %4990 = vmatpush.bf16.msra.mxu0 %v4910
    %4991 = vmatpush.bf16.msra.mxu0 %v4908
    %4992 = vmatpush.bf16.msra.mxu0 %v4906
    %4993 = vmatpush.bf16.msra.mxu0 %v4904
    %4994 = vmatpush.bf16.msra.mxu0 %v4902
    %4995 = vmatpush.bf16.msra.mxu0 %v4900
    %4996 = vmatpush.bf16.msra.mxu0 %v4898
    %4997 = vmatpush.bf16.msra.mxu0 %v4896
    %4998 = vmatmul.bf16.gmra.mxu0 %v4764
    %v4999 = vpop.f32.mrf.mxu0
    %v5000 = vadd.f32 %v4961, %v4999
    %v5001 = vpop.f32.mrf.mxu0
    %5002 = vdwg.mxu0
    %5003 = vmatpush.bf16.msra.mxu0 %v4926
    %5004 = vmatpush.bf16.msra.mxu0 %v4924
    %5005 = vmatpush.bf16.msra.mxu0 %v4922
    %5006 = vmatpush.bf16.msra.mxu0 %v4920
    %5007 = vmatpush.bf16.msra.mxu0 %v4918
    %5008 = vmatpush.bf16.msra.mxu0 %v4916
    %5009 = vmatpush.bf16.msra.mxu0 %v4914
    %5010 = vmatpush.bf16.msra.mxu0 %v4912
    %5011 = vmatmul.bf16.gmra.mxu0 %v4765
    %v5012 = vpop.f32.mrf.mxu0
    %v5013 = vadd.f32 %v5000, %v5012
    %v5014 = vpop.f32.mrf.mxu0
    %5015 = vdwg.mxu0
    %v5016 = vmax.f32 %v4987, 0.0
    %v5017 = vmax.f32 %v5013, 0.0
    %v5020 = vrot.slane %v5017, 7
    %vm5021 = vcmask 1040384
    %v5022 = vsel %vm5021, %v5016, %v5020
    %v5024 = vlaneseq
    %vm5025 = vcmp.ge.s32.totalorder %v5024, 0
    %vm5026 = vcmp.lt.s32.totalorder %v5024, 256
    %vm5027 = vmand %vm5025, %vm5026
    %5028 = vst.msk [vmem:[#allocation9] sm:$0x3] %vm5027, %v5022
    %v5029 = vpack.c.bf16 %v5016, %v5016
    %v5030 = vpack.c.bf16 %v5017, %v5017
    %v5031 = vld [vmem:[%s59] sm:$0xf]
    %v5032 = vld [vmem:[%s59 + $0x4] sm:$0xf]
    %v5033 = vld [vmem:[%s59 + $0x8] sm:$0xf]
    %v5034 = vld [vmem:[%s59 + $0xc] sm:$0xf]
    %v5035 = vld [vmem:[%s59 + $0x10] sm:$0xf]
    %v5036 = vld [vmem:[%s59 + $0x14] sm:$0xf]
    %v5037 = vld [vmem:[%s59 + $0x18] sm:$0xf]
    %v5038 = vld [vmem:[%s59 + $0x1c] sm:$0xf]
    %v5039 = vld [vmem:[%s59 + $0x20] sm:$0xf]
    %v5040 = vld [vmem:[%s59 + $0x24] sm:$0xf]
    %v5041 = vld [vmem:[%s59 + $0x28] sm:$0xf]
    %v5042 = vld [vmem:[%s59 + $0x2c] sm:$0xf]
    %v5043 = vld [vmem:[%s59 + $0x30] sm:$0xf]
    %v5044 = vld [vmem:[%s59 + $0x34] sm:$0xf]
    %v5045 = vld [vmem:[%s59 + $0x38] sm:$0xf]
    %v5046 = vld [vmem:[%s59 + $0x3c] sm:$0xf]
    %v5047 = vld [vmem:[%s59 + $0x40] sm:$0xf]
    %v5048 = vld [vmem:[%s59 + $0x44] sm:$0xf]
    %v5049 = vld [vmem:[%s59 + $0x48] sm:$0xf]
    %v5050 = vld [vmem:[%s59 + $0x4c] sm:$0xf]
    %v5051 = vld [vmem:[%s59 + $0x50] sm:$0xf]
    %v5052 = vld [vmem:[%s59 + $0x54] sm:$0xf]
    %v5053 = vld [vmem:[%s59 + $0x58] sm:$0xf]
    %v5054 = vld [vmem:[%s59 + $0x5c] sm:$0xf]
    %v5055 = vld [vmem:[%s59 + $0x60] sm:$0xf]
    %v5056 = vld [vmem:[%s59 + $0x64] sm:$0xf]
    %v5057 = vld [vmem:[%s59 + $0x68] sm:$0xf]
    %v5058 = vld [vmem:[%s59 + $0x6c] sm:$0xf]
    %v5059 = vld [vmem:[%s59 + $0x70] sm:$0xf]
    %v5060 = vld [vmem:[%s59 + $0x74] sm:$0xf]
    %v5061 = vld [vmem:[%s59 + $0x78] sm:$0xf]
    %v5062 = vld [vmem:[%s59 + $0x7c] sm:$0xf]
    %v5063 = vld [vmem:[%s61] sm:$0x1]
    %v5096 = vunpack.c.l.b16 %v5031
    %v5097 = vunpack.c.l.b16 %v5032
    %v5098 = vunpack.c.l.b16 %v5033
    %v5099 = vunpack.c.l.b16 %v5034
    %v5100 = vunpack.c.l.b16 %v5035
    %v5101 = vunpack.c.l.b16 %v5036
    %v5102 = vunpack.c.l.b16 %v5037
    %v5103 = vunpack.c.l.b16 %v5038
    %v5104 = vunpack.c.l.b16 %v5039
    %v5105 = vunpack.c.l.b16 %v5040
    %v5106 = vunpack.c.l.b16 %v5041
    %v5107 = vunpack.c.l.b16 %v5042
    %v5108 = vunpack.c.l.b16 %v5043
    %v5109 = vunpack.c.l.b16 %v5044
    %v5110 = vunpack.c.l.b16 %v5045
    %v5111 = vunpack.c.l.b16 %v5046
    %v5112 = vunpack.c.l.b16 %v5047
    %v5113 = vunpack.c.l.b16 %v5048
    %v5114 = vunpack.c.l.b16 %v5049
    %v5115 = vunpack.c.l.b16 %v5050
    %v5116 = vunpack.c.l.b16 %v5051
    %v5117 = vunpack.c.l.b16 %v5052
    %v5118 = vunpack.c.l.b16 %v5053
    %v5119 = vunpack.c.l.b16 %v5054
    %v5120 = vunpack.c.l.b16 %v5055
    %v5121 = vunpack.c.l.b16 %v5056
    %v5122 = vunpack.c.l.b16 %v5057
    %v5123 = vunpack.c.l.b16 %v5058
    %v5124 = vunpack.c.l.b16 %v5059
    %v5125 = vunpack.c.l.b16 %v5060
    %v5126 = vunpack.c.l.b16 %v5061
    %v5127 = vunpack.c.l.b16 %v5062
    %v5128 = vpack.c.b16 %v5097, %v5096
    %v5129 = vpack.c.b16 %v5099, %v5098
    %v5130 = vpack.c.b16 %v5101, %v5100
    %v5131 = vpack.c.b16 %v5103, %v5102
    %v5132 = vpack.c.b16 %v5105, %v5104
    %v5133 = vpack.c.b16 %v5107, %v5106
    %v5134 = vpack.c.b16 %v5109, %v5108
    %v5135 = vpack.c.b16 %v5111, %v5110
    %v5136 = vpack.c.b16 %v5113, %v5112
    %v5137 = vpack.c.b16 %v5115, %v5114
    %v5138 = vpack.c.b16 %v5117, %v5116
    %v5139 = vpack.c.b16 %v5119, %v5118
    %v5140 = vpack.c.b16 %v5121, %v5120
    %v5141 = vpack.c.b16 %v5123, %v5122
    %v5142 = vpack.c.b16 %v5125, %v5124
    %v5143 = vpack.c.b16 %v5127, %v5126
    %5160 = vmatpush.bf16.msra.mxu0 %v5135
    %5161 = vmatpush.bf16.msra.mxu0 %v5134
    %5162 = vmatpush.bf16.msra.mxu0 %v5133
    %5163 = vmatpush.bf16.msra.mxu0 %v5132
    %5164 = vmatpush.bf16.msra.mxu0 %v5131
    %5165 = vmatpush.bf16.msra.mxu0 %v5130
    %5166 = vmatpush.bf16.msra.mxu0 %v5129
    %5167 = vmatpush.bf16.msra.mxu0 %v5128
    %5168 = vmatmul.bf16.gmra.mxu0 %v5029
    %v5169 = vpop.f32.mrf.mxu0
    %v5170 = vadd.f32 %v5063, %v5169
    %v5171 = vpop.f32.mrf.mxu0
    %5172 = vdwg.mxu0
    %5173 = vmatpush.bf16.msra.mxu0 %v5143
    %5174 = vmatpush.bf16.msra.mxu0 %v5142
    %5175 = vmatpush.bf16.msra.mxu0 %v5141
    %5176 = vmatpush.bf16.msra.mxu0 %v5140
    %5177 = vmatpush.bf16.msra.mxu0 %v5139
    %5178 = vmatpush.bf16.msra.mxu0 %v5138
    %5179 = vmatpush.bf16.msra.mxu0 %v5137
    %5180 = vmatpush.bf16.msra.mxu0 %v5136
    %5181 = vmatmul.bf16.gmra.mxu0 %v5030
    %v5182 = vpop.f32.mrf.mxu0
    %v5183 = vadd.f32 %v5170, %v5182
    %v5184 = vpop.f32.mrf.mxu0
    %5185 = vdwg.mxu0
    %vm5186 = vcmask 8192
    %5187 = vst.msk [vmem:[#allocation10] sm:$0x1] %vm5186, %v5183
    %v5188 = vsel %vm5186, %v5183, -inf
    %5189 = vmax.xlane.f32.xlu0 %v5188
    %v5190 = vpop.xlane.xlu0 %5189
    %v5191 = vsub.f32 %v5183, %v5190
    %v5192 = vmul.f32 %v5191, 1.442695
    %v5193 = vpow.pop %v5192
    %v5194 = vsel %vm5186, %v5193, 0.0
    %5195 = vadd.xlane.f32.xlu0 %v5194
    %v5196 = vpop.xlane.xlu0 %5195
    %v5197 = vrcp.pop %v5196
    %v5198 = vmul.f32 %v5196, %v5197
    %v5199 = vsub.f32 1.0, %v5198
    %v5200 = vmul.f32 %v5197, %v5199
    %v5201 = vadd.f32 %v5197, %v5200
    %vm5202 = vweird.f32 %v5196
    %vm5203 = vweird.f32 %v5197
    %vm5204 = vmor %vm5202, %vm5203
    %v5205 = vsel %vm5204, %v5197, %v5201
    %v5206 = vand.u32 2147483647, %v5196
    %vm5207 = vcmp.eq.f32.partialorder %v5206, 8.507059e+37
    %v5208 = vand.u32 %v5196, 2147483648
    %v5209 = vor.u32 1.1754944e-38, %v5208
    %v5210 = vsel %vm5207, %v5209, %v5205
    %v5211 = vmul.f32 %v5193, %v5210
    %5212 = vst.msk [vmem:[#allocation12] sm:$0x1] %vm5186, %v5211
    %v5213 = vcvt.s32.f32 %v4472
    %vm5214 = vcmp.ge.f32.partialorder %v5183, %v5190
    %v5215 = vsel %vm5214, %v5213, 2.0
    %v5216 = vsel %vm5186, %v5215, inf
    %5217 = vmin.xlane.f32.xlu0 %v5216
    %v5218 = vpop.xlane.xlu0 %5217
    %v5219 = vcvt.f32.s32.to.zero.pseudo %v5218
    %vm5220 = vcmask 0
    %5221 = vst.msk [vmem:[#allocation13] sm:$0x1] %vm5220, %v5219
    // Predicated region
    $region138: #{tpu_custom_call.1} parent=1 // pred_check
      _
    $region139: #{tpu_custom_call.1} parent=1 // pred_check_branch
      %5223 = sbr.rel (0) target = $region141
    $region140: #{tpu_custom_call.1} parent=1 // pred_region
      %5225 = vsyncadd [#allocation5], 0
      %s5227 = sshll.u32 [#allocation9], 4
      %s5228 = int_to_ptr.vmem [resolvable:$true] %s5227
      %s5229 = sshll.u32 %s63, 4
      %s5230 = int_to_ptr.hbm [resolvable:$true] %s5229
      %5232 = dma.vmem_to_hbm [thread:$0]  %s5228, 32, %s5230, [#allocation5]
    $region141: #{tpu_custom_call.1} parent=1 // pred_fallthru
      _
    // Predicated region
    $region142: #{tpu_custom_call.1} parent=1 // pred_check
      _
    $region143: #{tpu_custom_call.1} parent=1 // pred_check_branch
      %5234 = sbr.rel (0) target = $region145
    $region144: #{tpu_custom_call.1} parent=1 // pred_region
      %5236 = vsyncadd [#allocation11], 0
      %s5238 = sshll.u32 [#allocation10], 4
      %s5239 = int_to_ptr.vmem [resolvable:$true] %s5238
      %s5240 = sshll.u32 %s65, 4
      %s5241 = int_to_ptr.hbm [resolvable:$true] %s5240
      %5243 = dma.vmem_to_hbm [thread:$0]  %s5239, 16, %s5241, [#allocation11]
    $region145: #{tpu_custom_call.1} parent=1 // pred_fallthru
      _
    // Predicated region
    $region146: #{tpu_custom_call.1} parent=1 // pred_check
      _
    $region147: #{tpu_custom_call.1} parent=1 // pred_check_branch
      %5245 = sbr.rel (0) target = $region149
    $region148: #{tpu_custom_call.1} parent=1 // pred_region
      %5247 = vsyncadd [#allocation11], 0
      %s5249 = sshll.u32 [#allocation12], 4
      %s5250 = int_to_ptr.vmem [resolvable:$true] %s5249
      %s5251 = sshll.u32 %s67, 4
      %s5252 = int_to_ptr.hbm [resolvable:$true] %s5251
      %5254 = dma.vmem_to_hbm [thread:$0]  %s5250, 16, %s5252, [#allocation11]
    $region149: #{tpu_custom_call.1} parent=1 // pred_fallthru
      _
    // Predicated region
    $region150: #{tpu_custom_call.1} parent=1 // pred_check
      _
    $region151: #{tpu_custom_call.1} parent=1 // pred_check_branch
      %5256 = sbr.rel (0) target = $region153
    $region152: #{tpu_custom_call.1} parent=1 // pred_region
      %5258 = vsyncadd [#allocation14], 0
      %s5260 = sshll.u32 [#allocation13], 4
      %s5261 = int_to_ptr.vmem [resolvable:$true] %s5260
      %s5262 = sshll.u32 %s69, 4
      %s5263 = int_to_ptr.hbm [resolvable:$true] %s5262
      %5265 = dma.vmem_to_hbm [thread:$0]  %s5261, 16, %s5263, [#allocation14]
    $region153: #{tpu_custom_call.1} parent=1 // pred_fallthru
      _
    // Predicated region
    $region154: #{tpu_custom_call.1} parent=1 // pred_check
      _
    $region155: #{tpu_custom_call.1} parent=1 // pred_check_branch
      %5267 = sbr.rel (0) target = $region157
    $region156: #{tpu_custom_call.1} parent=1 // pred_region
      %5269 = dma.done [#allocation5], 32
    $region157: #{tpu_custom_call.1} parent=1 // pred_fallthru
      _
    // Predicated region
    $region158: #{tpu_custom_call.1} parent=1 // pred_check
      _
    $region159: #{tpu_custom_call.1} parent=1 // pred_check_branch
      %5271 = sbr.rel (0) target = $region161
    $region160: #{tpu_custom_call.1} parent=1 // pred_region
      %5273 = dma.done [#allocation11], 16
    $region161: #{tpu_custom_call.1} parent=1 // pred_fallthru
      _
    // Predicated region
    $region162: #{tpu_custom_call.1} parent=1 // pred_check
      _
    $region163: #{tpu_custom_call.1} parent=1 // pred_check_branch
      %5275 = sbr.rel (0) target = $region165
    $region164: #{tpu_custom_call.1} parent=1 // pred_region
      %5277 = dma.done [#allocation11], 16
    $region165: #{tpu_custom_call.1} parent=1 // pred_fallthru
      _
    // Predicated region
    $region166: #{tpu_custom_call.1} parent=1 // pred_check
      _
    $region167: #{tpu_custom_call.1} parent=1 // pred_check_branch
      %5279 = sbr.rel (0) target = $region169
    $region168: #{tpu_custom_call.1} parent=1 // pred_region
      %5281 = dma.done [#allocation14], 16
    $region169: #{tpu_custom_call.1} parent=1 // pred_fallthru
      _
    %5282 = vsyncpa [#allocation4], 1
    %5283 = vsyncpa [#allocation7], 1
    %5284 = vsyncpa [#allocation5], 1
    %5285 = vsyncpa [#allocation11], 1
    %5286 = vsyncpa [#allocation14], 1

</llo_original>
